<compile_context>
chip_gen: v6e
topology: v6e:2x2x1
jax: 0.10.0
libtpu: 0.0.40
codegen_flags: <defaults>
</compile_context>

<pallas_src>
import functools

import jax
import jax.numpy as jnp
from jax.experimental import pallas as pl
from jax.experimental.pallas import tpu as pltpu


# ----------------------------------------------------------------------------
# Fused Res_1 kernel: one group per grid step, channels-first, batch on lanes.
# ----------------------------------------------------------------------------

def _res1_fused_kernel(x_ref, mask_ref, w1_ref, s1_ref, b1_ref,
                       ws_ref, ss_ref, bs_ref,
                       wb_ref, sb_ref, bb_ref,
                       f1w_ref, f1s_ref, f1b_ref, f2w_ref,
                       o_ref,
                       *, H, W, K, s_split, width, batch):
    P = H * W
    BP = batch * P
    M = s_split - 2
    out_ch = width * M
    pad = (K - 1) // 2
    KK = K * K
    taps = [(kh - pad, kw - pad) for kh in range(K) for kw in range(K)]

    # Hoist all per-lane masks once per grid step (KK tap masks + B batch masks).
    tap_m = [mask_ref[t] for t in range(KK)]            # each (1, BP) f32
    bat_m = [mask_ref[KK + b] for b in range(batch)]    # each (1, BP) f32

    def conv_bn_relu(x, w2, sc, bi):
        # x: (cin, BP) f32; w2: (cout, KK*cin) bf16; sc/bi: (cout, 1) f32.
        # KxK 'same' conv as ONE MXU matmul; im2col patch built in registers.
        slabs = []
        for t, (dh, dw) in enumerate(taps):
            if dh == 0 and dw == 0:
                slab = x
            else:
                shift = (-(dh * W + dw)) % BP
                # shifted[l] = x[(l + dh*W + dw) mod BP]; every lane whose
                # source crosses an image/batch boundary is zeroed by the tap
                # mask, restoring exact zero-padding per sample.
                slab = pltpu.roll(x, shift, axis=1) * tap_m[t]
            slabs.append(slab)
        patch = jnp.concatenate(slabs, axis=0).astype(jnp.bfloat16)  # (KK*cin, BP)
        y = jnp.dot(w2, patch, preferred_element_type=jnp.float32)
        return jnp.maximum(y * sc + bi, 0.0)

    # ---- Res_1: conv1 (grouped 1x1, bias) + bn1 + relu (BN folded) ----------
    x = x_ref[...]                                                   # (bands, BP)
    y1 = jnp.dot(w1_ref[...], x.astype(jnp.bfloat16),
                 preferred_element_type=jnp.float32)
    y1 = jnp.maximum(y1 * s1_ref[...] + b1_ref[...], 0.0)            # (bands, BP)

    # ---- IGCModule on this group's channels ---------------------------------
    spx = [y1[i * width:(i + 1) * width, :] for i in range(s_split)]
    sp1 = spx[0]                                                     # already >= 0
    sp2 = conv_bn_relu(spx[1], ws_ref[0], ss_ref[0], bs_ref[0])      # convs[0]

    # Short branches (PyTorch indexing: convs[i + 1 + j]); concat in registers.
    sp_parts = []
    for i in range(M):
        br = spx[2 + i]
        for j in range(i + 1):
            idx = i + 1 + j
            br = conv_bn_relu(br, ws_ref[idx], ss_ref[idx], bs_ref[idx])
        sp_parts.append(br)
    sp = jnp.concatenate(sp_parts, axis=0)                           # (out_ch, BP)

    # Wide branches (PyTorch indexing: convs[i + short_num + j]; wb starts at short_num).
    outputs = []
    for i in range(M):
        xb = sp
        for j in range(i + 1):
            idx = i + j
            xb = conv_bn_relu(xb, wb_ref[idx], sb_ref[idx], bb_ref[idx])
        outputs.append(xb)

    # ---- SK attention: per-sample GAP -> fc1(+bn+relu) -> fc2 -> softmax(M) --
    U1 = outputs[0]
    for m in range(1, M):
        U1 = U1 + outputs[m]
    inv_P = 1.0 / P
    f1w = f1w_ref[...]
    f1s = f1s_ref[...]
    f1b = f1b_ref[...]
    f2w = f2w_ref[...]

    V1 = None
    for b in range(batch):
        bm = bat_m[b]                                                # (1, BP)
        pool = jnp.sum(U1 * bm, axis=1, keepdims=True) * inv_P       # (out_ch, 1)
        z = jnp.dot(f1w, pool.astype(jnp.bfloat16),
                    preferred_element_type=jnp.float32)
        z = jnp.maximum(z * f1s + f1b, 0.0)                          # (d, 1)
        ab = jnp.dot(f2w, z.astype(jnp.bfloat16),
                     preferred_element_type=jnp.float32)             # (M*out_ch, 1)
        logits = [ab[m * out_ch:(m + 1) * out_ch, :] for m in range(M)]
        mx = logits[0]
        for m in range(1, M):
            mx = jnp.maximum(mx, logits[m])
        exps = [jnp.exp(l - mx) for l in logits]
        denom = exps[0]
        for m in range(1, M):
            denom = denom + exps[m]
        inv_d = pl.reciprocal(denom, approx=True)                    # (out_ch, 1)
        wsum = (exps[0] * inv_d) * outputs[0]
        for m in range(1, M):
            wsum = wsum + (exps[m] * inv_d) * outputs[m]
        contrib = wsum * bm                                          # only batch-b lanes
        V1 = contrib if V1 is None else V1 + contrib

    # out = relu(cat(sp1, sp2, V1)); sp1/sp2 are already post-ReLU, so only V1
    # needs the clamp.  One full-tile, unmasked, lane-dense store.
    o_ref[...] = jnp.concatenate([sp1, sp2, jnp.maximum(V1, 0.0)], axis=0)


# ----------------------------------------------------------------------------
# Wrapper: NCHW in / NCHW out, single pallas_call over a (groups,) grid.
# ----------------------------------------------------------------------------

def res1_forward(params, x_nchw, *, groups, s, kernel_size, padding):
    B, C, H, W = x_nchw.shape
    bands = C // groups
    width = bands // s
    assert s > 2 and s * width == bands, "exact channel split required"
    assert kernel_size % 2 == 1 and padding == (kernel_size - 1) // 2, \
        "spatial-size-preserving conv required"
    assert padding < H and padding < W, "roll+mask padding trick bounds"
    M = s - 2
    out_ch = width * M
    number = s * s - 3 * s + 3
    short_num = (s * s - 3 * s + 4) // 2
    n_big = number - short_num
    P = H * W
    BP = B * P
    KK = kernel_size * kernel_size

    # NCHW -> (groups, bands, B*H*W): group-major channels, batch folded into lanes.
    xg = (x_nchw.astype(jnp.float32)
          .reshape(B, groups, bands, P)
          .transpose(1, 2, 0, 3)
          .reshape(groups, bands, BP))

    # Per-lane masks: KK tap-validity rows (tiled over batch) + B batch-indicator rows.
    pp = jnp.arange(P, dtype=jnp.int32)
    hh = pp // W
    ww = pp % W
    rows = []
    for kh in range(kernel_size):
        for kw in range(kernel_size):
            dh, dw = kh - padding, kw - padding
            valid = ((hh + dh >= 0) & (hh + dh < H) &
                     (ww + dw >= 0) & (ww + dw < W)).astype(jnp.float32)
            rows.append(jnp.tile(valid, B))
    lane = jnp.arange(BP, dtype=jnp.int32)
    for b in range(B):
        rows.append(((lane // P) == b).astype(jnp.float32))
    masks = jnp.stack(rows).reshape(KK + B, 1, BP)

    # Advisory cost estimate (kernel is tiny / overhead-bound).
    n_small_calls = M * (M + 1) // 2 + 1
    n_big_calls = M * (M + 1) // 2
    flops = groups * BP * 2 * (bands * bands
                               + n_small_calls * KK * width * width
                               + n_big_calls * KK * out_ch * out_ch)
    transcendentals = groups * B * M * out_ch
    bytes_accessed = xg.size * 4 + groups * bands * BP * 4 + masks.size * 4
    for v in params.values():
        bytes_accessed += v.size * v.dtype.itemsize

    kern = functools.partial(_res1_fused_kernel, H=H, W=W, K=kernel_size,
                             s_split=s, width=width, batch=B)

    out = pl.pallas_call(
        kern,
        out_shape=jax.ShapeDtypeStruct((groups, bands, BP), jnp.float32),
        grid=(groups,),
        in_specs=[
            pl.BlockSpec((None, bands, BP), lambda g: (g, 0, 0)),                 # x (group slab)
            pl.BlockSpec((KK + B, 1, BP), lambda g: (0, 0, 0)),                   # tap + batch masks
            pl.BlockSpec((None, bands, bands), lambda g: (g, 0, 0)),              # conv1 W (bf16)
            pl.BlockSpec((None, bands, 1), lambda g: (g, 0, 0)),                  # conv1 scale
            pl.BlockSpec((None, bands, 1), lambda g: (g, 0, 0)),                  # conv1 bias
            pl.BlockSpec((None, short_num, width, KK * width), lambda g: (g, 0, 0, 0)),  # small conv W
            pl.BlockSpec((None, short_num, width, 1), lambda g: (g, 0, 0, 0)),           # small conv scale
            pl.BlockSpec((None, short_num, width, 1), lambda g: (g, 0, 0, 0)),           # small conv bias
            pl.BlockSpec((None, n_big, out_ch, KK * out_ch), lambda g: (g, 0, 0, 0)),    # big conv W
            pl.BlockSpec((None, n_big, out_ch, 1), lambda g: (g, 0, 0, 0)),              # big conv scale
            pl.BlockSpec((None, n_big, out_ch, 1), lambda g: (g, 0, 0, 0)),              # big conv bias
            pl.BlockSpec((None, width, out_ch), lambda g: (g, 0, 0)),             # fc1 W (d = width)
            pl.BlockSpec((None, width, 1), lambda g: (g, 0, 0)),                  # fc1 scale
            pl.BlockSpec((None, width, 1), lambda g: (g, 0, 0)),                  # fc1 bias
            pl.BlockSpec((None, M * out_ch, width), lambda g: (g, 0, 0)),         # fc2 W
        ],
        out_specs=pl.BlockSpec((None, bands, BP), lambda g: (g, 0, 0)),
        compiler_params=pltpu.CompilerParams(dimension_semantics=("parallel",)),
        cost_estimate=pl.CostEstimate(flops=flops,
                                      transcendentals=transcendentals,
                                      bytes_accessed=bytes_accessed),
    )(xg, masks,
      params['w1'], params['s1'], params['b1'],
      params['ws'], params['ss'], params['bs'],
      params['wb'], params['sb'], params['bb'],
      params['f1w'], params['f1s'], params['f1b'], params['f2w'])

    # (groups, bands, B*P) -> NCHW.
    return (out.reshape(groups, bands, B, P)
               .transpose(2, 0, 1, 3)
               .reshape(B, C, H, W))


# ----------------------------------------------------------------------------
# Deterministic parameter construction (inference-mode BN folded).
# ----------------------------------------------------------------------------

class ParamGen:
    def __init__(self, seed=1):
        self._key = jax.random.PRNGKey(seed)
        self._n = 0

    def normal(self, shape, scale=0.1):
        self._n += 1
        k = jax.random.fold_in(self._key, self._n)
        return (scale * jax.random.normal(k, shape)).astype(jnp.float32)


def make_params(in_channels, kernel_size, padding, groups, s, seed=1):
    gen = ParamGen(seed)
    bands = in_channels // groups
    width = bands // s
    M = s - 2
    number = s * s - 3 * s + 3
    short_num = (s * s - 3 * s + 4) // 2
    out_ch = width * M
    d = width
    KK = kernel_size * kernel_size
    eps = 1e-5
    bf16 = jnp.bfloat16

    def bn_fold(c):
        gamma = 1.0 + gen.normal((c,), 0.1)
        beta = gen.normal((c,), 0.1)
        mean = gen.normal((c,), 0.1)
        var = 1.0 + jnp.abs(gen.normal((c,), 0.1))
        scale = gamma / jnp.sqrt(var + eps)
        bias = beta - mean * scale
        return scale.astype(jnp.float32), bias.astype(jnp.float32)

    # Res_1.conv1 (grouped 1x1 with bias) + bn1, folded per group.
    bn1_scale, bn1_bias = bn_fold(in_channels)
    w1, s1, b1 = [], [], []
    for g in range(groups):
        wg = gen.normal((bands, bands), 0.2)              # (Cout, Cin)
        cb = gen.normal((bands,), 0.1)                    # conv1 bias
        sc = bn1_scale[g * bands:(g + 1) * bands]
        bi = bn1_bias[g * bands:(g + 1) * bands]
        w1.append(wg.astype(bf16))
        s1.append(sc.reshape(bands, 1))
        b1.append((sc * cb + bi).reshape(bands, 1))       # fold conv bias through BN

    ws, ss, bs = [], [], []
    wb, sb, bb = [], [], []
    f1w, f1s, f1b, f2w = [], [], [], []
    for g in range(groups):
        wsg, ssg, bsg, wbg, sbg, bbg = [], [], [], [], [], []
        for i in range(number):
            c = width if i <= short_num - 1 else out_ch
            w = gen.normal((c, KK * c), 0.2).astype(bf16)  # KxK conv, pre-flattened taps
            sc, bi = bn_fold(c)
            if i <= short_num - 1:
                wsg.append(w); ssg.append(sc.reshape(c, 1)); bsg.append(bi.reshape(c, 1))
            else:
                wbg.append(w); sbg.append(sc.reshape(c, 1)); bbg.append(bi.reshape(c, 1))
        ws.append(jnp.stack(wsg)); ss.append(jnp.stack(ssg)); bs.append(jnp.stack(bsg))
        wb.append(jnp.stack(wbg)); sb.append(jnp.stack(sbg)); bb.append(jnp.stack(bbg))
        f1w.append(gen.normal((d, out_ch), 0.2).astype(bf16))
        sc, bi = bn_fold(d)
        f1s.append(sc.reshape(d, 1)); f1b.append(bi.reshape(d, 1))
        f2w.append(gen.normal((M * out_ch, d), 0.2).astype(bf16))   # fc2: bias=False

    return {
        'w1': jnp.stack(w1), 's1': jnp.stack(s1), 'b1': jnp.stack(b1),
        'ws': jnp.stack(ws), 'ss': jnp.stack(ss), 'bs': jnp.stack(bs),
        'wb': jnp.stack(wb), 'sb': jnp.stack(sb), 'bb': jnp.stack(bb),
        'f1w': jnp.stack(f1w), 'f1s': jnp.stack(f1s), 'f1b': jnp.stack(f1b),
        'f2w': jnp.stack(f2w),
    }


# ----------------------------------------------------------------------------
# Main
# ----------------------------------------------------------------------------

if __name__ == "__main__":
    # Res_1(in_channels=32, kernel_size=3, padding=1, groups=2, s=4)
    in_channels, kernel_size, padding, groups, s = 32, 3, 1, 2, 4
    params = make_params(in_channels, kernel_size, padding, groups, s, seed=1)

    key = jax.random.PRNGKey(0)
    x = jax.random.normal(key, (2, in_channels, 16, 16), dtype=jnp.float32)

    fwd = jax.jit(functools.partial(res1_forward, groups=groups, s=s,
                                    kernel_size=kernel_size, padding=padding))
    out = jax.block_until_ready(fwd(params, x))

    assert out.shape == (2, in_channels, 16, 16), out.shape
    assert bool(jnp.all(jnp.isfinite(out)))
    assert bool(jnp.all(out >= 0.0))  # final ReLU
    print("KERNEL_OK")
</pallas_src>

<mosaic_0001>
module attributes {stable_mosaic.version = 11 : i64} {
  func.func @_res1_fused_kernel(%arg0: i32, %arg1: memref<1x16x512xf32, #tpu.memory_space<vmem>>, %arg2: memref<11x1x512xf32, #tpu.memory_space<vmem>>, %arg3: memref<1x16x16xbf16, #tpu.memory_space<vmem>>, %arg4: memref<1x16x1xf32, #tpu.memory_space<vmem>>, %arg5: memref<1x16x1xf32, #tpu.memory_space<vmem>>, %arg6: memref<1x4x4x36xbf16, #tpu.memory_space<vmem>>, %arg7: memref<1x4x4x1xf32, #tpu.memory_space<vmem>>, %arg8: memref<1x4x4x1xf32, #tpu.memory_space<vmem>>, %arg9: memref<1x3x8x72xbf16, #tpu.memory_space<vmem>>, %arg10: memref<1x3x8x1xf32, #tpu.memory_space<vmem>>, %arg11: memref<1x3x8x1xf32, #tpu.memory_space<vmem>>, %arg12: memref<1x4x8xbf16, #tpu.memory_space<vmem>>, %arg13: memref<1x4x1xf32, #tpu.memory_space<vmem>>, %arg14: memref<1x4x1xf32, #tpu.memory_space<vmem>>, %arg15: memref<1x16x4xbf16, #tpu.memory_space<vmem>>, %arg16: memref<1x16x512xf32, #tpu.memory_space<vmem>>) attributes {dimension_semantics = [#tpu.dimension_semantics<parallel>], iteration_bounds = array<i64: 2>, scalar_prefetch = 0 : i64, scratch_operands = 0 : i64, tpu.core_type = #tpu.core_type<tc>, window_params = [{transform_indices = @transform_0, window_bounds = array<i64: 1, 16, 512>}, {pipeline_mode = #tpu.pipeline_mode<synchronous>, transform_indices = @transform_1, window_bounds = array<i64: 11, 1, 512>}, {transform_indices = @transform_2, window_bounds = array<i64: 1, 16, 16>}, {transform_indices = @transform_3, window_bounds = array<i64: 1, 16, 1>}, {transform_indices = @transform_4, window_bounds = array<i64: 1, 16, 1>}, {transform_indices = @transform_5, window_bounds = array<i64: 1, 4, 4, 36>}, {transform_indices = @transform_6, window_bounds = array<i64: 1, 4, 4, 1>}, {transform_indices = @transform_7, window_bounds = array<i64: 1, 4, 4, 1>}, {transform_indices = @transform_8, window_bounds = array<i64: 1, 3, 8, 72>}, {transform_indices = @transform_9, window_bounds = array<i64: 1, 3, 8, 1>}, {transform_indices = @transform_10, window_bounds = array<i64: 1, 3, 8, 1>}, {transform_indices = @transform_11, window_bounds = array<i64: 1, 4, 8>}, {transform_indices = @transform_12, window_bounds = array<i64: 1, 4, 1>}, {transform_indices = @transform_13, window_bounds = array<i64: 1, 4, 1>}, {transform_indices = @transform_14, window_bounds = array<i64: 1, 16, 4>}, {transform_indices = @transform_15, window_bounds = array<i64: 1, 16, 512>}]} {
    %c0 = arith.constant 0 : index
    %c0_0 = arith.constant 0 : index
    %c0_1 = arith.constant 0 : index
    %0 = vector.load %arg2[%c0, %c0_0, %c0_1] : memref<11x1x512xf32, #tpu.memory_space<vmem>>, vector<1x1x512xf32>
    %1 = vector.shape_cast %0 : vector<1x1x512xf32> to vector<1x512xf32>
    %c1 = arith.constant 1 : index
    %c0_2 = arith.constant 0 : index
    %c0_3 = arith.constant 0 : index
    %2 = vector.load %arg2[%c1, %c0_2, %c0_3] : memref<11x1x512xf32, #tpu.memory_space<vmem>>, vector<1x1x512xf32>
    %3 = vector.shape_cast %2 : vector<1x1x512xf32> to vector<1x512xf32>
    %c2 = arith.constant 2 : index
    %c0_4 = arith.constant 0 : index
    %c0_5 = arith.constant 0 : index
    %4 = vector.load %arg2[%c2, %c0_4, %c0_5] : memref<11x1x512xf32, #tpu.memory_space<vmem>>, vector<1x1x512xf32>
    %5 = vector.shape_cast %4 : vector<1x1x512xf32> to vector<1x512xf32>
    %c3 = arith.constant 3 : index
    %c0_6 = arith.constant 0 : index
    %c0_7 = arith.constant 0 : index
    %6 = vector.load %arg2[%c3, %c0_6, %c0_7] : memref<11x1x512xf32, #tpu.memory_space<vmem>>, vector<1x1x512xf32>
    %7 = vector.shape_cast %6 : vector<1x1x512xf32> to vector<1x512xf32>
    %c5 = arith.constant 5 : index
    %c0_8 = arith.constant 0 : index
    %c0_9 = arith.constant 0 : index
    %8 = vector.load %arg2[%c5, %c0_8, %c0_9] : memref<11x1x512xf32, #tpu.memory_space<vmem>>, vector<1x1x512xf32>
    %9 = vector.shape_cast %8 : vector<1x1x512xf32> to vector<1x512xf32>
    %c6 = arith.constant 6 : index
    %c0_10 = arith.constant 0 : index
    %c0_11 = arith.constant 0 : index
    %10 = vector.load %arg2[%c6, %c0_10, %c0_11] : memref<11x1x512xf32, #tpu.memory_space<vmem>>, vector<1x1x512xf32>
    %11 = vector.shape_cast %10 : vector<1x1x512xf32> to vector<1x512xf32>
    %c7 = arith.constant 7 : index
    %c0_12 = arith.constant 0 : index
    %c0_13 = arith.constant 0 : index
    %12 = vector.load %arg2[%c7, %c0_12, %c0_13] : memref<11x1x512xf32, #tpu.memory_space<vmem>>, vector<1x1x512xf32>
    %13 = vector.shape_cast %12 : vector<1x1x512xf32> to vector<1x512xf32>
    %c8 = arith.constant 8 : index
    %c0_14 = arith.constant 0 : index
    %c0_15 = arith.constant 0 : index
    %14 = vector.load %arg2[%c8, %c0_14, %c0_15] : memref<11x1x512xf32, #tpu.memory_space<vmem>>, vector<1x1x512xf32>
    %15 = vector.shape_cast %14 : vector<1x1x512xf32> to vector<1x512xf32>
    %c9 = arith.constant 9 : index
    %c0_16 = arith.constant 0 : index
    %c0_17 = arith.constant 0 : index
    %16 = vector.load %arg2[%c9, %c0_16, %c0_17] : memref<11x1x512xf32, #tpu.memory_space<vmem>>, vector<1x1x512xf32>
    %17 = vector.shape_cast %16 : vector<1x1x512xf32> to vector<1x512xf32>
    %c10 = arith.constant 10 : index
    %c0_18 = arith.constant 0 : index
    %c0_19 = arith.constant 0 : index
    %18 = vector.load %arg2[%c10, %c0_18, %c0_19] : memref<11x1x512xf32, #tpu.memory_space<vmem>>, vector<1x1x512xf32>
    %19 = vector.shape_cast %18 : vector<1x1x512xf32> to vector<1x512xf32>
    %c0_20 = arith.constant 0 : index
    %c0_21 = arith.constant 0 : index
    %c0_22 = arith.constant 0 : index
    %20 = vector.load %arg1[%c0_20, %c0_21, %c0_22] : memref<1x16x512xf32, #tpu.memory_space<vmem>>, vector<1x16x512xf32>
    %21 = vector.shape_cast %20 : vector<1x16x512xf32> to vector<16x512xf32>
    %c0_23 = arith.constant 0 : index
    %c0_24 = arith.constant 0 : index
    %c0_25 = arith.constant 0 : index
    %22 = vector.load %arg3[%c0_23, %c0_24, %c0_25] : memref<1x16x16xbf16, #tpu.memory_space<vmem>>, vector<1x16x16xbf16>
    %23 = vector.shape_cast %22 : vector<1x16x16xbf16> to vector<16x16xbf16>
    %24 = arith.truncf %21 : vector<16x512xf32> to vector<16x512xbf16>
    %cst = arith.constant dense<0.000000e+00> : vector<16x512xf32>
    %25 = tpu.matmul %23, %24, %cst {dimension_numbers = #tpu.dot_dimension_numbers<[1], [0], [0], [1], [0, 0, 1, 1], [], []>} : vector<16x16xbf16>, vector<16x512xbf16>, vector<16x512xf32> -> vector<16x512xf32>
    %c0_26 = arith.constant 0 : index
    %c0_27 = arith.constant 0 : index
    %c0_28 = arith.constant 0 : index
    %26 = vector.load %arg4[%c0_26, %c0_27, %c0_28] : memref<1x16x1xf32, #tpu.memory_space<vmem>>, vector<1x16x1xf32>
    %27 = vector.shape_cast %26 : vector<1x16x1xf32> to vector<16x1xf32>
    %28 = vector.broadcast %27 : vector<16x1xf32> to vector<16x512xf32>
    %29 = arith.mulf %25, %28 : vector<16x512xf32>
    %c0_29 = arith.constant 0 : index
    %c0_30 = arith.constant 0 : index
    %c0_31 = arith.constant 0 : index
    %30 = vector.load %arg5[%c0_29, %c0_30, %c0_31] : memref<1x16x1xf32, #tpu.memory_space<vmem>>, vector<1x16x1xf32>
    %31 = vector.shape_cast %30 : vector<1x16x1xf32> to vector<16x1xf32>
    %32 = vector.broadcast %31 : vector<16x1xf32> to vector<16x512xf32>
    %33 = arith.addf %29, %32 : vector<16x512xf32>
    %cst_32 = arith.constant 0.000000e+00 : f32
    %34 = vector.broadcast %cst_32 : f32 to vector<16x512xf32>
    %35 = arith.maximumf %33, %34 : vector<16x512xf32>
    %36 = vector.extract_strided_slice %35 {offsets = [0, 0], sizes = [4, 512], strides = [1, 1]} : vector<16x512xf32> to vector<4x512xf32>
    %37 = vector.extract_strided_slice %35 {offsets = [4, 0], sizes = [4, 512], strides = [1, 1]} : vector<16x512xf32> to vector<4x512xf32>
    %38 = vector.extract_strided_slice %35 {offsets = [8, 0], sizes = [4, 512], strides = [1, 1]} : vector<16x512xf32> to vector<4x512xf32>
    %39 = vector.extract_strided_slice %35 {offsets = [12, 0], sizes = [4, 512], strides = [1, 1]} : vector<16x512xf32> to vector<4x512xf32>
    %c0_33 = arith.constant 0 : index
    %c0_34 = arith.constant 0 : index
    %c0_35 = arith.constant 0 : index
    %c0_36 = arith.constant 0 : index
    %40 = vector.load %arg6[%c0_33, %c0_34, %c0_35, %c0_36] : memref<1x4x4x36xbf16, #tpu.memory_space<vmem>>, vector<1x1x4x36xbf16>
    %41 = vector.shape_cast %40 : vector<1x1x4x36xbf16> to vector<4x36xbf16>
    %c0_37 = arith.constant 0 : index
    %c0_38 = arith.constant 0 : index
    %c0_39 = arith.constant 0 : index
    %c0_40 = arith.constant 0 : index
    %42 = vector.load %arg7[%c0_37, %c0_38, %c0_39, %c0_40] : memref<1x4x4x1xf32, #tpu.memory_space<vmem>>, vector<1x1x4x1xf32>
    %43 = vector.shape_cast %42 : vector<1x1x4x1xf32> to vector<4x1xf32>
    %c0_41 = arith.constant 0 : index
    %c0_42 = arith.constant 0 : index
    %c0_43 = arith.constant 0 : index
    %c0_44 = arith.constant 0 : index
    %44 = vector.load %arg8[%c0_41, %c0_42, %c0_43, %c0_44] : memref<1x4x4x1xf32, #tpu.memory_space<vmem>>, vector<1x1x4x1xf32>
    %45 = vector.shape_cast %44 : vector<1x1x4x1xf32> to vector<4x1xf32>
    %c17_i32 = arith.constant 17 : i32
    %46 = tpu.dynamic_rotate %37 by %c17_i32 dim 1 : vector<4x512xf32>, i32 -> vector<4x512xf32>
    %47 = vector.broadcast %1 : vector<1x512xf32> to vector<4x512xf32>
    %48 = arith.mulf %46, %47 : vector<4x512xf32>
    %c16_i32 = arith.constant 16 : i32
    %49 = tpu.dynamic_rotate %37 by %c16_i32 dim 1 : vector<4x512xf32>, i32 -> vector<4x512xf32>
    %50 = vector.broadcast %3 : vector<1x512xf32> to vector<4x512xf32>
    %51 = arith.mulf %49, %50 : vector<4x512xf32>
    %c15_i32 = arith.constant 15 : i32
    %52 = tpu.dynamic_rotate %37 by %c15_i32 dim 1 : vector<4x512xf32>, i32 -> vector<4x512xf32>
    %53 = vector.broadcast %5 : vector<1x512xf32> to vector<4x512xf32>
    %54 = arith.mulf %52, %53 : vector<4x512xf32>
    %c1_i32 = arith.constant 1 : i32
    %55 = tpu.dynamic_rotate %37 by %c1_i32 dim 1 : vector<4x512xf32>, i32 -> vector<4x512xf32>
    %56 = vector.broadcast %7 : vector<1x512xf32> to vector<4x512xf32>
    %57 = arith.mulf %55, %56 : vector<4x512xf32>
    %c511_i32 = arith.constant 511 : i32
    %58 = tpu.dynamic_rotate %37 by %c511_i32 dim 1 : vector<4x512xf32>, i32 -> vector<4x512xf32>
    %59 = vector.broadcast %9 : vector<1x512xf32> to vector<4x512xf32>
    %60 = arith.mulf %58, %59 : vector<4x512xf32>
    %c497_i32 = arith.constant 497 : i32
    %61 = tpu.dynamic_rotate %37 by %c497_i32 dim 1 : vector<4x512xf32>, i32 -> vector<4x512xf32>
    %62 = vector.broadcast %11 : vector<1x512xf32> to vector<4x512xf32>
    %63 = arith.mulf %61, %62 : vector<4x512xf32>
    %c496_i32 = arith.constant 496 : i32
    %64 = tpu.dynamic_rotate %37 by %c496_i32 dim 1 : vector<4x512xf32>, i32 -> vector<4x512xf32>
    %65 = vector.broadcast %13 : vector<1x512xf32> to vector<4x512xf32>
    %66 = arith.mulf %64, %65 : vector<4x512xf32>
    %c495_i32 = arith.constant 495 : i32
    %67 = tpu.dynamic_rotate %37 by %c495_i32 dim 1 : vector<4x512xf32>, i32 -> vector<4x512xf32>
    %68 = vector.broadcast %15 : vector<1x512xf32> to vector<4x512xf32>
    %69 = arith.mulf %67, %68 : vector<4x512xf32>
    %70 = tpu.concatenate %48, %51, %54, %57, %37, %60, %63, %66, %69 in 0 : vector<4x512xf32>, vector<4x512xf32>, vector<4x512xf32>, vector<4x512xf32>, vector<4x512xf32>, vector<4x512xf32>, vector<4x512xf32>, vector<4x512xf32>, vector<4x512xf32> -> vector<36x512xf32>
    %71 = arith.truncf %70 : vector<36x512xf32> to vector<36x512xbf16>
    %cst_45 = arith.constant dense<0.000000e+00> : vector<4x512xf32>
    %72 = tpu.matmul %41, %71, %cst_45 {dimension_numbers = #tpu.dot_dimension_numbers<[1], [0], [0], [1], [0, 0, 1, 1], [], []>} : vector<4x36xbf16>, vector<36x512xbf16>, vector<4x512xf32> -> vector<4x512xf32>
    %73 = vector.broadcast %43 : vector<4x1xf32> to vector<4x512xf32>
    %74 = arith.mulf %72, %73 : vector<4x512xf32>
    %75 = vector.broadcast %45 : vector<4x1xf32> to vector<4x512xf32>
    %76 = arith.addf %74, %75 : vector<4x512xf32>
    %cst_46 = arith.constant 0.000000e+00 : f32
    %77 = vector.broadcast %cst_46 : f32 to vector<4x512xf32>
    %78 = arith.maximumf %76, %77 : vector<4x512xf32>
    %c0_47 = arith.constant 0 : index
    %c1_48 = arith.constant 1 : index
    %c0_49 = arith.constant 0 : index
    %c0_50 = arith.constant 0 : index
    %79 = vector.load %arg6[%c0_47, %c1_48, %c0_49, %c0_50] : memref<1x4x4x36xbf16, #tpu.memory_space<vmem>>, vector<1x1x4x36xbf16>
    %80 = vector.shape_cast %79 : vector<1x1x4x36xbf16> to vector<4x36xbf16>
    %c0_51 = arith.constant 0 : index
    %c1_52 = arith.constant 1 : index
    %c0_53 = arith.constant 0 : index
    %c0_54 = arith.constant 0 : index
    %81 = vector.load %arg7[%c0_51, %c1_52, %c0_53, %c0_54] : memref<1x4x4x1xf32, #tpu.memory_space<vmem>>, vector<1x1x4x1xf32>
    %82 = vector.shape_cast %81 : vector<1x1x4x1xf32> to vector<4x1xf32>
    %c0_55 = arith.constant 0 : index
    %c1_56 = arith.constant 1 : index
    %c0_57 = arith.constant 0 : index
    %c0_58 = arith.constant 0 : index
    %83 = vector.load %arg8[%c0_55, %c1_56, %c0_57, %c0_58] : memref<1x4x4x1xf32, #tpu.memory_space<vmem>>, vector<1x1x4x1xf32>
    %84 = vector.shape_cast %83 : vector<1x1x4x1xf32> to vector<4x1xf32>
    %c17_i32_59 = arith.constant 17 : i32
    %85 = tpu.dynamic_rotate %38 by %c17_i32_59 dim 1 : vector<4x512xf32>, i32 -> vector<4x512xf32>
    %86 = vector.broadcast %1 : vector<1x512xf32> to vector<4x512xf32>
    %87 = arith.mulf %85, %86 : vector<4x512xf32>
    %c16_i32_60 = arith.constant 16 : i32
    %88 = tpu.dynamic_rotate %38 by %c16_i32_60 dim 1 : vector<4x512xf32>, i32 -> vector<4x512xf32>
    %89 = vector.broadcast %3 : vector<1x512xf32> to vector<4x512xf32>
    %90 = arith.mulf %88, %89 : vector<4x512xf32>
    %c15_i32_61 = arith.constant 15 : i32
    %91 = tpu.dynamic_rotate %38 by %c15_i32_61 dim 1 : vector<4x512xf32>, i32 -> vector<4x512xf32>
    %92 = vector.broadcast %5 : vector<1x512xf32> to vector<4x512xf32>
    %93 = arith.mulf %91, %92 : vector<4x512xf32>
    %c1_i32_62 = arith.constant 1 : i32
    %94 = tpu.dynamic_rotate %38 by %c1_i32_62 dim 1 : vector<4x512xf32>, i32 -> vector<4x512xf32>
    %95 = vector.broadcast %7 : vector<1x512xf32> to vector<4x512xf32>
    %96 = arith.mulf %94, %95 : vector<4x512xf32>
    %c511_i32_63 = arith.constant 511 : i32
    %97 = tpu.dynamic_rotate %38 by %c511_i32_63 dim 1 : vector<4x512xf32>, i32 -> vector<4x512xf32>
    %98 = vector.broadcast %9 : vector<1x512xf32> to vector<4x512xf32>
    %99 = arith.mulf %97, %98 : vector<4x512xf32>
    %c497_i32_64 = arith.constant 497 : i32
    %100 = tpu.dynamic_rotate %38 by %c497_i32_64 dim 1 : vector<4x512xf32>, i32 -> vector<4x512xf32>
    %101 = vector.broadcast %11 : vector<1x512xf32> to vector<4x512xf32>
    %102 = arith.mulf %100, %101 : vector<4x512xf32>
    %c496_i32_65 = arith.constant 496 : i32
    %103 = tpu.dynamic_rotate %38 by %c496_i32_65 dim 1 : vector<4x512xf32>, i32 -> vector<4x512xf32>
    %104 = vector.broadcast %13 : vector<1x512xf32> to vector<4x512xf32>
    %105 = arith.mulf %103, %104 : vector<4x512xf32>
    %c495_i32_66 = arith.constant 495 : i32
    %106 = tpu.dynamic_rotate %38 by %c495_i32_66 dim 1 : vector<4x512xf32>, i32 -> vector<4x512xf32>
    %107 = vector.broadcast %15 : vector<1x512xf32> to vector<4x512xf32>
    %108 = arith.mulf %106, %107 : vector<4x512xf32>
    %109 = tpu.concatenate %87, %90, %93, %96, %38, %99, %102, %105, %108 in 0 : vector<4x512xf32>, vector<4x512xf32>, vector<4x512xf32>, vector<4x512xf32>, vector<4x512xf32>, vector<4x512xf32>, vector<4x512xf32>, vector<4x512xf32>, vector<4x512xf32> -> vector<36x512xf32>
    %110 = arith.truncf %109 : vector<36x512xf32> to vector<36x512xbf16>
    %cst_67 = arith.constant dense<0.000000e+00> : vector<4x512xf32>
    %111 = tpu.matmul %80, %110, %cst_67 {dimension_numbers = #tpu.dot_dimension_numbers<[1], [0], [0], [1], [0, 0, 1, 1], [], []>} : vector<4x36xbf16>, vector<36x512xbf16>, vector<4x512xf32> -> vector<4x512xf32>
    %112 = vector.broadcast %82 : vector<4x1xf32> to vector<4x512xf32>
    %113 = arith.mulf %111, %112 : vector<4x512xf32>
    %114 = vector.broadcast %84 : vector<4x1xf32> to vector<4x512xf32>
    %115 = arith.addf %113, %114 : vector<4x512xf32>
    %cst_68 = arith.constant 0.000000e+00 : f32
    %116 = vector.broadcast %cst_68 : f32 to vector<4x512xf32>
    %117 = arith.maximumf %115, %116 : vector<4x512xf32>
    %c0_69 = arith.constant 0 : index
    %c2_70 = arith.constant 2 : index
    %c0_71 = arith.constant 0 : index
    %c0_72 = arith.constant 0 : index
    %118 = vector.load %arg6[%c0_69, %c2_70, %c0_71, %c0_72] : memref<1x4x4x36xbf16, #tpu.memory_space<vmem>>, vector<1x1x4x36xbf16>
    %119 = vector.shape_cast %118 : vector<1x1x4x36xbf16> to vector<4x36xbf16>
    %c0_73 = arith.constant 0 : index
    %c2_74 = arith.constant 2 : index
    %c0_75 = arith.constant 0 : index
    %c0_76 = arith.constant 0 : index
    %120 = vector.load %arg7[%c0_73, %c2_74, %c0_75, %c0_76] : memref<1x4x4x1xf32, #tpu.memory_space<vmem>>, vector<1x1x4x1xf32>
    %121 = vector.shape_cast %120 : vector<1x1x4x1xf32> to vector<4x1xf32>
    %c0_77 = arith.constant 0 : index
    %c2_78 = arith.constant 2 : index
    %c0_79 = arith.constant 0 : index
    %c0_80 = arith.constant 0 : index
    %122 = vector.load %arg8[%c0_77, %c2_78, %c0_79, %c0_80] : memref<1x4x4x1xf32, #tpu.memory_space<vmem>>, vector<1x1x4x1xf32>
    %123 = vector.shape_cast %122 : vector<1x1x4x1xf32> to vector<4x1xf32>
    %c17_i32_81 = arith.constant 17 : i32
    %124 = tpu.dynamic_rotate %39 by %c17_i32_81 dim 1 : vector<4x512xf32>, i32 -> vector<4x512xf32>
    %125 = vector.broadcast %1 : vector<1x512xf32> to vector<4x512xf32>
    %126 = arith.mulf %124, %125 : vector<4x512xf32>
    %c16_i32_82 = arith.constant 16 : i32
    %127 = tpu.dynamic_rotate %39 by %c16_i32_82 dim 1 : vector<4x512xf32>, i32 -> vector<4x512xf32>
    %128 = vector.broadcast %3 : vector<1x512xf32> to vector<4x512xf32>
    %129 = arith.mulf %127, %128 : vector<4x512xf32>
    %c15_i32_83 = arith.constant 15 : i32
    %130 = tpu.dynamic_rotate %39 by %c15_i32_83 dim 1 : vector<4x512xf32>, i32 -> vector<4x512xf32>
    %131 = vector.broadcast %5 : vector<1x512xf32> to vector<4x512xf32>
    %132 = arith.mulf %130, %131 : vector<4x512xf32>
    %c1_i32_84 = arith.constant 1 : i32
    %133 = tpu.dynamic_rotate %39 by %c1_i32_84 dim 1 : vector<4x512xf32>, i32 -> vector<4x512xf32>
    %134 = vector.broadcast %7 : vector<1x512xf32> to vector<4x512xf32>
    %135 = arith.mulf %133, %134 : vector<4x512xf32>
    %c511_i32_85 = arith.constant 511 : i32
    %136 = tpu.dynamic_rotate %39 by %c511_i32_85 dim 1 : vector<4x512xf32>, i32 -> vector<4x512xf32>
    %137 = vector.broadcast %9 : vector<1x512xf32> to vector<4x512xf32>
    %138 = arith.mulf %136, %137 : vector<4x512xf32>
    %c497_i32_86 = arith.constant 497 : i32
    %139 = tpu.dynamic_rotate %39 by %c497_i32_86 dim 1 : vector<4x512xf32>, i32 -> vector<4x512xf32>
    %140 = vector.broadcast %11 : vector<1x512xf32> to vector<4x512xf32>
    %141 = arith.mulf %139, %140 : vector<4x512xf32>
    %c496_i32_87 = arith.constant 496 : i32
    %142 = tpu.dynamic_rotate %39 by %c496_i32_87 dim 1 : vector<4x512xf32>, i32 -> vector<4x512xf32>
    %143 = vector.broadcast %13 : vector<1x512xf32> to vector<4x512xf32>
    %144 = arith.mulf %142, %143 : vector<4x512xf32>
    %c495_i32_88 = arith.constant 495 : i32
    %145 = tpu.dynamic_rotate %39 by %c495_i32_88 dim 1 : vector<4x512xf32>, i32 -> vector<4x512xf32>
    %146 = vector.broadcast %15 : vector<1x512xf32> to vector<4x512xf32>
    %147 = arith.mulf %145, %146 : vector<4x512xf32>
    %148 = tpu.concatenate %126, %129, %132, %135, %39, %138, %141, %144, %147 in 0 : vector<4x512xf32>, vector<4x512xf32>, vector<4x512xf32>, vector<4x512xf32>, vector<4x512xf32>, vector<4x512xf32>, vector<4x512xf32>, vector<4x512xf32>, vector<4x512xf32> -> vector<36x512xf32>
    %149 = arith.truncf %148 : vector<36x512xf32> to vector<36x512xbf16>
    %cst_89 = arith.constant dense<0.000000e+00> : vector<4x512xf32>
    %150 = tpu.matmul %119, %149, %cst_89 {dimension_numbers = #tpu.dot_dimension_numbers<[1], [0], [0], [1], [0, 0, 1, 1], [], []>} : vector<4x36xbf16>, vector<36x512xbf16>, vector<4x512xf32> -> vector<4x512xf32>
    %151 = vector.broadcast %121 : vector<4x1xf32> to vector<4x512xf32>
    %152 = arith.mulf %150, %151 : vector<4x512xf32>
    %153 = vector.broadcast %123 : vector<4x1xf32> to vector<4x512xf32>
    %154 = arith.addf %152, %153 : vector<4x512xf32>
    %cst_90 = arith.constant 0.000000e+00 : f32
    %155 = vector.broadcast %cst_90 : f32 to vector<4x512xf32>
    %156 = arith.maximumf %154, %155 : vector<4x512xf32>
    %c0_91 = arith.constant 0 : index
    %c3_92 = arith.constant 3 : index
    %c0_93 = arith.constant 0 : index
    %c0_94 = arith.constant 0 : index
    %157 = vector.load %arg6[%c0_91, %c3_92, %c0_93, %c0_94] : memref<1x4x4x36xbf16, #tpu.memory_space<vmem>>, vector<1x1x4x36xbf16>
    %158 = vector.shape_cast %157 : vector<1x1x4x36xbf16> to vector<4x36xbf16>
    %c0_95 = arith.constant 0 : index
    %c3_96 = arith.constant 3 : index
    %c0_97 = arith.constant 0 : index
    %c0_98 = arith.constant 0 : index
    %159 = vector.load %arg7[%c0_95, %c3_96, %c0_97, %c0_98] : memref<1x4x4x1xf32, #tpu.memory_space<vmem>>, vector<1x1x4x1xf32>
    %160 = vector.shape_cast %159 : vector<1x1x4x1xf32> to vector<4x1xf32>
    %c0_99 = arith.constant 0 : index
    %c3_100 = arith.constant 3 : index
    %c0_101 = arith.constant 0 : index
    %c0_102 = arith.constant 0 : index
    %161 = vector.load %arg8[%c0_99, %c3_100, %c0_101, %c0_102] : memref<1x4x4x1xf32, #tpu.memory_space<vmem>>, vector<1x1x4x1xf32>
    %162 = vector.shape_cast %161 : vector<1x1x4x1xf32> to vector<4x1xf32>
    %c17_i32_103 = arith.constant 17 : i32
    %163 = tpu.dynamic_rotate %156 by %c17_i32_103 dim 1 : vector<4x512xf32>, i32 -> vector<4x512xf32>
    %164 = vector.broadcast %1 : vector<1x512xf32> to vector<4x512xf32>
    %165 = arith.mulf %163, %164 : vector<4x512xf32>
    %c16_i32_104 = arith.constant 16 : i32
    %166 = tpu.dynamic_rotate %156 by %c16_i32_104 dim 1 : vector<4x512xf32>, i32 -> vector<4x512xf32>
    %167 = vector.broadcast %3 : vector<1x512xf32> to vector<4x512xf32>
    %168 = arith.mulf %166, %167 : vector<4x512xf32>
    %c15_i32_105 = arith.constant 15 : i32
    %169 = tpu.dynamic_rotate %156 by %c15_i32_105 dim 1 : vector<4x512xf32>, i32 -> vector<4x512xf32>
    %170 = vector.broadcast %5 : vector<1x512xf32> to vector<4x512xf32>
    %171 = arith.mulf %169, %170 : vector<4x512xf32>
    %c1_i32_106 = arith.constant 1 : i32
    %172 = tpu.dynamic_rotate %156 by %c1_i32_106 dim 1 : vector<4x512xf32>, i32 -> vector<4x512xf32>
    %173 = vector.broadcast %7 : vector<1x512xf32> to vector<4x512xf32>
    %174 = arith.mulf %172, %173 : vector<4x512xf32>
    %c511_i32_107 = arith.constant 511 : i32
    %175 = tpu.dynamic_rotate %156 by %c511_i32_107 dim 1 : vector<4x512xf32>, i32 -> vector<4x512xf32>
    %176 = vector.broadcast %9 : vector<1x512xf32> to vector<4x512xf32>
    %177 = arith.mulf %175, %176 : vector<4x512xf32>
    %c497_i32_108 = arith.constant 497 : i32
    %178 = tpu.dynamic_rotate %156 by %c497_i32_108 dim 1 : vector<4x512xf32>, i32 -> vector<4x512xf32>
    %179 = vector.broadcast %11 : vector<1x512xf32> to vector<4x512xf32>
    %180 = arith.mulf %178, %179 : vector<4x512xf32>
    %c496_i32_109 = arith.constant 496 : i32
    %181 = tpu.dynamic_rotate %156 by %c496_i32_109 dim 1 : vector<4x512xf32>, i32 -> vector<4x512xf32>
    %182 = vector.broadcast %13 : vector<1x512xf32> to vector<4x512xf32>
    %183 = arith.mulf %181, %182 : vector<4x512xf32>
    %c495_i32_110 = arith.constant 495 : i32
    %184 = tpu.dynamic_rotate %156 by %c495_i32_110 dim 1 : vector<4x512xf32>, i32 -> vector<4x512xf32>
    %185 = vector.broadcast %15 : vector<1x512xf32> to vector<4x512xf32>
    %186 = arith.mulf %184, %185 : vector<4x512xf32>
    %187 = tpu.concatenate %165, %168, %171, %174, %156, %177, %180, %183, %186 in 0 : vector<4x512xf32>, vector<4x512xf32>, vector<4x512xf32>, vector<4x512xf32>, vector<4x512xf32>, vector<4x512xf32>, vector<4x512xf32>, vector<4x512xf32>, vector<4x512xf32> -> vector<36x512xf32>
    %188 = arith.truncf %187 : vector<36x512xf32> to vector<36x512xbf16>
    %cst_111 = arith.constant dense<0.000000e+00> : vector<4x512xf32>
    %189 = tpu.matmul %158, %188, %cst_111 {dimension_numbers = #tpu.dot_dimension_numbers<[1], [0], [0], [1], [0, 0, 1, 1], [], []>} : vector<4x36xbf16>, vector<36x512xbf16>, vector<4x512xf32> -> vector<4x512xf32>
    %190 = vector.broadcast %160 : vector<4x1xf32> to vector<4x512xf32>
    %191 = arith.mulf %189, %190 : vector<4x512xf32>
    %192 = vector.broadcast %162 : vector<4x1xf32> to vector<4x512xf32>
    %193 = arith.addf %191, %192 : vector<4x512xf32>
    %cst_112 = arith.constant 0.000000e+00 : f32
    %194 = vector.broadcast %cst_112 : f32 to vector<4x512xf32>
    %195 = arith.maximumf %193, %194 : vector<4x512xf32>
    %196 = tpu.concatenate %117, %195 in 0 : vector<4x512xf32>, vector<4x512xf32> -> vector<8x512xf32>
    %c0_113 = arith.constant 0 : index
    %c0_114 = arith.constant 0 : index
    %c0_115 = arith.constant 0 : index
    %c0_116 = arith.constant 0 : index
    %197 = vector.load %arg9[%c0_113, %c0_114, %c0_115, %c0_116] : memref<1x3x8x72xbf16, #tpu.memory_space<vmem>>, vector<1x1x8x72xbf16>
    %198 = vector.shape_cast %197 : vector<1x1x8x72xbf16> to vector<8x72xbf16>
    %c0_117 = arith.constant 0 : index
    %c0_118 = arith.constant 0 : index
    %c0_119 = arith.constant 0 : index
    %c0_120 = arith.constant 0 : index
    %199 = vector.load %arg10[%c0_117, %c0_118, %c0_119, %c0_120] : memref<1x3x8x1xf32, #tpu.memory_space<vmem>>, vector<1x1x8x1xf32>
    %200 = vector.shape_cast %199 : vector<1x1x8x1xf32> to vector<8x1xf32>
    %c0_121 = arith.constant 0 : index
    %c0_122 = arith.constant 0 : index
    %c0_123 = arith.constant 0 : index
    %c0_124 = arith.constant 0 : index
    %201 = vector.load %arg11[%c0_121, %c0_122, %c0_123, %c0_124] : memref<1x3x8x1xf32, #tpu.memory_space<vmem>>, vector<1x1x8x1xf32>
    %202 = vector.shape_cast %201 : vector<1x1x8x1xf32> to vector<8x1xf32>
    %c17_i32_125 = arith.constant 17 : i32
    %203 = tpu.dynamic_rotate %196 by %c17_i32_125 dim 1 : vector<8x512xf32>, i32 -> vector<8x512xf32>
    %204 = vector.broadcast %1 : vector<1x512xf32> to vector<8x512xf32>
    %205 = arith.mulf %203, %204 : vector<8x512xf32>
    %c16_i32_126 = arith.constant 16 : i32
    %206 = tpu.dynamic_rotate %196 by %c16_i32_126 dim 1 : vector<8x512xf32>, i32 -> vector<8x512xf32>
    %207 = vector.broadcast %3 : vector<1x512xf32> to vector<8x512xf32>
    %208 = arith.mulf %206, %207 : vector<8x512xf32>
    %c15_i32_127 = arith.constant 15 : i32
    %209 = tpu.dynamic_rotate %196 by %c15_i32_127 dim 1 : vector<8x512xf32>, i32 -> vector<8x512xf32>
    %210 = vector.broadcast %5 : vector<1x512xf32> to vector<8x512xf32>
    %211 = arith.mulf %209, %210 : vector<8x512xf32>
    %c1_i32_128 = arith.constant 1 : i32
    %212 = tpu.dynamic_rotate %196 by %c1_i32_128 dim 1 : vector<8x512xf32>, i32 -> vector<8x512xf32>
    %213 = vector.broadcast %7 : vector<1x512xf32> to vector<8x512xf32>
    %214 = arith.mulf %212, %213 : vector<8x512xf32>
    %c511_i32_129 = arith.constant 511 : i32
    %215 = tpu.dynamic_rotate %196 by %c511_i32_129 dim 1 : vector<8x512xf32>, i32 -> vector<8x512xf32>
    %216 = vector.broadcast %9 : vector<1x512xf32> to vector<8x512xf32>
    %217 = arith.mulf %215, %216 : vector<8x512xf32>
    %c497_i32_130 = arith.constant 497 : i32
    %218 = tpu.dynamic_rotate %196 by %c497_i32_130 dim 1 : vector<8x512xf32>, i32 -> vector<8x512xf32>
    %219 = vector.broadcast %11 : vector<1x512xf32> to vector<8x512xf32>
    %220 = arith.mulf %218, %219 : vector<8x512xf32>
    %c496_i32_131 = arith.constant 496 : i32
    %221 = tpu.dynamic_rotate %196 by %c496_i32_131 dim 1 : vector<8x512xf32>, i32 -> vector<8x512xf32>
    %222 = vector.broadcast %13 : vector<1x512xf32> to vector<8x512xf32>
    %223 = arith.mulf %221, %222 : vector<8x512xf32>
    %c495_i32_132 = arith.constant 495 : i32
    %224 = tpu.dynamic_rotate %196 by %c495_i32_132 dim 1 : vector<8x512xf32>, i32 -> vector<8x512xf32>
    %225 = vector.broadcast %15 : vector<1x512xf32> to vector<8x512xf32>
    %226 = arith.mulf %224, %225 : vector<8x512xf32>
    %227 = tpu.concatenate %205, %208, %211, %214, %196, %217, %220, %223, %226 in 0 : vector<8x512xf32>, vector<8x512xf32>, vector<8x512xf32>, vector<8x512xf32>, vector<8x512xf32>, vector<8x512xf32>, vector<8x512xf32>, vector<8x512xf32>, vector<8x512xf32> -> vector<72x512xf32>
    %228 = arith.truncf %227 : vector<72x512xf32> to vector<72x512xbf16>
    %cst_133 = arith.constant dense<0.000000e+00> : vector<8x512xf32>
    %229 = tpu.matmul %198, %228, %cst_133 {dimension_numbers = #tpu.dot_dimension_numbers<[1], [0], [0], [1], [0, 0, 1, 1], [], []>} : vector<8x72xbf16>, vector<72x512xbf16>, vector<8x512xf32> -> vector<8x512xf32>
    %230 = vector.broadcast %200 : vector<8x1xf32> to vector<8x512xf32>
    %231 = arith.mulf %229, %230 : vector<8x512xf32>
    %232 = vector.broadcast %202 : vector<8x1xf32> to vector<8x512xf32>
    %233 = arith.addf %231, %232 : vector<8x512xf32>
    %cst_134 = arith.constant 0.000000e+00 : f32
    %234 = vector.broadcast %cst_134 : f32 to vector<8x512xf32>
    %235 = arith.maximumf %233, %234 : vector<8x512xf32>
    %c0_135 = arith.constant 0 : index
    %c1_136 = arith.constant 1 : index
    %c0_137 = arith.constant 0 : index
    %c0_138 = arith.constant 0 : index
    %236 = vector.load %arg9[%c0_135, %c1_136, %c0_137, %c0_138] : memref<1x3x8x72xbf16, #tpu.memory_space<vmem>>, vector<1x1x8x72xbf16>
    %237 = vector.shape_cast %236 : vector<1x1x8x72xbf16> to vector<8x72xbf16>
    %c0_139 = arith.constant 0 : index
    %c1_140 = arith.constant 1 : index
    %c0_141 = arith.constant 0 : index
    %c0_142 = arith.constant 0 : index
    %238 = vector.load %arg10[%c0_139, %c1_140, %c0_141, %c0_142] : memref<1x3x8x1xf32, #tpu.memory_space<vmem>>, vector<1x1x8x1xf32>
    %239 = vector.shape_cast %238 : vector<1x1x8x1xf32> to vector<8x1xf32>
    %c0_143 = arith.constant 0 : index
    %c1_144 = arith.constant 1 : index
    %c0_145 = arith.constant 0 : index
    %c0_146 = arith.constant 0 : index
    %240 = vector.load %arg11[%c0_143, %c1_144, %c0_145, %c0_146] : memref<1x3x8x1xf32, #tpu.memory_space<vmem>>, vector<1x1x8x1xf32>
    %241 = vector.shape_cast %240 : vector<1x1x8x1xf32> to vector<8x1xf32>
    %c17_i32_147 = arith.constant 17 : i32
    %242 = tpu.dynamic_rotate %196 by %c17_i32_147 dim 1 : vector<8x512xf32>, i32 -> vector<8x512xf32>
    %243 = vector.broadcast %1 : vector<1x512xf32> to vector<8x512xf32>
    %244 = arith.mulf %242, %243 : vector<8x512xf32>
    %c16_i32_148 = arith.constant 16 : i32
    %245 = tpu.dynamic_rotate %196 by %c16_i32_148 dim 1 : vector<8x512xf32>, i32 -> vector<8x512xf32>
    %246 = vector.broadcast %3 : vector<1x512xf32> to vector<8x512xf32>
    %247 = arith.mulf %245, %246 : vector<8x512xf32>
    %c15_i32_149 = arith.constant 15 : i32
    %248 = tpu.dynamic_rotate %196 by %c15_i32_149 dim 1 : vector<8x512xf32>, i32 -> vector<8x512xf32>
    %249 = vector.broadcast %5 : vector<1x512xf32> to vector<8x512xf32>
    %250 = arith.mulf %248, %249 : vector<8x512xf32>
    %c1_i32_150 = arith.constant 1 : i32
    %251 = tpu.dynamic_rotate %196 by %c1_i32_150 dim 1 : vector<8x512xf32>, i32 -> vector<8x512xf32>
    %252 = vector.broadcast %7 : vector<1x512xf32> to vector<8x512xf32>
    %253 = arith.mulf %251, %252 : vector<8x512xf32>
    %c511_i32_151 = arith.constant 511 : i32
    %254 = tpu.dynamic_rotate %196 by %c511_i32_151 dim 1 : vector<8x512xf32>, i32 -> vector<8x512xf32>
    %255 = vector.broadcast %9 : vector<1x512xf32> to vector<8x512xf32>
    %256 = arith.mulf %254, %255 : vector<8x512xf32>
    %c497_i32_152 = arith.constant 497 : i32
    %257 = tpu.dynamic_rotate %196 by %c497_i32_152 dim 1 : vector<8x512xf32>, i32 -> vector<8x512xf32>
    %258 = vector.broadcast %11 : vector<1x512xf32> to vector<8x512xf32>
    %259 = arith.mulf %257, %258 : vector<8x512xf32>
    %c496_i32_153 = arith.constant 496 : i32
    %260 = tpu.dynamic_rotate %196 by %c496_i32_153 dim 1 : vector<8x512xf32>, i32 -> vector<8x512xf32>
    %261 = vector.broadcast %13 : vector<1x512xf32> to vector<8x512xf32>
    %262 = arith.mulf %260, %261 : vector<8x512xf32>
    %c495_i32_154 = arith.constant 495 : i32
    %263 = tpu.dynamic_rotate %196 by %c495_i32_154 dim 1 : vector<8x512xf32>, i32 -> vector<8x512xf32>
    %264 = vector.broadcast %15 : vector<1x512xf32> to vector<8x512xf32>
    %265 = arith.mulf %263, %264 : vector<8x512xf32>
    %266 = tpu.concatenate %244, %247, %250, %253, %196, %256, %259, %262, %265 in 0 : vector<8x512xf32>, vector<8x512xf32>, vector<8x512xf32>, vector<8x512xf32>, vector<8x512xf32>, vector<8x512xf32>, vector<8x512xf32>, vector<8x512xf32>, vector<8x512xf32> -> vector<72x512xf32>
    %267 = arith.truncf %266 : vector<72x512xf32> to vector<72x512xbf16>
    %cst_155 = arith.constant dense<0.000000e+00> : vector<8x512xf32>
    %268 = tpu.matmul %237, %267, %cst_155 {dimension_numbers = #tpu.dot_dimension_numbers<[1], [0], [0], [1], [0, 0, 1, 1], [], []>} : vector<8x72xbf16>, vector<72x512xbf16>, vector<8x512xf32> -> vector<8x512xf32>
    %269 = vector.broadcast %239 : vector<8x1xf32> to vector<8x512xf32>
    %270 = arith.mulf %268, %269 : vector<8x512xf32>
    %271 = vector.broadcast %241 : vector<8x1xf32> to vector<8x512xf32>
    %272 = arith.addf %270, %271 : vector<8x512xf32>
    %cst_156 = arith.constant 0.000000e+00 : f32
    %273 = vector.broadcast %cst_156 : f32 to vector<8x512xf32>
    %274 = arith.maximumf %272, %273 : vector<8x512xf32>
    %c0_157 = arith.constant 0 : index
    %c2_158 = arith.constant 2 : index
    %c0_159 = arith.constant 0 : index
    %c0_160 = arith.constant 0 : index
    %275 = vector.load %arg9[%c0_157, %c2_158, %c0_159, %c0_160] : memref<1x3x8x72xbf16, #tpu.memory_space<vmem>>, vector<1x1x8x72xbf16>
    %276 = vector.shape_cast %275 : vector<1x1x8x72xbf16> to vector<8x72xbf16>
    %c0_161 = arith.constant 0 : index
    %c2_162 = arith.constant 2 : index
    %c0_163 = arith.constant 0 : index
    %c0_164 = arith.constant 0 : index
    %277 = vector.load %arg10[%c0_161, %c2_162, %c0_163, %c0_164] : memref<1x3x8x1xf32, #tpu.memory_space<vmem>>, vector<1x1x8x1xf32>
    %278 = vector.shape_cast %277 : vector<1x1x8x1xf32> to vector<8x1xf32>
    %c0_165 = arith.constant 0 : index
    %c2_166 = arith.constant 2 : index
    %c0_167 = arith.constant 0 : index
    %c0_168 = arith.constant 0 : index
    %279 = vector.load %arg11[%c0_165, %c2_166, %c0_167, %c0_168] : memref<1x3x8x1xf32, #tpu.memory_space<vmem>>, vector<1x1x8x1xf32>
    %280 = vector.shape_cast %279 : vector<1x1x8x1xf32> to vector<8x1xf32>
    %c17_i32_169 = arith.constant 17 : i32
    %281 = tpu.dynamic_rotate %274 by %c17_i32_169 dim 1 : vector<8x512xf32>, i32 -> vector<8x512xf32>
    %282 = vector.broadcast %1 : vector<1x512xf32> to vector<8x512xf32>
    %283 = arith.mulf %281, %282 : vector<8x512xf32>
    %c16_i32_170 = arith.constant 16 : i32
    %284 = tpu.dynamic_rotate %274 by %c16_i32_170 dim 1 : vector<8x512xf32>, i32 -> vector<8x512xf32>
    %285 = vector.broadcast %3 : vector<1x512xf32> to vector<8x512xf32>
    %286 = arith.mulf %284, %285 : vector<8x512xf32>
    %c15_i32_171 = arith.constant 15 : i32
    %287 = tpu.dynamic_rotate %274 by %c15_i32_171 dim 1 : vector<8x512xf32>, i32 -> vector<8x512xf32>
    %288 = vector.broadcast %5 : vector<1x512xf32> to vector<8x512xf32>
    %289 = arith.mulf %287, %288 : vector<8x512xf32>
    %c1_i32_172 = arith.constant 1 : i32
    %290 = tpu.dynamic_rotate %274 by %c1_i32_172 dim 1 : vector<8x512xf32>, i32 -> vector<8x512xf32>
    %291 = vector.broadcast %7 : vector<1x512xf32> to vector<8x512xf32>
    %292 = arith.mulf %290, %291 : vector<8x512xf32>
    %c511_i32_173 = arith.constant 511 : i32
    %293 = tpu.dynamic_rotate %274 by %c511_i32_173 dim 1 : vector<8x512xf32>, i32 -> vector<8x512xf32>
    %294 = vector.broadcast %9 : vector<1x512xf32> to vector<8x512xf32>
    %295 = arith.mulf %293, %294 : vector<8x512xf32>
    %c497_i32_174 = arith.constant 497 : i32
    %296 = tpu.dynamic_rotate %274 by %c497_i32_174 dim 1 : vector<8x512xf32>, i32 -> vector<8x512xf32>
    %297 = vector.broadcast %11 : vector<1x512xf32> to vector<8x512xf32>
    %298 = arith.mulf %296, %297 : vector<8x512xf32>
    %c496_i32_175 = arith.constant 496 : i32
    %299 = tpu.dynamic_rotate %274 by %c496_i32_175 dim 1 : vector<8x512xf32>, i32 -> vector<8x512xf32>
    %300 = vector.broadcast %13 : vector<1x512xf32> to vector<8x512xf32>
    %301 = arith.mulf %299, %300 : vector<8x512xf32>
    %c495_i32_176 = arith.constant 495 : i32
    %302 = tpu.dynamic_rotate %274 by %c495_i32_176 dim 1 : vector<8x512xf32>, i32 -> vector<8x512xf32>
    %303 = vector.broadcast %15 : vector<1x512xf32> to vector<8x512xf32>
    %304 = arith.mulf %302, %303 : vector<8x512xf32>
    %305 = tpu.concatenate %283, %286, %289, %292, %274, %295, %298, %301, %304 in 0 : vector<8x512xf32>, vector<8x512xf32>, vector<8x512xf32>, vector<8x512xf32>, vector<8x512xf32>, vector<8x512xf32>, vector<8x512xf32>, vector<8x512xf32>, vector<8x512xf32> -> vector<72x512xf32>
    %306 = arith.truncf %305 : vector<72x512xf32> to vector<72x512xbf16>
    %cst_177 = arith.constant dense<0.000000e+00> : vector<8x512xf32>
    %307 = tpu.matmul %276, %306, %cst_177 {dimension_numbers = #tpu.dot_dimension_numbers<[1], [0], [0], [1], [0, 0, 1, 1], [], []>} : vector<8x72xbf16>, vector<72x512xbf16>, vector<8x512xf32> -> vector<8x512xf32>
    %308 = vector.broadcast %278 : vector<8x1xf32> to vector<8x512xf32>
    %309 = arith.mulf %307, %308 : vector<8x512xf32>
    %310 = vector.broadcast %280 : vector<8x1xf32> to vector<8x512xf32>
    %311 = arith.addf %309, %310 : vector<8x512xf32>
    %cst_178 = arith.constant 0.000000e+00 : f32
    %312 = vector.broadcast %cst_178 : f32 to vector<8x512xf32>
    %313 = arith.maximumf %311, %312 : vector<8x512xf32>
    %314 = arith.addf %235, %313 : vector<8x512xf32>
    %c0_179 = arith.constant 0 : index
    %c0_180 = arith.constant 0 : index
    %c0_181 = arith.constant 0 : index
    %315 = vector.load %arg12[%c0_179, %c0_180, %c0_181] : memref<1x4x8xbf16, #tpu.memory_space<vmem>>, vector<1x4x8xbf16>
    %316 = vector.shape_cast %315 : vector<1x4x8xbf16> to vector<4x8xbf16>
    %c0_182 = arith.constant 0 : index
    %c0_183 = arith.constant 0 : index
    %c0_184 = arith.constant 0 : index
    %317 = vector.load %arg13[%c0_182, %c0_183, %c0_184] : memref<1x4x1xf32, #tpu.memory_space<vmem>>, vector<1x4x1xf32>
    %318 = vector.shape_cast %317 : vector<1x4x1xf32> to vector<4x1xf32>
    %c0_185 = arith.constant 0 : index
    %c0_186 = arith.constant 0 : index
    %c0_187 = arith.constant 0 : index
    %319 = vector.load %arg14[%c0_185, %c0_186, %c0_187] : memref<1x4x1xf32, #tpu.memory_space<vmem>>, vector<1x4x1xf32>
    %320 = vector.shape_cast %319 : vector<1x4x1xf32> to vector<4x1xf32>
    %c0_188 = arith.constant 0 : index
    %c0_189 = arith.constant 0 : index
    %c0_190 = arith.constant 0 : index
    %321 = vector.load %arg15[%c0_188, %c0_189, %c0_190] : memref<1x16x4xbf16, #tpu.memory_space<vmem>>, vector<1x16x4xbf16>
    %322 = vector.shape_cast %321 : vector<1x16x4xbf16> to vector<16x4xbf16>
    %323 = vector.broadcast %17 : vector<1x512xf32> to vector<8x512xf32>
    %324 = arith.mulf %314, %323 : vector<8x512xf32>
    %cst_191 = arith.constant dense<0.000000e+00> : vector<8xf32>
    %325 = vector.multi_reduction <add>, %324, %cst_191 [1] : vector<8x512xf32> to vector<8xf32>
    %326 = vector.shape_cast %325 : vector<8xf32> to vector<8x1xf32>
    %cst_192 = arith.constant 3.906250e-03 : f32
    %327 = vector.broadcast %cst_192 : f32 to vector<8x1xf32>
    %328 = arith.mulf %326, %327 : vector<8x1xf32>
    %329 = arith.truncf %328 : vector<8x1xf32> to vector<8x1xbf16>
    %cst_193 = arith.constant dense<0.000000e+00> : vector<4x1xf32>
    %330 = tpu.matmul %316, %329, %cst_193 {dimension_numbers = #tpu.dot_dimension_numbers<[1], [0], [0], [1], [0, 0, 1, 1], [], []>} : vector<4x8xbf16>, vector<8x1xbf16>, vector<4x1xf32> -> vector<4x1xf32>
    %331 = arith.mulf %330, %318 : vector<4x1xf32>
    %332 = arith.addf %331, %320 : vector<4x1xf32>
    %cst_194 = arith.constant 0.000000e+00 : f32
    %333 = vector.broadcast %cst_194 : f32 to vector<4x1xf32>
    %334 = arith.maximumf %332, %333 : vector<4x1xf32>
    %335 = arith.truncf %334 : vector<4x1xf32> to vector<4x1xbf16>
    %cst_195 = arith.constant dense<0.000000e+00> : vector<16x1xf32>
    %336 = tpu.matmul %322, %335, %cst_195 {dimension_numbers = #tpu.dot_dimension_numbers<[1], [0], [0], [1], [0, 0, 1, 1], [], []>} : vector<16x4xbf16>, vector<4x1xbf16>, vector<16x1xf32> -> vector<16x1xf32>
    %337 = vector.extract_strided_slice %336 {offsets = [0, 0], sizes = [8, 1], strides = [1, 1]} : vector<16x1xf32> to vector<8x1xf32>
    %338 = vector.extract_strided_slice %336 {offsets = [8, 0], sizes = [8, 1], strides = [1, 1]} : vector<16x1xf32> to vector<8x1xf32>
    %339 = arith.maximumf %337, %338 : vector<8x1xf32>
    %340 = arith.subf %337, %339 : vector<8x1xf32>
    %341 = math.exp %340 : vector<8x1xf32>
    %342 = arith.subf %338, %339 : vector<8x1xf32>
    %343 = math.exp %342 : vector<8x1xf32>
    %344 = arith.addf %341, %343 : vector<8x1xf32>
    %345 = tpu.reciprocal %344 {approx = true} : vector<8x1xf32> -> vector<8x1xf32>
    %346 = arith.mulf %341, %345 : vector<8x1xf32>
    %347 = vector.broadcast %346 : vector<8x1xf32> to vector<8x512xf32>
    %348 = arith.mulf %347, %235 : vector<8x512xf32>
    %349 = arith.mulf %343, %345 : vector<8x1xf32>
    %350 = vector.broadcast %349 : vector<8x1xf32> to vector<8x512xf32>
    %351 = arith.mulf %350, %313 : vector<8x512xf32>
    %352 = arith.addf %348, %351 : vector<8x512xf32>
    %353 = vector.broadcast %17 : vector<1x512xf32> to vector<8x512xf32>
    %354 = arith.mulf %352, %353 : vector<8x512xf32>
    %355 = vector.broadcast %19 : vector<1x512xf32> to vector<8x512xf32>
    %356 = arith.mulf %314, %355 : vector<8x512xf32>
    %cst_196 = arith.constant dense<0.000000e+00> : vector<8xf32>
    %357 = vector.multi_reduction <add>, %356, %cst_196 [1] : vector<8x512xf32> to vector<8xf32>
    %358 = vector.shape_cast %357 : vector<8xf32> to vector<8x1xf32>
    %cst_197 = arith.constant 3.906250e-03 : f32
    %359 = vector.broadcast %cst_197 : f32 to vector<8x1xf32>
    %360 = arith.mulf %358, %359 : vector<8x1xf32>
    %361 = arith.truncf %360 : vector<8x1xf32> to vector<8x1xbf16>
    %cst_198 = arith.constant dense<0.000000e+00> : vector<4x1xf32>
    %362 = tpu.matmul %316, %361, %cst_198 {dimension_numbers = #tpu.dot_dimension_numbers<[1], [0], [0], [1], [0, 0, 1, 1], [], []>} : vector<4x8xbf16>, vector<8x1xbf16>, vector<4x1xf32> -> vector<4x1xf32>
    %363 = arith.mulf %362, %318 : vector<4x1xf32>
    %364 = arith.addf %363, %320 : vector<4x1xf32>
    %cst_199 = arith.constant 0.000000e+00 : f32
    %365 = vector.broadcast %cst_199 : f32 to vector<4x1xf32>
    %366 = arith.maximumf %364, %365 : vector<4x1xf32>
    %367 = arith.truncf %366 : vector<4x1xf32> to vector<4x1xbf16>
    %cst_200 = arith.constant dense<0.000000e+00> : vector<16x1xf32>
    %368 = tpu.matmul %322, %367, %cst_200 {dimension_numbers = #tpu.dot_dimension_numbers<[1], [0], [0], [1], [0, 0, 1, 1], [], []>} : vector<16x4xbf16>, vector<4x1xbf16>, vector<16x1xf32> -> vector<16x1xf32>
    %369 = vector.extract_strided_slice %368 {offsets = [0, 0], sizes = [8, 1], strides = [1, 1]} : vector<16x1xf32> to vector<8x1xf32>
    %370 = vector.extract_strided_slice %368 {offsets = [8, 0], sizes = [8, 1], strides = [1, 1]} : vector<16x1xf32> to vector<8x1xf32>
    %371 = arith.maximumf %369, %370 : vector<8x1xf32>
    %372 = arith.subf %369, %371 : vector<8x1xf32>
    %373 = math.exp %372 : vector<8x1xf32>
    %374 = arith.subf %370, %371 : vector<8x1xf32>
    %375 = math.exp %374 : vector<8x1xf32>
    %376 = arith.addf %373, %375 : vector<8x1xf32>
    %377 = tpu.reciprocal %376 {approx = true} : vector<8x1xf32> -> vector<8x1xf32>
    %378 = arith.mulf %373, %377 : vector<8x1xf32>
    %379 = vector.broadcast %378 : vector<8x1xf32> to vector<8x512xf32>
    %380 = arith.mulf %379, %235 : vector<8x512xf32>
    %381 = arith.mulf %375, %377 : vector<8x1xf32>
    %382 = vector.broadcast %381 : vector<8x1xf32> to vector<8x512xf32>
    %383 = arith.mulf %382, %313 : vector<8x512xf32>
    %384 = arith.addf %380, %383 : vector<8x512xf32>
    %385 = vector.broadcast %19 : vector<1x512xf32> to vector<8x512xf32>
    %386 = arith.mulf %384, %385 : vector<8x512xf32>
    %387 = arith.addf %354, %386 : vector<8x512xf32>
    %cst_201 = arith.constant 0.000000e+00 : f32
    %388 = vector.broadcast %cst_201 : f32 to vector<8x512xf32>
    %389 = arith.maximumf %387, %388 : vector<8x512xf32>
    %390 = tpu.concatenate %36, %78, %389 in 0 : vector<4x512xf32>, vector<4x512xf32>, vector<8x512xf32> -> vector<16x512xf32>
    %c0_202 = arith.constant 0 : index
    %c0_203 = arith.constant 0 : index
    %c0_204 = arith.constant 0 : index
    %391 = vector.load %arg16[%c0_202, %c0_203, %c0_204] : memref<1x16x512xf32, #tpu.memory_space<vmem>>, vector<1x16x512xf32>
    %392 = vector.shape_cast %391 : vector<1x16x512xf32> to vector<16x512xf32>
    %393 = vector.shape_cast %390 : vector<16x512xf32> to vector<1x16x512xf32>
    tpu.vector_store %arg16[%c0_202, %c0_203, %c0_204], %393 {strides = array<i32>} : memref<1x16x512xf32, #tpu.memory_space<vmem>>, vector<1x16x512xf32>,
    return
  }
  func.func @transform_0(%arg0: i32) -> (i32, i32, i32) {
    %c0_i32 = arith.constant 0 : i32
    %c0_i32_0 = arith.constant 0 : i32
    %c0_i32_1 = arith.constant 0 : i32
    return %arg0, %c0_i32, %c0_i32_0 : i32, i32, i32
  }
  func.func @transform_1(%arg0: i32) -> (i32, i32, i32) {
    %c0_i32 = arith.constant 0 : i32
    %c0_i32_0 = arith.constant 0 : i32
    %c0_i32_1 = arith.constant 0 : i32
    %c0_i32_2 = arith.constant 0 : i32
    return %c0_i32, %c0_i32_0, %c0_i32_1 : i32, i32, i32
  }
  func.func @transform_2(%arg0: i32) -> (i32, i32, i32) {
    %c0_i32 = arith.constant 0 : i32
    %c0_i32_0 = arith.constant 0 : i32
    %c0_i32_1 = arith.constant 0 : i32
    return %arg0, %c0_i32, %c0_i32_0 : i32, i32, i32
  }
  func.func @transform_3(%arg0: i32) -> (i32, i32, i32) {
    %c0_i32 = arith.constant 0 : i32
    %c0_i32_0 = arith.constant 0 : i32
    %c0_i32_1 = arith.constant 0 : i32
    return %arg0, %c0_i32, %c0_i32_0 : i32, i32, i32
  }
  func.func @transform_4(%arg0: i32) -> (i32, i32, i32) {
    %c0_i32 = arith.constant 0 : i32
    %c0_i32_0 = arith.constant 0 : i32
    %c0_i32_1 = arith.constant 0 : i32
    return %arg0, %c0_i32, %c0_i32_0 : i32, i32, i32
  }
  func.func @transform_5(%arg0: i32) -> (i32, i32, i32, i32) {
    %c0_i32 = arith.constant 0 : i32
    %c0_i32_0 = arith.constant 0 : i32
    %c0_i32_1 = arith.constant 0 : i32
    %c0_i32_2 = arith.constant 0 : i32
    return %arg0, %c0_i32, %c0_i32_0, %c0_i32_1 : i32, i32, i32, i32
  }
  func.func @transform_6(%arg0: i32) -> (i32, i32, i32, i32) {
    %c0_i32 = arith.constant 0 : i32
    %c0_i32_0 = arith.constant 0 : i32
    %c0_i32_1 = arith.constant 0 : i32
    %c0_i32_2 = arith.constant 0 : i32
    return %arg0, %c0_i32, %c0_i32_0, %c0_i32_1 : i32, i32, i32, i32
  }
  func.func @transform_7(%arg0: i32) -> (i32, i32, i32, i32) {
    %c0_i32 = arith.constant 0 : i32
    %c0_i32_0 = arith.constant 0 : i32
    %c0_i32_1 = arith.constant 0 : i32
    %c0_i32_2 = arith.constant 0 : i32
    return %arg0, %c0_i32, %c0_i32_0, %c0_i32_1 : i32, i32, i32, i32
  }
  func.func @transform_8(%arg0: i32) -> (i32, i32, i32, i32) {
    %c0_i32 = arith.constant 0 : i32
    %c0_i32_0 = arith.constant 0 : i32
    %c0_i32_1 = arith.constant 0 : i32
    %c0_i32_2 = arith.constant 0 : i32
    return %arg0, %c0_i32, %c0_i32_0, %c0_i32_1 : i32, i32, i32, i32
  }
  func.func @transform_9(%arg0: i32) -> (i32, i32, i32, i32) {
    %c0_i32 = arith.constant 0 : i32
    %c0_i32_0 = arith.constant 0 : i32
    %c0_i32_1 = arith.constant 0 : i32
    %c0_i32_2 = arith.constant 0 : i32
    return %arg0, %c0_i32, %c0_i32_0, %c0_i32_1 : i32, i32, i32, i32
  }
  func.func @transform_10(%arg0: i32) -> (i32, i32, i32, i32) {
    %c0_i32 = arith.constant 0 : i32
    %c0_i32_0 = arith.constant 0 : i32
    %c0_i32_1 = arith.constant 0 : i32
    %c0_i32_2 = arith.constant 0 : i32
    return %arg0, %c0_i32, %c0_i32_0, %c0_i32_1 : i32, i32, i32, i32
  }
  func.func @transform_11(%arg0: i32) -> (i32, i32, i32) {
    %c0_i32 = arith.constant 0 : i32
    %c0_i32_0 = arith.constant 0 : i32
    %c0_i32_1 = arith.constant 0 : i32
    return %arg0, %c0_i32, %c0_i32_0 : i32, i32, i32
  }
  func.func @transform_12(%arg0: i32) -> (i32, i32, i32) {
    %c0_i32 = arith.constant 0 : i32
    %c0_i32_0 = arith.constant 0 : i32
    %c0_i32_1 = arith.constant 0 : i32
    return %arg0, %c0_i32, %c0_i32_0 : i32, i32, i32
  }
  func.func @transform_13(%arg0: i32) -> (i32, i32, i32) {
    %c0_i32 = arith.constant 0 : i32
    %c0_i32_0 = arith.constant 0 : i32
    %c0_i32_1 = arith.constant 0 : i32
    return %arg0, %c0_i32, %c0_i32_0 : i32, i32, i32
  }
  func.func @transform_14(%arg0: i32) -> (i32, i32, i32) {
    %c0_i32 = arith.constant 0 : i32
    %c0_i32_0 = arith.constant 0 : i32
    %c0_i32_1 = arith.constant 0 : i32
    return %arg0, %c0_i32, %c0_i32_0 : i32, i32, i32
  }
  func.func @transform_15(%arg0: i32) -> (i32, i32, i32) {
    %c0_i32 = arith.constant 0 : i32
    %c0_i32_0 = arith.constant 0 : i32
    %c0_i32_1 = arith.constant 0 : i32
    return %arg0, %c0_i32, %c0_i32_0 : i32, i32, i32
  }
}

</mosaic_0001>

<llo_original>
// kernel: res1_forward.1
$region0: #{res1_forward.1}
  #allocation0 [shape = 'u32[]', space=smem, size = 0x4, offset = 0x4, fixed_abs, tag = 'smem constant byte address 0x4 - core index']
  #allocation1 [shape = 'u32[144,128]{1,0:T(1,128)}', space=vmem, size = 0x12000, scoped, tag = 'internal scratch']
  %s0 = inlined_call_operand.vmem [shape: f32[2,16,512], index: 0, kind: input, shape index: {}]
  %s1 = inlined_call_operand.vmem [shape: f32[11,1,512], index: 1, kind: input, shape index: {}]
  %s2 = inlined_call_operand.vmem [shape: bf16[2,16,16], index: 2, kind: input, shape index: {}]
  %s3 = inlined_call_operand.vmem [shape: f32[2,16,1], index: 3, kind: input, shape index: {}]
  %s4 = inlined_call_operand.vmem [shape: f32[2,16,1], index: 4, kind: input, shape index: {}]
  %s5 = inlined_call_operand.vmem [shape: bf16[2,4,4,36], index: 5, kind: input, shape index: {}]
  %s6 = inlined_call_operand.vmem [shape: f32[2,4,4,1], index: 6, kind: input, shape index: {}]
  %s7 = inlined_call_operand.vmem [shape: f32[2,4,4,1], index: 7, kind: input, shape index: {}]
  %s8 = inlined_call_operand.vmem [shape: bf16[2,3,8,72], index: 8, kind: input, shape index: {}]
  %s9 = inlined_call_operand.vmem [shape: f32[2,3,8,1], index: 9, kind: input, shape index: {}]
  %s10 = inlined_call_operand.vmem [shape: f32[2,3,8,1], index: 10, kind: input, shape index: {}]
  %s11 = inlined_call_operand.vmem [shape: bf16[2,4,8], index: 11, kind: input, shape index: {}]
  %s12 = inlined_call_operand.vmem [shape: f32[2,4,1], index: 12, kind: input, shape index: {}]
  %s13 = inlined_call_operand.vmem [shape: f32[2,4,1], index: 13, kind: input, shape index: {}]
  %s14 = inlined_call_operand.vmem [shape: bf16[2,16,4], index: 14, kind: input, shape index: {}]
  %s15 = inlined_call_operand.vmem [shape: f32[2,16,512], index: 15, kind: output, shape index: {}]
  %s16 = sld [smem:[#allocation0]]
  $region93: #{res1_forward.1} parent=0
    _
  %s18 = ssub.s32 1, %s16
  %s19 = scalar_select 0, %s18, %s16
  loop: start=0, step=1, limit=4
  $region2: #{res1_forward.1} parent=0 // loop_pre_header
    _
  $region3: #{res1_forward.1} parent=0 // loop_header
    %s21 = sphi 0, %s25
    %p22 = scmp.ge.s32.totalorder %s21, 4
    %s31 = sphi 0, %s33
    %s34 = sphi 0, %s31
    %s35 = sphi 0, %s34
    %s51 = sphi 0, %s35
    %s55 = sphi 0, %s55
    %s57 = sphi 0, %s55
    %s58 = sphi 0, %s57
    %s72 = sphi 0, %s58
    %s78 = sphi 0, %s80
    %s81 = sphi 0, %s78
    %s82 = sphi 0, %s81
    %s98 = sphi 0, %s82
    %s104 = sphi 0, %s106
    %s107 = sphi 0, %s104
    %s108 = sphi 0, %s107
    %s124 = sphi 0, %s108
    %s130 = sphi 0, %s132
    %s133 = sphi 0, %s130
    %s134 = sphi 0, %s133
    %s150 = sphi 0, %s134
    %s156 = sphi 0, %s158
    %s159 = sphi 0, %s156
    %s160 = sphi 0, %s159
    %s176 = sphi 0, %s160
    %s182 = sphi 0, %s184
    %s185 = sphi 0, %s182
    %s186 = sphi 0, %s185
    %s202 = sphi 0, %s186
    %s208 = sphi 0, %s210
    %s211 = sphi 0, %s208
    %s212 = sphi 0, %s211
    %s228 = sphi 0, %s212
    %s234 = sphi 0, %s236
    %s237 = sphi 0, %s234
    %s238 = sphi 0, %s237
    %s254 = sphi 0, %s238
    %s260 = sphi 0, %s262
    %s263 = sphi 0, %s260
    %s264 = sphi 0, %s263
    %s280 = sphi 0, %s264
    %s286 = sphi 0, %s288
    %s289 = sphi 0, %s286
    %s290 = sphi 0, %s289
    %s306 = sphi 0, %s290
    %s312 = sphi 0, %s314
    %s315 = sphi 0, %s312
    %s316 = sphi 0, %s315
    %s332 = sphi 0, %s316
    %s338 = sphi 0, %s340
    %s341 = sphi 0, %s338
    %s342 = sphi 0, %s341
    %s358 = sphi 0, %s342
    %s364 = sphi 0, %s366
    %s367 = sphi 0, %s364
    %s368 = sphi 0, %s367
    %s384 = sphi 0, %s368
    %s390 = sphi 0, %s392
    %s393 = sphi 0, %s390
    %s394 = sphi 0, %s393
    %s410 = sphi 0, %s394
    %s416 = sphi 0, %s418
    %s419 = sphi 0, %s416
    %s420 = sphi 0, %s419
    %s436 = sphi 0, %s420
  $region4: #{res1_forward.1} parent=0 // loop_header_branch
    %24 = sbr.rel (%p22) target = $region8
  $region5: #{res1_forward.1} parent=0 // loop_body
    %s26 = ssub.s32 %s21, 1
    %s27 = ssub.s32 %s21, 2
    %s28 = sadd.s32 %s21, 1
    %s29 = ssub.s32 %s21, %s28
    %p30 = scmp.eq.s32.totalorder %s29, 0
    %s32 = sadd.s32 %s31, 1
    %s33 = scalar_select %p30, %s31, %s32
    %p36 = pneg %p30
    %p37 = scmp.eq.s32.totalorder %s21, 1
    %p38 = por %p36, %p37
    %p39 = scmp.ne.s32.totalorder %s31, %s34
    %p40 = scmp.eq.s32.totalorder %s21, 0
    %p41 = por %p39, %p40
    %p42 = scmp.ne.s32.totalorder %s31, %s34
    %p43 = scmp.eq.s32.totalorder %s26, 1
    %p44 = por %p42, %p43
    %p45 = scmp.ne.s32.totalorder %s34, %s35
    %p46 = scmp.eq.s32.totalorder %s26, 0
    %p47 = por %p45, %p46
    %p48 = scmp.ne.s32.totalorder %s34, %s35
    %p49 = scmp.eq.s32.totalorder %s27, 1
    %p50 = por %p48, %p49
    %p52 = scmp.ne.s32.totalorder %s35, %s51
    %p53 = scmp.eq.s32.totalorder %s27, 0
    %p54 = por %p52, %p53
    %s56 = sadd.s32 %s55, 1
    %p59 = scmp.eq.s32.totalorder %s21, 1
    %p60 = scmp.ne.s32.totalorder %s55, %s57
    %p61 = scmp.eq.s32.totalorder %s21, 0
    %p62 = por %p60, %p61
    %p63 = scmp.ne.s32.totalorder %s55, %s57
    %p64 = scmp.eq.s32.totalorder %s26, 1
    %p65 = por %p63, %p64
    %p66 = scmp.ne.s32.totalorder %s57, %s58
    %p67 = scmp.eq.s32.totalorder %s26, 0
    %p68 = por %p66, %p67
    %p69 = scmp.ne.s32.totalorder %s57, %s58
    %p70 = scmp.eq.s32.totalorder %s27, 1
    %p71 = por %p69, %p70
    %p73 = scmp.ne.s32.totalorder %s58, %s72
    %p74 = scmp.eq.s32.totalorder %s27, 0
    %p75 = por %p73, %p74
    %s76 = ssub.s32 %s21, %s28
    %p77 = scmp.eq.s32.totalorder %s76, 0
    %s79 = sadd.s32 %s78, 1
    %s80 = scalar_select %p77, %s78, %s79
    %p83 = pneg %p77
    %p84 = scmp.eq.s32.totalorder %s21, 1
    %p85 = por %p83, %p84
    %p86 = scmp.ne.s32.totalorder %s78, %s81
    %p87 = scmp.eq.s32.totalorder %s21, 0
    %p88 = por %p86, %p87
    %p89 = scmp.ne.s32.totalorder %s78, %s81
    %p90 = scmp.eq.s32.totalorder %s26, 1
    %p91 = por %p89, %p90
    %p92 = scmp.ne.s32.totalorder %s81, %s82
    %p93 = scmp.eq.s32.totalorder %s26, 0
    %p94 = por %p92, %p93
    %p95 = scmp.ne.s32.totalorder %s81, %s82
    %p96 = scmp.eq.s32.totalorder %s27, 1
    %p97 = por %p95, %p96
    %p99 = scmp.ne.s32.totalorder %s82, %s98
    %p100 = scmp.eq.s32.totalorder %s27, 0
    %p101 = por %p99, %p100
    %s102 = ssub.s32 %s21, %s28
    %p103 = scmp.eq.s32.totalorder %s102, 0
    %s105 = sadd.s32 %s104, 1
    %s106 = scalar_select %p103, %s104, %s105
    %p109 = pneg %p103
    %p110 = scmp.eq.s32.totalorder %s21, 1
    %p111 = por %p109, %p110
    %p112 = scmp.ne.s32.totalorder %s104, %s107
    %p113 = scmp.eq.s32.totalorder %s21, 0
    %p114 = por %p112, %p113
    %p115 = scmp.ne.s32.totalorder %s104, %s107
    %p116 = scmp.eq.s32.totalorder %s26, 1
    %p117 = por %p115, %p116
    %p118 = scmp.ne.s32.totalorder %s107, %s108
    %p119 = scmp.eq.s32.totalorder %s26, 0
    %p120 = por %p118, %p119
    %p121 = scmp.ne.s32.totalorder %s107, %s108
    %p122 = scmp.eq.s32.totalorder %s27, 1
    %p123 = por %p121, %p122
    %p125 = scmp.ne.s32.totalorder %s108, %s124
    %p126 = scmp.eq.s32.totalorder %s27, 0
    %p127 = por %p125, %p126
    %s128 = ssub.s32 %s21, %s28
    %p129 = scmp.eq.s32.totalorder %s128, 0
    %s131 = sadd.s32 %s130, 1
    %s132 = scalar_select %p129, %s130, %s131
    %p135 = pneg %p129
    %p136 = scmp.eq.s32.totalorder %s21, 1
    %p137 = por %p135, %p136
    %p138 = scmp.ne.s32.totalorder %s130, %s133
    %p139 = scmp.eq.s32.totalorder %s21, 0
    %p140 = por %p138, %p139
    %p141 = scmp.ne.s32.totalorder %s130, %s133
    %p142 = scmp.eq.s32.totalorder %s26, 1
    %p143 = por %p141, %p142
    %p144 = scmp.ne.s32.totalorder %s133, %s134
    %p145 = scmp.eq.s32.totalorder %s26, 0
    %p146 = por %p144, %p145
    %p147 = scmp.ne.s32.totalorder %s133, %s134
    %p148 = scmp.eq.s32.totalorder %s27, 1
    %p149 = por %p147, %p148
    %p151 = scmp.ne.s32.totalorder %s134, %s150
    %p152 = scmp.eq.s32.totalorder %s27, 0
    %p153 = por %p151, %p152
    %s154 = ssub.s32 %s21, %s28
    %p155 = scmp.eq.s32.totalorder %s154, 0
    %s157 = sadd.s32 %s156, 1
    %s158 = scalar_select %p155, %s156, %s157
    %p161 = pneg %p155
    %p162 = scmp.eq.s32.totalorder %s21, 1
    %p163 = por %p161, %p162
    %p164 = scmp.ne.s32.totalorder %s156, %s159
    %p165 = scmp.eq.s32.totalorder %s21, 0
    %p166 = por %p164, %p165
    %p167 = scmp.ne.s32.totalorder %s156, %s159
    %p168 = scmp.eq.s32.totalorder %s26, 1
    %p169 = por %p167, %p168
    %p170 = scmp.ne.s32.totalorder %s159, %s160
    %p171 = scmp.eq.s32.totalorder %s26, 0
    %p172 = por %p170, %p171
    %p173 = scmp.ne.s32.totalorder %s159, %s160
    %p174 = scmp.eq.s32.totalorder %s27, 1
    %p175 = por %p173, %p174
    %p177 = scmp.ne.s32.totalorder %s160, %s176
    %p178 = scmp.eq.s32.totalorder %s27, 0
    %p179 = por %p177, %p178
    %s180 = ssub.s32 %s21, %s28
    %p181 = scmp.eq.s32.totalorder %s180, 0
    %s183 = sadd.s32 %s182, 1
    %s184 = scalar_select %p181, %s182, %s183
    %p187 = pneg %p181
    %p188 = scmp.eq.s32.totalorder %s21, 1
    %p189 = por %p187, %p188
    %p190 = scmp.ne.s32.totalorder %s182, %s185
    %p191 = scmp.eq.s32.totalorder %s21, 0
    %p192 = por %p190, %p191
    %p193 = scmp.ne.s32.totalorder %s182, %s185
    %p194 = scmp.eq.s32.totalorder %s26, 1
    %p195 = por %p193, %p194
    %p196 = scmp.ne.s32.totalorder %s185, %s186
    %p197 = scmp.eq.s32.totalorder %s26, 0
    %p198 = por %p196, %p197
    %p199 = scmp.ne.s32.totalorder %s185, %s186
    %p200 = scmp.eq.s32.totalorder %s27, 1
    %p201 = por %p199, %p200
    %p203 = scmp.ne.s32.totalorder %s186, %s202
    %p204 = scmp.eq.s32.totalorder %s27, 0
    %p205 = por %p203, %p204
    %s206 = ssub.s32 %s21, %s28
    %p207 = scmp.eq.s32.totalorder %s206, 0
    %s209 = sadd.s32 %s208, 1
    %s210 = scalar_select %p207, %s208, %s209
    %p213 = pneg %p207
    %p214 = scmp.eq.s32.totalorder %s21, 1
    %p215 = por %p213, %p214
    %p216 = scmp.ne.s32.totalorder %s208, %s211
    %p217 = scmp.eq.s32.totalorder %s21, 0
    %p218 = por %p216, %p217
    %p219 = scmp.ne.s32.totalorder %s208, %s211
    %p220 = scmp.eq.s32.totalorder %s26, 1
    %p221 = por %p219, %p220
    %p222 = scmp.ne.s32.totalorder %s211, %s212
    %p223 = scmp.eq.s32.totalorder %s26, 0
    %p224 = por %p222, %p223
    %p225 = scmp.ne.s32.totalorder %s211, %s212
    %p226 = scmp.eq.s32.totalorder %s27, 1
    %p227 = por %p225, %p226
    %p229 = scmp.ne.s32.totalorder %s212, %s228
    %p230 = scmp.eq.s32.totalorder %s27, 0
    %p231 = por %p229, %p230
    %s232 = ssub.s32 %s21, %s28
    %p233 = scmp.eq.s32.totalorder %s232, 0
    %s235 = sadd.s32 %s234, 1
    %s236 = scalar_select %p233, %s234, %s235
    %p239 = pneg %p233
    %p240 = scmp.eq.s32.totalorder %s21, 1
    %p241 = por %p239, %p240
    %p242 = scmp.ne.s32.totalorder %s234, %s237
    %p243 = scmp.eq.s32.totalorder %s21, 0
    %p244 = por %p242, %p243
    %p245 = scmp.ne.s32.totalorder %s234, %s237
    %p246 = scmp.eq.s32.totalorder %s26, 1
    %p247 = por %p245, %p246
    %p248 = scmp.ne.s32.totalorder %s237, %s238
    %p249 = scmp.eq.s32.totalorder %s26, 0
    %p250 = por %p248, %p249
    %p251 = scmp.ne.s32.totalorder %s237, %s238
    %p252 = scmp.eq.s32.totalorder %s27, 1
    %p253 = por %p251, %p252
    %p255 = scmp.ne.s32.totalorder %s238, %s254
    %p256 = scmp.eq.s32.totalorder %s27, 0
    %p257 = por %p255, %p256
    %s258 = ssub.s32 %s21, %s28
    %p259 = scmp.eq.s32.totalorder %s258, 0
    %s261 = sadd.s32 %s260, 1
    %s262 = scalar_select %p259, %s260, %s261
    %p265 = pneg %p259
    %p266 = scmp.eq.s32.totalorder %s21, 1
    %p267 = por %p265, %p266
    %p268 = scmp.ne.s32.totalorder %s260, %s263
    %p269 = scmp.eq.s32.totalorder %s21, 0
    %p270 = por %p268, %p269
    %p271 = scmp.ne.s32.totalorder %s260, %s263
    %p272 = scmp.eq.s32.totalorder %s26, 1
    %p273 = por %p271, %p272
    %p274 = scmp.ne.s32.totalorder %s263, %s264
    %p275 = scmp.eq.s32.totalorder %s26, 0
    %p276 = por %p274, %p275
    %p277 = scmp.ne.s32.totalorder %s263, %s264
    %p278 = scmp.eq.s32.totalorder %s27, 1
    %p279 = por %p277, %p278
    %p281 = scmp.ne.s32.totalorder %s264, %s280
    %p282 = scmp.eq.s32.totalorder %s27, 0
    %p283 = por %p281, %p282
    %s284 = ssub.s32 %s21, %s28
    %p285 = scmp.eq.s32.totalorder %s284, 0
    %s287 = sadd.s32 %s286, 1
    %s288 = scalar_select %p285, %s286, %s287
    %p291 = pneg %p285
    %p292 = scmp.eq.s32.totalorder %s21, 1
    %p293 = por %p291, %p292
    %p294 = scmp.ne.s32.totalorder %s286, %s289
    %p295 = scmp.eq.s32.totalorder %s21, 0
    %p296 = por %p294, %p295
    %p297 = scmp.ne.s32.totalorder %s286, %s289
    %p298 = scmp.eq.s32.totalorder %s26, 1
    %p299 = por %p297, %p298
    %p300 = scmp.ne.s32.totalorder %s289, %s290
    %p301 = scmp.eq.s32.totalorder %s26, 0
    %p302 = por %p300, %p301
    %p303 = scmp.ne.s32.totalorder %s289, %s290
    %p304 = scmp.eq.s32.totalorder %s27, 1
    %p305 = por %p303, %p304
    %p307 = scmp.ne.s32.totalorder %s290, %s306
    %p308 = scmp.eq.s32.totalorder %s27, 0
    %p309 = por %p307, %p308
    %s310 = ssub.s32 %s21, %s28
    %p311 = scmp.eq.s32.totalorder %s310, 0
    %s313 = sadd.s32 %s312, 1
    %s314 = scalar_select %p311, %s312, %s313
    %p317 = pneg %p311
    %p318 = scmp.eq.s32.totalorder %s21, 1
    %p319 = por %p317, %p318
    %p320 = scmp.ne.s32.totalorder %s312, %s315
    %p321 = scmp.eq.s32.totalorder %s21, 0
    %p322 = por %p320, %p321
    %p323 = scmp.ne.s32.totalorder %s312, %s315
    %p324 = scmp.eq.s32.totalorder %s26, 1
    %p325 = por %p323, %p324
    %p326 = scmp.ne.s32.totalorder %s315, %s316
    %p327 = scmp.eq.s32.totalorder %s26, 0
    %p328 = por %p326, %p327
    %p329 = scmp.ne.s32.totalorder %s315, %s316
    %p330 = scmp.eq.s32.totalorder %s27, 1
    %p331 = por %p329, %p330
    %p333 = scmp.ne.s32.totalorder %s316, %s332
    %p334 = scmp.eq.s32.totalorder %s27, 0
    %p335 = por %p333, %p334
    %s336 = ssub.s32 %s21, %s28
    %p337 = scmp.eq.s32.totalorder %s336, 0
    %s339 = sadd.s32 %s338, 1
    %s340 = scalar_select %p337, %s338, %s339
    %p343 = pneg %p337
    %p344 = scmp.eq.s32.totalorder %s21, 1
    %p345 = por %p343, %p344
    %p346 = scmp.ne.s32.totalorder %s338, %s341
    %p347 = scmp.eq.s32.totalorder %s21, 0
    %p348 = por %p346, %p347
    %p349 = scmp.ne.s32.totalorder %s338, %s341
    %p350 = scmp.eq.s32.totalorder %s26, 1
    %p351 = por %p349, %p350
    %p352 = scmp.ne.s32.totalorder %s341, %s342
    %p353 = scmp.eq.s32.totalorder %s26, 0
    %p354 = por %p352, %p353
    %p355 = scmp.ne.s32.totalorder %s341, %s342
    %p356 = scmp.eq.s32.totalorder %s27, 1
    %p357 = por %p355, %p356
    %p359 = scmp.ne.s32.totalorder %s342, %s358
    %p360 = scmp.eq.s32.totalorder %s27, 0
    %p361 = por %p359, %p360
    %s362 = ssub.s32 %s21, %s28
    %p363 = scmp.eq.s32.totalorder %s362, 0
    %s365 = sadd.s32 %s364, 1
    %s366 = scalar_select %p363, %s364, %s365
    %p369 = pneg %p363
    %p370 = scmp.eq.s32.totalorder %s21, 1
    %p371 = por %p369, %p370
    %p372 = scmp.ne.s32.totalorder %s364, %s367
    %p373 = scmp.eq.s32.totalorder %s21, 0
    %p374 = por %p372, %p373
    %p375 = scmp.ne.s32.totalorder %s364, %s367
    %p376 = scmp.eq.s32.totalorder %s26, 1
    %p377 = por %p375, %p376
    %p378 = scmp.ne.s32.totalorder %s367, %s368
    %p379 = scmp.eq.s32.totalorder %s26, 0
    %p380 = por %p378, %p379
    %p381 = scmp.ne.s32.totalorder %s367, %s368
    %p382 = scmp.eq.s32.totalorder %s27, 1
    %p383 = por %p381, %p382
    %p385 = scmp.ne.s32.totalorder %s368, %s384
    %p386 = scmp.eq.s32.totalorder %s27, 0
    %p387 = por %p385, %p386
    %s388 = ssub.s32 %s21, %s28
    %p389 = scmp.eq.s32.totalorder %s388, 0
    %s391 = sadd.s32 %s390, 1
    %s392 = scalar_select %p389, %s390, %s391
    %p395 = pneg %p389
    %p396 = scmp.eq.s32.totalorder %s21, 1
    %p397 = por %p395, %p396
    %p398 = scmp.ne.s32.totalorder %s390, %s393
    %p399 = scmp.eq.s32.totalorder %s21, 0
    %p400 = por %p398, %p399
    %p401 = scmp.ne.s32.totalorder %s390, %s393
    %p402 = scmp.eq.s32.totalorder %s26, 1
    %p403 = por %p401, %p402
    %p404 = scmp.ne.s32.totalorder %s393, %s394
    %p405 = scmp.eq.s32.totalorder %s26, 0
    %p406 = por %p404, %p405
    %p407 = scmp.ne.s32.totalorder %s393, %s394
    %p408 = scmp.eq.s32.totalorder %s27, 1
    %p409 = por %p407, %p408
    %p411 = scmp.ne.s32.totalorder %s394, %s410
    %p412 = scmp.eq.s32.totalorder %s27, 0
    %p413 = por %p411, %p412
    %s414 = ssub.s32 %s21, %s28
    %p415 = scmp.eq.s32.totalorder %s414, 0
    %s417 = sadd.s32 %s416, 1
    %s418 = scalar_select %p415, %s416, %s417
    %p421 = pneg %p415
    %p422 = scmp.eq.s32.totalorder %s21, 1
    %p423 = por %p421, %p422
    %p424 = scmp.ne.s32.totalorder %s416, %s419
    %p425 = scmp.eq.s32.totalorder %s21, 0
    %p426 = por %p424, %p425
    %p427 = scmp.ne.s32.totalorder %s416, %s419
    %p428 = scmp.eq.s32.totalorder %s26, 1
    %p429 = por %p427, %p428
    %p430 = scmp.ne.s32.totalorder %s419, %s420
    %p431 = scmp.eq.s32.totalorder %s26, 0
    %p432 = por %p430, %p431
    %p433 = scmp.ne.s32.totalorder %s419, %s420
    %p434 = scmp.eq.s32.totalorder %s27, 1
    %p435 = por %p433, %p434
    %p437 = scmp.ne.s32.totalorder %s420, %s436
    %p438 = scmp.eq.s32.totalorder %s27, 0
    %p439 = por %p437, %p438
    %p440 = scmp.le.s32.totalorder 1, %s21
    %p441 = scmp.lt.s32.totalorder %s21, 3
    %p442 = pnand %p440, %p441
    %p443 = pneg %p442
    // Predicated region
    $region9: #{res1_forward.1} parent=5 // pred_check
      _
    $region10: #{res1_forward.1} parent=5 // pred_check_branch
      %445 = sbr.rel (%p442) target = $region12
    $region11: #{res1_forward.1} parent=5 // pred_region
      %s446 = ssub.s32 %s21, 1
      // Predicated region
      $region13: #{res1_forward.1} parent=11 // pred_check
        %p447 = pneg %p68
      $region14: #{res1_forward.1} parent=11 // pred_check_branch
        %449 = sbr.rel (%p447) target = $region16
      $region15: #{res1_forward.1} parent=11 // pred_region
        _
      $region16: #{res1_forward.1} parent=11 // pred_fallthru
        _
    $region12: #{res1_forward.1} parent=5 // pred_fallthru
      _
    %p450 = scmp.lt.s32.totalorder %s21, 2
    // Predicated region
    $region17: #{res1_forward.1} parent=5 // pred_check
      %p451 = pneg %p450
    $region18: #{res1_forward.1} parent=5 // pred_check_branch
      %453 = sbr.rel (%p451) target = $region20
    $region19: #{res1_forward.1} parent=5 // pred_region
      // Predicated region
      $region21: #{res1_forward.1} parent=19 // pred_check
        %p454 = pneg %p41
      $region22: #{res1_forward.1} parent=19 // pred_check_branch
        %456 = sbr.rel (%p454) target = $region24
      $region23: #{res1_forward.1} parent=19 // pred_region
        %p457 = scmp.lt.s32.totalorder %s21, 1
        %s458 = scalar_select %p457, %s21, 1
        %s459 = smul.addr %s458, 8
        %s460 = smul.addr %s459, 8
        %s461 = scalar_lea.vmem %s0, %s460
      $region24: #{res1_forward.1} parent=19 // pred_fallthru
        _
      // Predicated region
      $region25: #{res1_forward.1} parent=19 // pred_check
        %p462 = pneg %p88
      $region26: #{res1_forward.1} parent=19 // pred_check_branch
        %464 = sbr.rel (%p462) target = $region28
      $region27: #{res1_forward.1} parent=19 // pred_region
        %p465 = scmp.lt.s32.totalorder %s21, 1
        %s466 = scalar_select %p465, %s21, 1
        %s467 = smul.addr %s466, 2
        %s468 = smul.addr %s467, 4
        %s469 = scalar_lea.vmem %s2, %s468
      $region28: #{res1_forward.1} parent=19 // pred_fallthru
        _
      // Predicated region
      $region29: #{res1_forward.1} parent=19 // pred_check
        %p470 = pneg %p114
      $region30: #{res1_forward.1} parent=19 // pred_check_branch
        %472 = sbr.rel (%p470) target = $region32
      $region31: #{res1_forward.1} parent=19 // pred_region
        %p473 = scmp.lt.s32.totalorder %s21, 1
        %s474 = scalar_select %p473, %s21, 1
        %s475 = smul.addr %s474, 2
        %s476 = smul.addr %s475, 8
        %s477 = scalar_lea.vmem %s3, %s476
      $region32: #{res1_forward.1} parent=19 // pred_fallthru
        _
      // Predicated region
      $region33: #{res1_forward.1} parent=19 // pred_check
        %p478 = pneg %p140
      $region34: #{res1_forward.1} parent=19 // pred_check_branch
        %480 = sbr.rel (%p478) target = $region36
      $region35: #{res1_forward.1} parent=19 // pred_region
        %p481 = scmp.lt.s32.totalorder %s21, 1
        %s482 = scalar_select %p481, %s21, 1
        %s483 = smul.addr %s482, 2
        %s484 = smul.addr %s483, 8
        %s485 = scalar_lea.vmem %s4, %s484
      $region36: #{res1_forward.1} parent=19 // pred_fallthru
        _
      // Predicated region
      $region37: #{res1_forward.1} parent=19 // pred_check
        %p486 = pneg %p166
      $region38: #{res1_forward.1} parent=19 // pred_check_branch
        %488 = sbr.rel (%p486) target = $region40
      $region39: #{res1_forward.1} parent=19 // pred_region
        %p489 = scmp.lt.s32.totalorder %s21, 1
        %s490 = scalar_select %p489, %s21, 1
        %s491 = smul.addr %s490, 4
        %s492 = smul.addr %s491, 2
        %s493 = scalar_lea.vmem %s5, %s492
      $region40: #{res1_forward.1} parent=19 // pred_fallthru
        _
      // Predicated region
      $region41: #{res1_forward.1} parent=19 // pred_check
        %p494 = pneg %p192
      $region42: #{res1_forward.1} parent=19 // pred_check_branch
        %496 = sbr.rel (%p494) target = $region44
      $region43: #{res1_forward.1} parent=19 // pred_region
        %p497 = scmp.lt.s32.totalorder %s21, 1
        %s498 = scalar_select %p497, %s21, 1
        %s499 = smul.addr %s498, 4
        %s500 = smul.addr %s499, 4
        %s501 = scalar_lea.vmem %s6, %s500
      $region44: #{res1_forward.1} parent=19 // pred_fallthru
        _
      // Predicated region
      $region45: #{res1_forward.1} parent=19 // pred_check
        %p502 = pneg %p218
      $region46: #{res1_forward.1} parent=19 // pred_check_branch
        %504 = sbr.rel (%p502) target = $region48
      $region47: #{res1_forward.1} parent=19 // pred_region
        %p505 = scmp.lt.s32.totalorder %s21, 1
        %s506 = scalar_select %p505, %s21, 1
        %s507 = smul.addr %s506, 4
        %s508 = smul.addr %s507, 4
        %s509 = scalar_lea.vmem %s7, %s508
      $region48: #{res1_forward.1} parent=19 // pred_fallthru
        _
      // Predicated region
      $region49: #{res1_forward.1} parent=19 // pred_check
        %p510 = pneg %p244
      $region50: #{res1_forward.1} parent=19 // pred_check_branch
        %512 = sbr.rel (%p510) target = $region52
      $region51: #{res1_forward.1} parent=19 // pred_region
        %p513 = scmp.lt.s32.totalorder %s21, 1
        %s514 = scalar_select %p513, %s21, 1
        %s515 = smul.addr %s514, 3
        %s516 = smul.addr %s515, 4
        %s517 = scalar_lea.vmem %s8, %s516
      $region52: #{res1_forward.1} parent=19 // pred_fallthru
        _
      // Predicated region
      $region53: #{res1_forward.1} parent=19 // pred_check
        %p518 = pneg %p270
      $region54: #{res1_forward.1} parent=19 // pred_check_branch
        %520 = sbr.rel (%p518) target = $region56
      $region55: #{res1_forward.1} parent=19 // pred_region
        %p521 = scmp.lt.s32.totalorder %s21, 1
        %s522 = scalar_select %p521, %s21, 1
        %s523 = smul.addr %s522, 3
        %s524 = smul.addr %s523, 8
        %s525 = scalar_lea.vmem %s9, %s524
      $region56: #{res1_forward.1} parent=19 // pred_fallthru
        _
      // Predicated region
      $region57: #{res1_forward.1} parent=19 // pred_check
        %p526 = pneg %p296
      $region58: #{res1_forward.1} parent=19 // pred_check_branch
        %528 = sbr.rel (%p526) target = $region60
      $region59: #{res1_forward.1} parent=19 // pred_region
        %p529 = scmp.lt.s32.totalorder %s21, 1
        %s530 = scalar_select %p529, %s21, 1
        %s531 = smul.addr %s530, 3
        %s532 = smul.addr %s531, 8
        %s533 = scalar_lea.vmem %s10, %s532
      $region60: #{res1_forward.1} parent=19 // pred_fallthru
        _
      // Predicated region
      $region61: #{res1_forward.1} parent=19 // pred_check
        %p534 = pneg %p322
      $region62: #{res1_forward.1} parent=19 // pred_check_branch
        %536 = sbr.rel (%p534) target = $region64
      $region63: #{res1_forward.1} parent=19 // pred_region
        %p537 = scmp.lt.s32.totalorder %s21, 1
        %s538 = scalar_select %p537, %s21, 1
        %s539 = smul.addr %s538, 2
        %s540 = scalar_lea.vmem %s11, %s539
      $region64: #{res1_forward.1} parent=19 // pred_fallthru
        _
      // Predicated region
      $region65: #{res1_forward.1} parent=19 // pred_check
        %p541 = pneg %p348
      $region66: #{res1_forward.1} parent=19 // pred_check_branch
        %543 = sbr.rel (%p541) target = $region68
      $region67: #{res1_forward.1} parent=19 // pred_region
        %p544 = scmp.lt.s32.totalorder %s21, 1
        %s545 = scalar_select %p544, %s21, 1
        %s546 = smul.addr %s545, 4
        %s547 = scalar_lea.vmem %s12, %s546
      $region68: #{res1_forward.1} parent=19 // pred_fallthru
        _
      // Predicated region
      $region69: #{res1_forward.1} parent=19 // pred_check
        %p548 = pneg %p374
      $region70: #{res1_forward.1} parent=19 // pred_check_branch
        %550 = sbr.rel (%p548) target = $region72
      $region71: #{res1_forward.1} parent=19 // pred_region
        %p551 = scmp.lt.s32.totalorder %s21, 1
        %s552 = scalar_select %p551, %s21, 1
        %s553 = smul.addr %s552, 4
        %s554 = scalar_lea.vmem %s13, %s553
      $region72: #{res1_forward.1} parent=19 // pred_fallthru
        _
      // Predicated region
      $region73: #{res1_forward.1} parent=19 // pred_check
        %p555 = pneg %p400
      $region74: #{res1_forward.1} parent=19 // pred_check_branch
        %557 = sbr.rel (%p555) target = $region76
      $region75: #{res1_forward.1} parent=19 // pred_region
        %p558 = scmp.lt.s32.totalorder %s21, 1
        %s559 = scalar_select %p558, %s21, 1
        %s560 = smul.addr %s559, 2
        %s561 = smul.addr %s560, 4
        %s562 = scalar_lea.vmem %s14, %s561
      $region76: #{res1_forward.1} parent=19 // pred_fallthru
        _
    $region20: #{res1_forward.1} parent=5 // pred_fallthru
      _
    %p563 = scmp.le.s32.totalorder 1, %s21
    %p564 = scmp.lt.s32.totalorder %s21, 3
    %p565 = pnand %p563, %p564
    %p566 = pneg %p565
    // Predicated region
    $region77: #{res1_forward.1} parent=5 // pred_check
      _
    $region78: #{res1_forward.1} parent=5 // pred_check_branch
      %568 = sbr.rel (%p565) target = $region80
    $region79: #{res1_forward.1} parent=5 // pred_region
      %s569 = ssub.s32 %s21, 1
      %p570 = scmp.lt.s32.totalorder %s26, 1
      %s571 = scalar_select %p570, %s26, 1
      %s572 = smul.addr %s571, 8
      %s573 = smul.addr %s572, 8
      %s574 = scalar_lea.vmem %s0, %s573
      %p575 = pneg %p47
      %p576 = pneg %p44
      %p577 = pneg %p68
      %p578 = pneg %p65
      %p579 = scmp.lt.s32.totalorder %s26, 1
      %s580 = scalar_select %p579, %s26, 1
      %s581 = smul.addr %s580, 2
      %s582 = smul.addr %s581, 4
      %s583 = scalar_lea.vmem %s2, %s582
      %p584 = pneg %p94
      %p585 = pneg %p91
      %p586 = scmp.lt.s32.totalorder %s26, 1
      %s587 = scalar_select %p586, %s26, 1
      %s588 = smul.addr %s587, 2
      %s589 = smul.addr %s588, 8
      %s590 = scalar_lea.vmem %s3, %s589
      %p591 = pneg %p120
      %p592 = pneg %p117
      %p593 = scmp.lt.s32.totalorder %s26, 1
      %s594 = scalar_select %p593, %s26, 1
      %s595 = smul.addr %s594, 2
      %s596 = smul.addr %s595, 8
      %s597 = scalar_lea.vmem %s4, %s596
      %p598 = pneg %p146
      %p599 = pneg %p143
      %p600 = scmp.lt.s32.totalorder %s26, 1
      %s601 = scalar_select %p600, %s26, 1
      %s602 = smul.addr %s601, 4
      %s603 = smul.addr %s602, 2
      %s604 = scalar_lea.vmem %s5, %s603
      %p605 = pneg %p172
      %p606 = pneg %p169
      %p607 = scmp.lt.s32.totalorder %s26, 1
      %s608 = scalar_select %p607, %s26, 1
      %s609 = smul.addr %s608, 4
      %s610 = smul.addr %s609, 4
      %s611 = scalar_lea.vmem %s6, %s610
      %p612 = pneg %p198
      %p613 = pneg %p195
      %p614 = scmp.lt.s32.totalorder %s26, 1
      %s615 = scalar_select %p614, %s26, 1
      %s616 = smul.addr %s615, 4
      %s617 = smul.addr %s616, 4
      %s618 = scalar_lea.vmem %s7, %s617
      %p619 = pneg %p224
      %p620 = pneg %p221
      %p621 = scmp.lt.s32.totalorder %s26, 1
      %s622 = scalar_select %p621, %s26, 1
      %s623 = smul.addr %s622, 3
      %s624 = smul.addr %s623, 4
      %s625 = scalar_lea.vmem %s8, %s624
      %p626 = pneg %p250
      %p627 = pneg %p247
      %p628 = scmp.lt.s32.totalorder %s26, 1
      %s629 = scalar_select %p628, %s26, 1
      %s630 = smul.addr %s629, 3
      %s631 = smul.addr %s630, 8
      %s632 = scalar_lea.vmem %s9, %s631
      %p633 = pneg %p276
      %p634 = pneg %p273
      %p635 = scmp.lt.s32.totalorder %s26, 1
      %s636 = scalar_select %p635, %s26, 1
      %s637 = smul.addr %s636, 3
      %s638 = smul.addr %s637, 8
      %s639 = scalar_lea.vmem %s10, %s638
      %p640 = pneg %p302
      %p641 = pneg %p299
      %p642 = scmp.lt.s32.totalorder %s26, 1
      %s643 = scalar_select %p642, %s26, 1
      %s644 = smul.addr %s643, 2
      %s645 = scalar_lea.vmem %s11, %s644
      %p646 = pneg %p328
      %p647 = pneg %p325
      %p648 = scmp.lt.s32.totalorder %s26, 1
      %s649 = scalar_select %p648, %s26, 1
      %s650 = smul.addr %s649, 4
      %s651 = scalar_lea.vmem %s12, %s650
      %p652 = pneg %p354
      %p653 = pneg %p351
      %p654 = scmp.lt.s32.totalorder %s26, 1
      %s655 = scalar_select %p654, %s26, 1
      %s656 = smul.addr %s655, 4
      %s657 = scalar_lea.vmem %s13, %s656
      %p658 = pneg %p380
      %p659 = pneg %p377
      %p660 = scmp.lt.s32.totalorder %s26, 1
      %s661 = scalar_select %p660, %s26, 1
      %s662 = smul.addr %s661, 2
      %s663 = smul.addr %s662, 4
      %s664 = scalar_lea.vmem %s14, %s663
      %p665 = pneg %p406
      %p666 = pneg %p403
      %p667 = pneg %p432
      %p668 = pneg %p429
      %p669 = scmp.lt.s32.totalorder %s26, 1
      %s670 = scalar_select %p669, %s26, 1
      %s671 = smul.addr %s670, 8
      %s672 = smul.addr %s671, 8
      %s673 = scalar_lea.vmem %s15, %s672
      %p674 = scmp.lt.s32.totalorder %s26, 1
      %s675 = scalar_select %p674, %s26, 1
      %s676 = smul.addr %s675, 8
      %s677 = smul.addr %s676, 8
      %s678 = scalar_lea.vmem %s0, %s677
      %p679 = scmp.lt.s32.totalorder %s26, 1
      %s680 = scalar_select %p679, %s26, 1
      %s681 = smul.addr %s680, 2
      %s682 = smul.addr %s681, 4
      %s683 = scalar_lea.vmem %s2, %s682
      %p684 = scmp.lt.s32.totalorder %s26, 1
      %s685 = scalar_select %p684, %s26, 1
      %s686 = smul.addr %s685, 2
      %s687 = smul.addr %s686, 8
      %s688 = scalar_lea.vmem %s3, %s687
      %p689 = scmp.lt.s32.totalorder %s26, 1
      %s690 = scalar_select %p689, %s26, 1
      %s691 = smul.addr %s690, 2
      %s692 = smul.addr %s691, 8
      %s693 = scalar_lea.vmem %s4, %s692
      %p694 = scmp.lt.s32.totalorder %s26, 1
      %s695 = scalar_select %p694, %s26, 1
      %s696 = smul.addr %s695, 4
      %s697 = smul.addr %s696, 2
      %s698 = scalar_lea.vmem %s5, %s697
      %p699 = scmp.lt.s32.totalorder %s26, 1
      %s700 = scalar_select %p699, %s26, 1
      %s701 = smul.addr %s700, 4
      %s702 = smul.addr %s701, 4
      %s703 = scalar_lea.vmem %s6, %s702
      %p704 = scmp.lt.s32.totalorder %s26, 1
      %s705 = scalar_select %p704, %s26, 1
      %s706 = smul.addr %s705, 4
      %s707 = smul.addr %s706, 4
      %s708 = scalar_lea.vmem %s7, %s707
      %p709 = scmp.lt.s32.totalorder %s26, 1
      %s710 = scalar_select %p709, %s26, 1
      %s711 = smul.addr %s710, 3
      %s712 = smul.addr %s711, 4
      %s713 = scalar_lea.vmem %s8, %s712
      %p714 = scmp.lt.s32.totalorder %s26, 1
      %s715 = scalar_select %p714, %s26, 1
      %s716 = smul.addr %s715, 3
      %s717 = smul.addr %s716, 8
      %s718 = scalar_lea.vmem %s9, %s717
      %p719 = scmp.lt.s32.totalorder %s26, 1
      %s720 = scalar_select %p719, %s26, 1
      %s721 = smul.addr %s720, 3
      %s722 = smul.addr %s721, 8
      %s723 = scalar_lea.vmem %s10, %s722
      %p724 = scmp.lt.s32.totalorder %s26, 1
      %s725 = scalar_select %p724, %s26, 1
      %s726 = smul.addr %s725, 2
      %s727 = scalar_lea.vmem %s11, %s726
      %p728 = scmp.lt.s32.totalorder %s26, 1
      %s729 = scalar_select %p728, %s26, 1
      %s730 = smul.addr %s729, 4
      %s731 = scalar_lea.vmem %s12, %s730
      %p732 = scmp.lt.s32.totalorder %s26, 1
      %s733 = scalar_select %p732, %s26, 1
      %s734 = smul.addr %s733, 4
      %s735 = scalar_lea.vmem %s13, %s734
      %p736 = scmp.lt.s32.totalorder %s26, 1
      %s737 = scalar_select %p736, %s26, 1
      %s738 = smul.addr %s737, 2
      %s739 = smul.addr %s738, 4
      %s740 = scalar_lea.vmem %s14, %s739
      %p741 = scmp.lt.s32.totalorder %s26, 1
      %s742 = scalar_select %p741, %s26, 1
      %s743 = smul.addr %s742, 8
      %s744 = smul.addr %s743, 8
      %s745 = scalar_lea.vmem %s15, %s744
      %v747 = vld [vmem:[%s1] sm:$0xf]
      %s748 = scalar_lea.vmem %s1, 4
      %v749 = vld [vmem:[%s748] sm:$0xf]
      %s750 = scalar_lea.vmem %s1, 8
      %v751 = vld [vmem:[%s750] sm:$0xf]
      %s752 = scalar_lea.vmem %s1, 12
      %v753 = vld [vmem:[%s752] sm:$0xf]
      %s754 = scalar_lea.vmem %s1, 20
      %v755 = vld [vmem:[%s754] sm:$0xf]
      %s756 = scalar_lea.vmem %s1, 24
      %v757 = vld [vmem:[%s756] sm:$0xf]
      %s758 = scalar_lea.vmem %s1, 28
      %v759 = vld [vmem:[%s758] sm:$0xf]
      %s760 = scalar_lea.vmem %s1, 32
      %v761 = vld [vmem:[%s760] sm:$0xf]
      %s762 = scalar_lea.vmem %s1, 36
      %v763 = vld [vmem:[%s762] sm:$0xf]
      %s764 = scalar_lea.vmem %s1, 40
      %v765 = vld [vmem:[%s764] sm:$0xf]
      %v766 = vld [vmem:[%s678] sm:$0xff]
      %v767 = vld [vmem:[%s678 + $0x8] sm:$0xff]
      %v768 = vld [vmem:[%s678 + $0x10] sm:$0xff]
      %v769 = vld [vmem:[%s678 + $0x18] sm:$0xff]
      %v770 = vld [vmem:[%s678 + $0x20] sm:$0xff]
      %v771 = vld [vmem:[%s678 + $0x28] sm:$0xff]
      %v772 = vld [vmem:[%s678 + $0x30] sm:$0xff]
      %v773 = vld [vmem:[%s678 + $0x38] sm:$0xff]
      %v774 = vld [vmem:[%s683] sm:$0xf]
      %v775 = vld [vmem:[%s683 + $0x4] sm:$0xf]
      %v776 = vpack.c.bf16 %v770, %v766
      %v777 = vpack.c.bf16 %v771, %v767
      %v778 = vpack.c.bf16 %v772, %v768
      %v779 = vpack.c.bf16 %v773, %v769
      %v782 = vunpack.c.l.b16 %v774
      %v783 = vunpack.c.l.b16 %v775
      %v784 = vpack.c.b16 %v783, %v782
      %vm785 = vcmask 130048
      %v787 = vsel %vm785, %v784, 0
      %789 = vmatprep.subr.bf16.mxu0 0
      %790 = vmatpush1.bf16.msra.mxu0 0
      %791 = vmatprep.subr.bf16.mxu0 0
      %792 = vmatpush1.bf16.msra.mxu0 0
      %793 = vmatprep.subr.bf16.mxu0 0
      %794 = vmatpush1.bf16.msra.mxu0 0
      %795 = vmatprep.subr.bf16.mxu0 0
      %796 = vmatpush1.bf16.msra.mxu0 0
      %797 = vmatprep.subr.bf16.mxu0 0
      %798 = vmatpush1.bf16.msra.mxu0 0
      %799 = vmatprep.subr.bf16.mxu0 0
      %800 = vmatpush1.bf16.msra.mxu0 0
      %801 = vmatprep.subr.bf16.mxu0 0
      %802 = vmatpush1.bf16.msra.mxu0 0
      %803 = vmatprep.subr.bf16.mxu0 %v777
      %804 = vmatpush1.bf16.msra.mxu0 %v776
      %805 = vmatprep.subr.bf16.mxu0 0
      %806 = vmatpush2.bf16.msra.mxu0 0
      %807 = vmatprep.subr.bf16.mxu0 0
      %808 = vmatpush2.bf16.msra.mxu0 0
      %809 = vmatprep.subr.bf16.mxu0 0
      %810 = vmatpush2.bf16.msra.mxu0 0
      %811 = vmatprep.subr.bf16.mxu0 0
      %812 = vmatpush2.bf16.msra.mxu0 0
      %813 = vmatprep.subr.bf16.mxu0 0
      %814 = vmatpush2.bf16.msra.mxu0 0
      %815 = vmatprep.subr.bf16.mxu0 0
      %816 = vmatpush2.bf16.msra.mxu0 0
      %817 = vmatprep.subr.bf16.mxu0 0
      %818 = vmatpush2.bf16.msra.mxu0 0
      %819 = vmatprep.subr.bf16.mxu0 0
      %820 = vmatpush2.bf16.msra.mxu0 0
      %821 = vmatprep.mubr.bf16.mxu0 0
      %822 = vmatmul.mubr.bf16.gmra.mxu0 %v787
      %v823 = vpop.f32.mrf.mxu0
      %v824 = vadd.f32 0.0, %v823
      %v825 = vpop.f32.mrf.mxu0
      %v826 = vadd.f32 0.0, %v825
      %v827 = vpop.f32.mrf.mxu0
      %v828 = vadd.f32 0.0, %v827
      %v829 = vpop.f32.mrf.mxu0
      %v830 = vadd.f32 0.0, %v829
      %831 = vdwg.mxu0
      %832 = vmatprep.subr.bf16.mxu0 0
      %833 = vmatpush1.bf16.msra.mxu0 0
      %834 = vmatprep.subr.bf16.mxu0 0
      %835 = vmatpush1.bf16.msra.mxu0 0
      %836 = vmatprep.subr.bf16.mxu0 0
      %837 = vmatpush1.bf16.msra.mxu0 0
      %838 = vmatprep.subr.bf16.mxu0 0
      %839 = vmatpush1.bf16.msra.mxu0 0
      %840 = vmatprep.subr.bf16.mxu0 0
      %841 = vmatpush1.bf16.msra.mxu0 0
      %842 = vmatprep.subr.bf16.mxu0 0
      %843 = vmatpush1.bf16.msra.mxu0 0
      %844 = vmatprep.subr.bf16.mxu0 0
      %845 = vmatpush1.bf16.msra.mxu0 0
      %846 = vmatprep.subr.bf16.mxu0 %v779
      %847 = vmatpush1.bf16.msra.mxu0 %v778
      %848 = vmatprep.subr.bf16.mxu0 0
      %849 = vmatpush2.bf16.msra.mxu0 0
      %850 = vmatprep.subr.bf16.mxu0 0
      %851 = vmatpush2.bf16.msra.mxu0 0
      %852 = vmatprep.subr.bf16.mxu0 0
      %853 = vmatpush2.bf16.msra.mxu0 0
      %854 = vmatprep.subr.bf16.mxu0 0
      %855 = vmatpush2.bf16.msra.mxu0 0
      %856 = vmatprep.subr.bf16.mxu0 0
      %857 = vmatpush2.bf16.msra.mxu0 0
      %858 = vmatprep.subr.bf16.mxu0 0
      %859 = vmatpush2.bf16.msra.mxu0 0
      %860 = vmatprep.subr.bf16.mxu0 0
      %861 = vmatpush2.bf16.msra.mxu0 0
      %862 = vmatprep.subr.bf16.mxu0 0
      %863 = vmatpush2.bf16.msra.mxu0 0
      %864 = vmatprep.mubr.bf16.mxu0 0
      %865 = vmatmul.mubr.bf16.gmra.mxu0 %v787
      %v866 = vpop.f32.mrf.mxu0
      %v867 = vadd.f32 0.0, %v866
      %v868 = vpop.f32.mrf.mxu0
      %v869 = vadd.f32 0.0, %v868
      %v870 = vpop.f32.mrf.mxu0
      %v871 = vadd.f32 0.0, %v870
      %v872 = vpop.f32.mrf.mxu0
      %v873 = vadd.f32 0.0, %v872
      %874 = vdwg.mxu0
      %v875 = vld [vmem:[%s688] sm:$0xff]
      %v876 = vld [vmem:[%s688 + $0x8] sm:$0xff]
      %878 = vset.pattern.permute.xlu0 0
      %879 = vperm.xlu0 %878, %v875
      %v880 = vpop.permute.xlu0 %879
      %883 = vset.pattern.permute.xlu0 0
      %884 = vperm.xlu0 %883, %v876
      %v885 = vpop.permute.xlu0 %884
      %v887 = vmul.f32 %v824, %v880
      %v888 = vmul.f32 %v826, %v880
      %v889 = vmul.f32 %v867, %v880
      %v890 = vmul.f32 %v869, %v880
      %v891 = vmul.f32 %v828, %v885
      %v892 = vmul.f32 %v830, %v885
      %v893 = vmul.f32 %v871, %v885
      %v894 = vmul.f32 %v873, %v885
      %v895 = vld [vmem:[%s693] sm:$0xff]
      %v896 = vld [vmem:[%s693 + $0x8] sm:$0xff]
      %898 = vset.pattern.permute.xlu0 0
      %899 = vperm.xlu0 %898, %v895
      %v900 = vpop.permute.xlu0 %899
      %903 = vset.pattern.permute.xlu0 0
      %904 = vperm.xlu0 %903, %v896
      %v905 = vpop.permute.xlu0 %904
      %v907 = vadd.f32 %v887, %v900
      %v908 = vadd.f32 %v888, %v900
      %v909 = vadd.f32 %v889, %v900
      %v910 = vadd.f32 %v890, %v900
      %v911 = vadd.f32 %v891, %v905
      %v912 = vadd.f32 %v892, %v905
      %v913 = vadd.f32 %v893, %v905
      %v914 = vadd.f32 %v894, %v905
      %v915 = vmax.f32 %v907, 0.0
      %v916 = vmax.f32 %v908, 0.0
      %v917 = vmax.f32 %v909, 0.0
      %v918 = vmax.f32 %v910, 0.0
      %v919 = vmax.f32 %v911, 0.0
      %v920 = vmax.f32 %v912, 0.0
      %v921 = vmax.f32 %v913, 0.0
      %v922 = vmax.f32 %v914, 0.0
      %v923 = vld [vmem:[%s698] sm:$0x3]
      %v924 = vld [vmem:[%s703] sm:$0xf]
      %v925 = vld [vmem:[%s708] sm:$0xf]
      %v930 = vrot.slane %v915, 4
      %v931 = vrot.slane %v916, 4
      %v932 = vrot.slane %v917, 4
      %v933 = vrot.slane %v918, 4
      %938 = vrot.lane.b32.xlu0 %v930, 17
      %v939 = vpop.permute.xlu0 %938
      %940 = vrot.lane.b32.xlu0 %v931, 17
      %v941 = vpop.permute.xlu0 %940
      %942 = vrot.lane.b32.xlu0 %v932, 17
      %v943 = vpop.permute.xlu0 %942
      %944 = vrot.lane.b32.xlu0 %v933, 17
      %v945 = vpop.permute.xlu0 %944
      %v946 = vlaneseq
      %v947 = vand.u32 %v946, 127
      %vm948 = vcmp.lt.s32.totalorder %v947, 17
      %v949 = vsel %vm948, %v943, %v945
      %v950 = vsel %vm948, %v941, %v943
      %v951 = vsel %vm948, %v939, %v941
      %v952 = vsel %vm948, %v945, %v939
      %v954 = vlaneseq
      %v955 = vshrl.u32 %v954, 7
      %v956 = vsub.s32 0, %v955
      %v957 = vrot.slane %v747, %v956
      %v958 = vlaneseq
      %v959 = vshrl.u32 %v958, 7
      %v960 = vsub.s32 1, %v959
      %v961 = vrot.slane %v747, %v960
      %v962 = vlaneseq
      %v963 = vshrl.u32 %v962, 7
      %v964 = vsub.s32 2, %v963
      %v965 = vrot.slane %v747, %v964
      %v966 = vlaneseq
      %v967 = vshrl.u32 %v966, 7
      %v968 = vsub.s32 3, %v967
      %v969 = vrot.slane %v747, %v968
      %v974 = vmul.f32 %v952, %v957
      %v975 = vmul.f32 %v951, %v961
      %v976 = vmul.f32 %v950, %v965
      %v977 = vmul.f32 %v949, %v969
      %978 = vrot.lane.b32.xlu0 %v930, 16
      %v979 = vpop.permute.xlu0 %978
      %980 = vrot.lane.b32.xlu0 %v931, 16
      %v981 = vpop.permute.xlu0 %980
      %982 = vrot.lane.b32.xlu0 %v932, 16
      %v983 = vpop.permute.xlu0 %982
      %984 = vrot.lane.b32.xlu0 %v933, 16
      %v985 = vpop.permute.xlu0 %984
      %vm986 = vcmp.lt.s32.totalorder %v947, 16
      %v987 = vsel %vm986, %v983, %v985
      %v988 = vsel %vm986, %v981, %v983
      %v989 = vsel %vm986, %v979, %v981
      %v990 = vsel %vm986, %v985, %v979
      %v992 = vlaneseq
      %v993 = vshrl.u32 %v992, 7
      %v994 = vsub.s32 0, %v993
      %v995 = vrot.slane %v749, %v994
      %v996 = vlaneseq
      %v997 = vshrl.u32 %v996, 7
      %v998 = vsub.s32 1, %v997
      %v999 = vrot.slane %v749, %v998
      %v1000 = vlaneseq
      %v1001 = vshrl.u32 %v1000, 7
      %v1002 = vsub.s32 2, %v1001
      %v1003 = vrot.slane %v749, %v1002
      %v1004 = vlaneseq
      %v1005 = vshrl.u32 %v1004, 7
      %v1006 = vsub.s32 3, %v1005
      %v1007 = vrot.slane %v749, %v1006
      %v1012 = vmul.f32 %v990, %v995
      %v1013 = vmul.f32 %v989, %v999
      %v1014 = vmul.f32 %v988, %v1003
      %v1015 = vmul.f32 %v987, %v1007
      %1016 = vrot.lane.b32.xlu0 %v930, 15
      %v1017 = vpop.permute.xlu0 %1016
      %1018 = vrot.lane.b32.xlu0 %v931, 15
      %v1019 = vpop.permute.xlu0 %1018
      %1020 = vrot.lane.b32.xlu0 %v932, 15
      %v1021 = vpop.permute.xlu0 %1020
      %1022 = vrot.lane.b32.xlu0 %v933, 15
      %v1023 = vpop.permute.xlu0 %1022
      %vm1024 = vcmp.lt.s32.totalorder %v947, 15
      %v1025 = vsel %vm1024, %v1021, %v1023
      %v1026 = vsel %vm1024, %v1019, %v1021
      %v1027 = vsel %vm1024, %v1017, %v1019
      %v1028 = vsel %vm1024, %v1023, %v1017
      %v1030 = vlaneseq
      %v1031 = vshrl.u32 %v1030, 7
      %v1032 = vsub.s32 0, %v1031
      %v1033 = vrot.slane %v751, %v1032
      %v1034 = vlaneseq
      %v1035 = vshrl.u32 %v1034, 7
      %v1036 = vsub.s32 1, %v1035
      %v1037 = vrot.slane %v751, %v1036
      %v1038 = vlaneseq
      %v1039 = vshrl.u32 %v1038, 7
      %v1040 = vsub.s32 2, %v1039
      %v1041 = vrot.slane %v751, %v1040
      %v1042 = vlaneseq
      %v1043 = vshrl.u32 %v1042, 7
      %v1044 = vsub.s32 3, %v1043
      %v1045 = vrot.slane %v751, %v1044
      %v1050 = vmul.f32 %v1028, %v1033
      %v1051 = vmul.f32 %v1027, %v1037
      %v1052 = vmul.f32 %v1026, %v1041
      %v1053 = vmul.f32 %v1025, %v1045
      %1054 = vrot.lane.b32.xlu0 %v930, 1
      %v1055 = vpop.permute.xlu0 %1054
      %1056 = vrot.lane.b32.xlu0 %v931, 1
      %v1057 = vpop.permute.xlu0 %1056
      %1058 = vrot.lane.b32.xlu0 %v932, 1
      %v1059 = vpop.permute.xlu0 %1058
      %1060 = vrot.lane.b32.xlu0 %v933, 1
      %v1061 = vpop.permute.xlu0 %1060
      %vm1062 = vcmp.lt.s32.totalorder %v947, 1
      %v1063 = vsel %vm1062, %v1059, %v1061
      %v1064 = vsel %vm1062, %v1057, %v1059
      %v1065 = vsel %vm1062, %v1055, %v1057
      %v1066 = vsel %vm1062, %v1061, %v1055
      %v1068 = vlaneseq
      %v1069 = vshrl.u32 %v1068, 7
      %v1070 = vsub.s32 0, %v1069
      %v1071 = vrot.slane %v753, %v1070
      %v1072 = vlaneseq
      %v1073 = vshrl.u32 %v1072, 7
      %v1074 = vsub.s32 1, %v1073
      %v1075 = vrot.slane %v753, %v1074
      %v1076 = vlaneseq
      %v1077 = vshrl.u32 %v1076, 7
      %v1078 = vsub.s32 2, %v1077
      %v1079 = vrot.slane %v753, %v1078
      %v1080 = vlaneseq
      %v1081 = vshrl.u32 %v1080, 7
      %v1082 = vsub.s32 3, %v1081
      %v1083 = vrot.slane %v753, %v1082
      %v1088 = vmul.f32 %v1066, %v1071
      %v1089 = vmul.f32 %v1065, %v1075
      %v1090 = vmul.f32 %v1064, %v1079
      %v1091 = vmul.f32 %v1063, %v1083
      %1092 = vrot.lane.b32.xlu0 %v930, 127
      %v1093 = vpop.permute.xlu0 %1092
      %1094 = vrot.lane.b32.xlu0 %v931, 127
      %v1095 = vpop.permute.xlu0 %1094
      %1096 = vrot.lane.b32.xlu0 %v932, 127
      %v1097 = vpop.permute.xlu0 %1096
      %1098 = vrot.lane.b32.xlu0 %v933, 127
      %v1099 = vpop.permute.xlu0 %1098
      %vm1100 = vcmp.lt.s32.totalorder %v947, 127
      %v1101 = vsel %vm1100, %v1097, %v1099
      %v1102 = vsel %vm1100, %v1095, %v1097
      %v1103 = vsel %vm1100, %v1093, %v1095
      %v1104 = vsel %vm1100, %v1099, %v1093
      %v1106 = vlaneseq
      %v1107 = vshrl.u32 %v1106, 7
      %v1108 = vsub.s32 0, %v1107
      %v1109 = vrot.slane %v755, %v1108
      %v1110 = vlaneseq
      %v1111 = vshrl.u32 %v1110, 7
      %v1112 = vsub.s32 1, %v1111
      %v1113 = vrot.slane %v755, %v1112
      %v1114 = vlaneseq
      %v1115 = vshrl.u32 %v1114, 7
      %v1116 = vsub.s32 2, %v1115
      %v1117 = vrot.slane %v755, %v1116
      %v1118 = vlaneseq
      %v1119 = vshrl.u32 %v1118, 7
      %v1120 = vsub.s32 3, %v1119
      %v1121 = vrot.slane %v755, %v1120
      %v1126 = vmul.f32 %v1103, %v1109
      %v1127 = vmul.f32 %v1102, %v1113
      %v1128 = vmul.f32 %v1101, %v1117
      %v1129 = vmul.f32 %v1104, %v1121
      %1130 = vrot.lane.b32.xlu0 %v930, 113
      %v1131 = vpop.permute.xlu0 %1130
      %1132 = vrot.lane.b32.xlu0 %v931, 113
      %v1133 = vpop.permute.xlu0 %1132
      %1134 = vrot.lane.b32.xlu0 %v932, 113
      %v1135 = vpop.permute.xlu0 %1134
      %1136 = vrot.lane.b32.xlu0 %v933, 113
      %v1137 = vpop.permute.xlu0 %1136
      %vm1138 = vcmp.lt.s32.totalorder %v947, 113
      %v1139 = vsel %vm1138, %v1135, %v1137
      %v1140 = vsel %vm1138, %v1133, %v1135
      %v1141 = vsel %vm1138, %v1131, %v1133
      %v1142 = vsel %vm1138, %v1137, %v1131
      %v1144 = vlaneseq
      %v1145 = vshrl.u32 %v1144, 7
      %v1146 = vsub.s32 0, %v1145
      %v1147 = vrot.slane %v757, %v1146
      %v1148 = vlaneseq
      %v1149 = vshrl.u32 %v1148, 7
      %v1150 = vsub.s32 1, %v1149
      %v1151 = vrot.slane %v757, %v1150
      %v1152 = vlaneseq
      %v1153 = vshrl.u32 %v1152, 7
      %v1154 = vsub.s32 2, %v1153
      %v1155 = vrot.slane %v757, %v1154
      %v1156 = vlaneseq
      %v1157 = vshrl.u32 %v1156, 7
      %v1158 = vsub.s32 3, %v1157
      %v1159 = vrot.slane %v757, %v1158
      %v1164 = vmul.f32 %v1141, %v1147
      %v1165 = vmul.f32 %v1140, %v1151
      %v1166 = vmul.f32 %v1139, %v1155
      %v1167 = vmul.f32 %v1142, %v1159
      %1168 = vrot.lane.b32.xlu0 %v930, 112
      %v1169 = vpop.permute.xlu0 %1168
      %1170 = vrot.lane.b32.xlu0 %v931, 112
      %v1171 = vpop.permute.xlu0 %1170
      %1172 = vrot.lane.b32.xlu0 %v932, 112
      %v1173 = vpop.permute.xlu0 %1172
      %1174 = vrot.lane.b32.xlu0 %v933, 112
      %v1175 = vpop.permute.xlu0 %1174
      %vm1176 = vcmp.lt.s32.totalorder %v947, 112
      %v1177 = vsel %vm1176, %v1173, %v1175
      %v1178 = vsel %vm1176, %v1171, %v1173
      %v1179 = vsel %vm1176, %v1169, %v1171
      %v1180 = vsel %vm1176, %v1175, %v1169
      %v1182 = vlaneseq
      %v1183 = vshrl.u32 %v1182, 7
      %v1184 = vsub.s32 0, %v1183
      %v1185 = vrot.slane %v759, %v1184
      %v1186 = vlaneseq
      %v1187 = vshrl.u32 %v1186, 7
      %v1188 = vsub.s32 1, %v1187
      %v1189 = vrot.slane %v759, %v1188
      %v1190 = vlaneseq
      %v1191 = vshrl.u32 %v1190, 7
      %v1192 = vsub.s32 2, %v1191
      %v1193 = vrot.slane %v759, %v1192
      %v1194 = vlaneseq
      %v1195 = vshrl.u32 %v1194, 7
      %v1196 = vsub.s32 3, %v1195
      %v1197 = vrot.slane %v759, %v1196
      %v1202 = vmul.f32 %v1179, %v1185
      %v1203 = vmul.f32 %v1178, %v1189
      %v1204 = vmul.f32 %v1177, %v1193
      %v1205 = vmul.f32 %v1180, %v1197
      %1206 = vrot.lane.b32.xlu0 %v930, 111
      %v1207 = vpop.permute.xlu0 %1206
      %1208 = vrot.lane.b32.xlu0 %v931, 111
      %v1209 = vpop.permute.xlu0 %1208
      %1210 = vrot.lane.b32.xlu0 %v932, 111
      %v1211 = vpop.permute.xlu0 %1210
      %1212 = vrot.lane.b32.xlu0 %v933, 111
      %v1213 = vpop.permute.xlu0 %1212
      %vm1214 = vcmp.lt.s32.totalorder %v947, 111
      %v1215 = vsel %vm1214, %v1211, %v1213
      %v1216 = vsel %vm1214, %v1209, %v1211
      %v1217 = vsel %vm1214, %v1207, %v1209
      %v1218 = vsel %vm1214, %v1213, %v1207
      %v1220 = vlaneseq
      %v1221 = vshrl.u32 %v1220, 7
      %v1222 = vsub.s32 0, %v1221
      %v1223 = vrot.slane %v761, %v1222
      %v1224 = vlaneseq
      %v1225 = vshrl.u32 %v1224, 7
      %v1226 = vsub.s32 1, %v1225
      %v1227 = vrot.slane %v761, %v1226
      %v1228 = vlaneseq
      %v1229 = vshrl.u32 %v1228, 7
      %v1230 = vsub.s32 2, %v1229
      %v1231 = vrot.slane %v761, %v1230
      %v1232 = vlaneseq
      %v1233 = vshrl.u32 %v1232, 7
      %v1234 = vsub.s32 3, %v1233
      %v1235 = vrot.slane %v761, %v1234
      %v1240 = vmul.f32 %v1217, %v1223
      %v1241 = vmul.f32 %v1216, %v1227
      %v1242 = vmul.f32 %v1215, %v1231
      %v1243 = vmul.f32 %v1218, %v1235
      %v1248 = vrot.slane %v1012, 4
      %v1249 = vrot.slane %v1013, 4
      %v1250 = vrot.slane %v1014, 4
      %v1251 = vrot.slane %v1015, 4
      %v1260 = vrot.slane %v1088, 4
      %v1261 = vrot.slane %v1089, 4
      %v1262 = vrot.slane %v1090, 4
      %v1263 = vrot.slane %v1091, 4
      %v1272 = vrot.slane %v1126, 4
      %v1273 = vrot.slane %v1127, 4
      %v1274 = vrot.slane %v1128, 4
      %v1275 = vrot.slane %v1129, 4
      %v1284 = vrot.slane %v1202, 4
      %v1285 = vrot.slane %v1203, 4
      %v1286 = vrot.slane %v1204, 4
      %v1287 = vrot.slane %v1205, 4
      %vm1292 = vcmask 1043456
      %v1293 = vsel %vm1292, %v974, %v1248
      %v1294 = vsel %vm1292, %v975, %v1249
      %v1295 = vsel %vm1292, %v976, %v1250
      %v1296 = vsel %vm1292, %v977, %v1251
      %v1297 = vsel %vm1292, %v1050, %v1260
      %v1298 = vsel %vm1292, %v1051, %v1261
      %v1299 = vsel %vm1292, %v1052, %v1262
      %v1300 = vsel %vm1292, %v1053, %v1263
      %v1301 = vsel %vm1292, %v930, %v1272
      %v1302 = vsel %vm1292, %v931, %v1273
      %v1303 = vsel %vm1292, %v932, %v1274
      %v1304 = vsel %vm1292, %v933, %v1275
      %v1305 = vsel %vm1292, %v1164, %v1284
      %v1306 = vsel %vm1292, %v1165, %v1285
      %v1307 = vsel %vm1292, %v1166, %v1286
      %v1308 = vsel %vm1292, %v1167, %v1287
      %v1309 = vpack.c.bf16 %v1297, %v1293
      %v1310 = vpack.c.bf16 %v1298, %v1294
      %v1311 = vpack.c.bf16 %v1299, %v1295
      %v1312 = vpack.c.bf16 %v1300, %v1296
      %v1313 = vpack.c.bf16 %v1305, %v1301
      %v1314 = vpack.c.bf16 %v1306, %v1302
      %v1315 = vpack.c.bf16 %v1307, %v1303
      %v1316 = vpack.c.bf16 %v1308, %v1304
      %v1317 = vpack.c.bf16 %v1240, %v1240
      %v1318 = vpack.c.bf16 %v1241, %v1241
      %v1319 = vpack.c.bf16 %v1242, %v1242
      %v1320 = vpack.c.bf16 %v1243, %v1243
      %vm1321 = vcmask 293888
      %v1323 = vsel %vm1321, %v923, 0
      %vm1325 = vcmask 1041408
      %v1327 = vsel %vm1325, %v1317, 0
      %v1330 = vsel %vm1325, %v1318, 0
      %v1333 = vsel %vm1325, %v1319, 0
      %v1336 = vsel %vm1325, %v1320, 0
      %1338 = vmatprep.subr.bf16.mxu0 0
      %1339 = vmatpush1.bf16.msra.mxu0 0
      %1340 = vmatprep.subr.bf16.mxu0 0
      %1341 = vmatpush1.bf16.msra.mxu0 0
      %1342 = vmatprep.subr.bf16.mxu0 0
      %1343 = vmatpush1.bf16.msra.mxu0 0
      %1344 = vmatprep.subr.bf16.mxu0 0
      %1345 = vmatpush1.bf16.msra.mxu0 0
      %1346 = vmatprep.subr.bf16.mxu0 0
      %1347 = vmatpush1.bf16.msra.mxu0 0
      %1348 = vmatprep.subr.bf16.mxu0 %v1330
      %1349 = vmatpush1.bf16.msra.mxu0 %v1327
      %1350 = vmatprep.subr.bf16.mxu0 %v1314
      %1351 = vmatpush1.bf16.msra.mxu0 %v1313
      %1352 = vmatprep.subr.bf16.mxu0 %v1310
      %1353 = vmatpush1.bf16.msra.mxu0 %v1309
      %1354 = vmatprep.subr.bf16.mxu0 0
      %1355 = vmatpush2.bf16.msra.mxu0 0
      %1356 = vmatprep.subr.bf16.mxu0 0
      %1357 = vmatpush2.bf16.msra.mxu0 0
      %1358 = vmatprep.subr.bf16.mxu0 0
      %1359 = vmatpush2.bf16.msra.mxu0 0
      %1360 = vmatprep.subr.bf16.mxu0 0
      %1361 = vmatpush2.bf16.msra.mxu0 0
      %1362 = vmatprep.subr.bf16.mxu0 0
      %1363 = vmatpush2.bf16.msra.mxu0 0
      %1364 = vmatprep.subr.bf16.mxu0 0
      %1365 = vmatpush2.bf16.msra.mxu0 0
      %1366 = vmatprep.subr.bf16.mxu0 0
      %1367 = vmatpush2.bf16.msra.mxu0 0
      %1368 = vmatprep.subr.bf16.mxu0 0
      %1369 = vmatpush2.bf16.msra.mxu0 0
      %1370 = vmatprep.mubr.bf16.mxu0 0
      %1371 = vmatmul.mubr.bf16.gmra.mxu0 %v1323
      %v1372 = vpop.f32.mrf.mxu0
      %v1373 = vadd.f32 0.0, %v1372
      %v1374 = vpop.f32.mrf.mxu0
      %v1375 = vadd.f32 0.0, %v1374
      %v1376 = vpop.f32.mrf.mxu0
      %v1377 = vpop.f32.mrf.mxu0
      %1378 = vdwg.mxu0
      %1379 = vmatprep.subr.bf16.mxu0 0
      %1380 = vmatpush1.bf16.msra.mxu0 0
      %1381 = vmatprep.subr.bf16.mxu0 0
      %1382 = vmatpush1.bf16.msra.mxu0 0
      %1383 = vmatprep.subr.bf16.mxu0 0
      %1384 = vmatpush1.bf16.msra.mxu0 0
      %1385 = vmatprep.subr.bf16.mxu0 0
      %1386 = vmatpush1.bf16.msra.mxu0 0
      %1387 = vmatprep.subr.bf16.mxu0 0
      %1388 = vmatpush1.bf16.msra.mxu0 0
      %1389 = vmatprep.subr.bf16.mxu0 %v1336
      %1390 = vmatpush1.bf16.msra.mxu0 %v1333
      %1391 = vmatprep.subr.bf16.mxu0 %v1316
      %1392 = vmatpush1.bf16.msra.mxu0 %v1315
      %1393 = vmatprep.subr.bf16.mxu0 %v1312
      %1394 = vmatpush1.bf16.msra.mxu0 %v1311
      %1395 = vmatprep.subr.bf16.mxu0 0
      %1396 = vmatpush2.bf16.msra.mxu0 0
      %1397 = vmatprep.subr.bf16.mxu0 0
      %1398 = vmatpush2.bf16.msra.mxu0 0
      %1399 = vmatprep.subr.bf16.mxu0 0
      %1400 = vmatpush2.bf16.msra.mxu0 0
      %1401 = vmatprep.subr.bf16.mxu0 0
      %1402 = vmatpush2.bf16.msra.mxu0 0
      %1403 = vmatprep.subr.bf16.mxu0 0
      %1404 = vmatpush2.bf16.msra.mxu0 0
      %1405 = vmatprep.subr.bf16.mxu0 0
      %1406 = vmatpush2.bf16.msra.mxu0 0
      %1407 = vmatprep.subr.bf16.mxu0 0
      %1408 = vmatpush2.bf16.msra.mxu0 0
      %1409 = vmatprep.subr.bf16.mxu0 0
      %1410 = vmatpush2.bf16.msra.mxu0 0
      %1411 = vmatprep.mubr.bf16.mxu0 0
      %1412 = vmatmul.mubr.bf16.gmra.mxu0 %v1323
      %v1413 = vpop.f32.mrf.mxu0
      %v1414 = vadd.f32 0.0, %v1413
      %v1415 = vpop.f32.mrf.mxu0
      %v1416 = vadd.f32 0.0, %v1415
      %v1417 = vpop.f32.mrf.mxu0
      %v1418 = vpop.f32.mrf.mxu0
      %1419 = vdwg.mxu0
      %1421 = vset.pattern.permute.xlu0 0
      %1422 = vperm.xlu0 %1421, %v924
      %v1423 = vpop.permute.xlu0 %1422
      %v1425 = vmul.f32 %v1373, %v1423
      %v1426 = vmul.f32 %v1375, %v1423
      %v1427 = vmul.f32 %v1414, %v1423
      %v1428 = vmul.f32 %v1416, %v1423
      %1430 = vset.pattern.permute.xlu0 0
      %1431 = vperm.xlu0 %1430, %v925
      %v1432 = vpop.permute.xlu0 %1431
      %v1434 = vadd.f32 %v1425, %v1432
      %v1435 = vadd.f32 %v1426, %v1432
      %v1436 = vadd.f32 %v1427, %v1432
      %v1437 = vadd.f32 %v1428, %v1432
      %v1438 = vmax.f32 %v1434, 0.0
      %v1439 = vmax.f32 %v1435, 0.0
      %v1440 = vmax.f32 %v1436, 0.0
      %v1441 = vmax.f32 %v1437, 0.0
      %s1442 = scalar_lea.vmem %s698, 2
      %v1443 = vld [vmem:[%s1442] sm:$0x3]
      %s1444 = scalar_lea.vmem %s703, 4
      %v1445 = vld [vmem:[%s1444] sm:$0xf]
      %s1446 = scalar_lea.vmem %s708, 4
      %v1447 = vld [vmem:[%s1446] sm:$0xf]
      %1448 = vrot.lane.b32.xlu0 %v919, 17
      %v1449 = vpop.permute.xlu0 %1448
      %1450 = vrot.lane.b32.xlu0 %v920, 17
      %v1451 = vpop.permute.xlu0 %1450
      %1452 = vrot.lane.b32.xlu0 %v921, 17
      %v1453 = vpop.permute.xlu0 %1452
      %1454 = vrot.lane.b32.xlu0 %v922, 17
      %v1455 = vpop.permute.xlu0 %1454
      %v1456 = vsel %vm948, %v1453, %v1455
      %v1457 = vsel %vm948, %v1451, %v1453
      %v1458 = vsel %vm948, %v1449, %v1451
      %v1459 = vsel %vm948, %v1455, %v1449
      %v1460 = vmul.f32 %v1459, %v957
      %v1461 = vmul.f32 %v1458, %v961
      %v1462 = vmul.f32 %v1457, %v965
      %v1463 = vmul.f32 %v1456, %v969
      %1464 = vrot.lane.b32.xlu0 %v919, 16
      %v1465 = vpop.permute.xlu0 %1464
      %1466 = vrot.lane.b32.xlu0 %v920, 16
      %v1467 = vpop.permute.xlu0 %1466
      %1468 = vrot.lane.b32.xlu0 %v921, 16
      %v1469 = vpop.permute.xlu0 %1468
      %1470 = vrot.lane.b32.xlu0 %v922, 16
      %v1471 = vpop.permute.xlu0 %1470
      %v1472 = vsel %vm986, %v1469, %v1471
      %v1473 = vsel %vm986, %v1467, %v1469
      %v1474 = vsel %vm986, %v1465, %v1467
      %v1475 = vsel %vm986, %v1471, %v1465
      %v1476 = vmul.f32 %v1475, %v995
      %v1477 = vmul.f32 %v1474, %v999
      %v1478 = vmul.f32 %v1473, %v1003
      %v1479 = vmul.f32 %v1472, %v1007
      %1480 = vrot.lane.b32.xlu0 %v919, 15
      %v1481 = vpop.permute.xlu0 %1480
      %1482 = vrot.lane.b32.xlu0 %v920, 15
      %v1483 = vpop.permute.xlu0 %1482
      %1484 = vrot.lane.b32.xlu0 %v921, 15
      %v1485 = vpop.permute.xlu0 %1484
      %1486 = vrot.lane.b32.xlu0 %v922, 15
      %v1487 = vpop.permute.xlu0 %1486
      %v1488 = vsel %vm1024, %v1485, %v1487
      %v1489 = vsel %vm1024, %v1483, %v1485
      %v1490 = vsel %vm1024, %v1481, %v1483
      %v1491 = vsel %vm1024, %v1487, %v1481
      %v1492 = vmul.f32 %v1491, %v1033
      %v1493 = vmul.f32 %v1490, %v1037
      %v1494 = vmul.f32 %v1489, %v1041
      %v1495 = vmul.f32 %v1488, %v1045
      %1496 = vrot.lane.b32.xlu0 %v919, 1
      %v1497 = vpop.permute.xlu0 %1496
      %1498 = vrot.lane.b32.xlu0 %v920, 1
      %v1499 = vpop.permute.xlu0 %1498
      %1500 = vrot.lane.b32.xlu0 %v921, 1
      %v1501 = vpop.permute.xlu0 %1500
      %1502 = vrot.lane.b32.xlu0 %v922, 1
      %v1503 = vpop.permute.xlu0 %1502
      %v1504 = vsel %vm1062, %v1501, %v1503
      %v1505 = vsel %vm1062, %v1499, %v1501
      %v1506 = vsel %vm1062, %v1497, %v1499
      %v1507 = vsel %vm1062, %v1503, %v1497
      %v1508 = vmul.f32 %v1507, %v1071
      %v1509 = vmul.f32 %v1506, %v1075
      %v1510 = vmul.f32 %v1505, %v1079
      %v1511 = vmul.f32 %v1504, %v1083
      %1512 = vrot.lane.b32.xlu0 %v919, 127
      %v1513 = vpop.permute.xlu0 %1512
      %1514 = vrot.lane.b32.xlu0 %v920, 127
      %v1515 = vpop.permute.xlu0 %1514
      %1516 = vrot.lane.b32.xlu0 %v921, 127
      %v1517 = vpop.permute.xlu0 %1516
      %1518 = vrot.lane.b32.xlu0 %v922, 127
      %v1519 = vpop.permute.xlu0 %1518
      %v1520 = vsel %vm1100, %v1517, %v1519
      %v1521 = vsel %vm1100, %v1515, %v1517
      %v1522 = vsel %vm1100, %v1513, %v1515
      %v1523 = vsel %vm1100, %v1519, %v1513
      %v1524 = vmul.f32 %v1522, %v1109
      %v1525 = vmul.f32 %v1521, %v1113
      %v1526 = vmul.f32 %v1520, %v1117
      %v1527 = vmul.f32 %v1523, %v1121
      %1528 = vrot.lane.b32.xlu0 %v919, 113
      %v1529 = vpop.permute.xlu0 %1528
      %1530 = vrot.lane.b32.xlu0 %v920, 113
      %v1531 = vpop.permute.xlu0 %1530
      %1532 = vrot.lane.b32.xlu0 %v921, 113
      %v1533 = vpop.permute.xlu0 %1532
      %1534 = vrot.lane.b32.xlu0 %v922, 113
      %v1535 = vpop.permute.xlu0 %1534
      %v1536 = vsel %vm1138, %v1533, %v1535
      %v1537 = vsel %vm1138, %v1531, %v1533
      %v1538 = vsel %vm1138, %v1529, %v1531
      %v1539 = vsel %vm1138, %v1535, %v1529
      %v1540 = vmul.f32 %v1538, %v1147
      %v1541 = vmul.f32 %v1537, %v1151
      %v1542 = vmul.f32 %v1536, %v1155
      %v1543 = vmul.f32 %v1539, %v1159
      %1544 = vrot.lane.b32.xlu0 %v919, 112
      %v1545 = vpop.permute.xlu0 %1544
      %1546 = vrot.lane.b32.xlu0 %v920, 112
      %v1547 = vpop.permute.xlu0 %1546
      %1548 = vrot.lane.b32.xlu0 %v921, 112
      %v1549 = vpop.permute.xlu0 %1548
      %1550 = vrot.lane.b32.xlu0 %v922, 112
      %v1551 = vpop.permute.xlu0 %1550
      %v1552 = vsel %vm1176, %v1549, %v1551
      %v1553 = vsel %vm1176, %v1547, %v1549
      %v1554 = vsel %vm1176, %v1545, %v1547
      %v1555 = vsel %vm1176, %v1551, %v1545
      %v1556 = vmul.f32 %v1554, %v1185
      %v1557 = vmul.f32 %v1553, %v1189
      %v1558 = vmul.f32 %v1552, %v1193
      %v1559 = vmul.f32 %v1555, %v1197
      %1560 = vrot.lane.b32.xlu0 %v919, 111
      %v1561 = vpop.permute.xlu0 %1560
      %1562 = vrot.lane.b32.xlu0 %v920, 111
      %v1563 = vpop.permute.xlu0 %1562
      %1564 = vrot.lane.b32.xlu0 %v921, 111
      %v1565 = vpop.permute.xlu0 %1564
      %1566 = vrot.lane.b32.xlu0 %v922, 111
      %v1567 = vpop.permute.xlu0 %1566
      %v1568 = vsel %vm1214, %v1565, %v1567
      %v1569 = vsel %vm1214, %v1563, %v1565
      %v1570 = vsel %vm1214, %v1561, %v1563
      %v1571 = vsel %vm1214, %v1567, %v1561
      %v1572 = vmul.f32 %v1570, %v1223
      %v1573 = vmul.f32 %v1569, %v1227
      %v1574 = vmul.f32 %v1568, %v1231
      %v1575 = vmul.f32 %v1571, %v1235
      %v1580 = vrot.slane %v1476, 4
      %v1581 = vrot.slane %v1477, 4
      %v1582 = vrot.slane %v1478, 4
      %v1583 = vrot.slane %v1479, 4
      %v1592 = vrot.slane %v1508, 4
      %v1593 = vrot.slane %v1509, 4
      %v1594 = vrot.slane %v1510, 4
      %v1595 = vrot.slane %v1511, 4
      %v1604 = vrot.slane %v1524, 4
      %v1605 = vrot.slane %v1525, 4
      %v1606 = vrot.slane %v1526, 4
      %v1607 = vrot.slane %v1527, 4
      %v1616 = vrot.slane %v1556, 4
      %v1617 = vrot.slane %v1557, 4
      %v1618 = vrot.slane %v1558, 4
      %v1619 = vrot.slane %v1559, 4
      %v1624 = vsel %vm1292, %v1460, %v1580
      %v1625 = vsel %vm1292, %v1461, %v1581
      %v1626 = vsel %vm1292, %v1462, %v1582
      %v1627 = vsel %vm1292, %v1463, %v1583
      %v1628 = vsel %vm1292, %v1492, %v1592
      %v1629 = vsel %vm1292, %v1493, %v1593
      %v1630 = vsel %vm1292, %v1494, %v1594
      %v1631 = vsel %vm1292, %v1495, %v1595
      %v1632 = vsel %vm1292, %v919, %v1604
      %v1633 = vsel %vm1292, %v920, %v1605
      %v1634 = vsel %vm1292, %v921, %v1606
      %v1635 = vsel %vm1292, %v922, %v1607
      %v1636 = vsel %vm1292, %v1540, %v1616
      %v1637 = vsel %vm1292, %v1541, %v1617
      %v1638 = vsel %vm1292, %v1542, %v1618
      %v1639 = vsel %vm1292, %v1543, %v1619
      %v1640 = vpack.c.bf16 %v1628, %v1624
      %v1641 = vpack.c.bf16 %v1629, %v1625
      %v1642 = vpack.c.bf16 %v1630, %v1626
      %v1643 = vpack.c.bf16 %v1631, %v1627
      %v1644 = vpack.c.bf16 %v1636, %v1632
      %v1645 = vpack.c.bf16 %v1637, %v1633
      %v1646 = vpack.c.bf16 %v1638, %v1634
      %v1647 = vpack.c.bf16 %v1639, %v1635
      %v1648 = vpack.c.bf16 %v1572, %v1572
      %v1649 = vpack.c.bf16 %v1573, %v1573
      %v1650 = vpack.c.bf16 %v1574, %v1574
      %v1651 = vpack.c.bf16 %v1575, %v1575
      %v1653 = vsel %vm1321, %v1443, 0
      %v1656 = vsel %vm1325, %v1648, 0
      %v1659 = vsel %vm1325, %v1649, 0
      %v1662 = vsel %vm1325, %v1650, 0
      %v1665 = vsel %vm1325, %v1651, 0
      %1667 = vmatprep.subr.bf16.mxu0 0
      %1668 = vmatpush1.bf16.msra.mxu0 0
      %1669 = vmatprep.subr.bf16.mxu0 0
      %1670 = vmatpush1.bf16.msra.mxu0 0
      %1671 = vmatprep.subr.bf16.mxu0 0
      %1672 = vmatpush1.bf16.msra.mxu0 0
      %1673 = vmatprep.subr.bf16.mxu0 0
      %1674 = vmatpush1.bf16.msra.mxu0 0
      %1675 = vmatprep.subr.bf16.mxu0 0
      %1676 = vmatpush1.bf16.msra.mxu0 0
      %1677 = vmatprep.subr.bf16.mxu0 %v1659
      %1678 = vmatpush1.bf16.msra.mxu0 %v1656
      %1679 = vmatprep.subr.bf16.mxu0 %v1645
      %1680 = vmatpush1.bf16.msra.mxu0 %v1644
      %1681 = vmatprep.subr.bf16.mxu0 %v1641
      %1682 = vmatpush1.bf16.msra.mxu0 %v1640
      %1683 = vmatprep.subr.bf16.mxu0 0
      %1684 = vmatpush2.bf16.msra.mxu0 0
      %1685 = vmatprep.subr.bf16.mxu0 0
      %1686 = vmatpush2.bf16.msra.mxu0 0
      %1687 = vmatprep.subr.bf16.mxu0 0
      %1688 = vmatpush2.bf16.msra.mxu0 0
      %1689 = vmatprep.subr.bf16.mxu0 0
      %1690 = vmatpush2.bf16.msra.mxu0 0
      %1691 = vmatprep.subr.bf16.mxu0 0
      %1692 = vmatpush2.bf16.msra.mxu0 0
      %1693 = vmatprep.subr.bf16.mxu0 0
      %1694 = vmatpush2.bf16.msra.mxu0 0
      %1695 = vmatprep.subr.bf16.mxu0 0
      %1696 = vmatpush2.bf16.msra.mxu0 0
      %1697 = vmatprep.subr.bf16.mxu0 0
      %1698 = vmatpush2.bf16.msra.mxu0 0
      %1699 = vmatprep.mubr.bf16.mxu0 0
      %1700 = vmatmul.mubr.bf16.gmra.mxu0 %v1653
      %v1701 = vpop.f32.mrf.mxu0
      %v1702 = vadd.f32 0.0, %v1701
      %v1703 = vpop.f32.mrf.mxu0
      %v1704 = vadd.f32 0.0, %v1703
      %v1705 = vpop.f32.mrf.mxu0
      %v1706 = vpop.f32.mrf.mxu0
      %1707 = vdwg.mxu0
      %1708 = vmatprep.subr.bf16.mxu0 0
      %1709 = vmatpush1.bf16.msra.mxu0 0
      %1710 = vmatprep.subr.bf16.mxu0 0
      %1711 = vmatpush1.bf16.msra.mxu0 0
      %1712 = vmatprep.subr.bf16.mxu0 0
      %1713 = vmatpush1.bf16.msra.mxu0 0
      %1714 = vmatprep.subr.bf16.mxu0 0
      %1715 = vmatpush1.bf16.msra.mxu0 0
      %1716 = vmatprep.subr.bf16.mxu0 0
      %1717 = vmatpush1.bf16.msra.mxu0 0
      %1718 = vmatprep.subr.bf16.mxu0 %v1665
      %1719 = vmatpush1.bf16.msra.mxu0 %v1662
      %1720 = vmatprep.subr.bf16.mxu0 %v1647
      %1721 = vmatpush1.bf16.msra.mxu0 %v1646
      %1722 = vmatprep.subr.bf16.mxu0 %v1643
      %1723 = vmatpush1.bf16.msra.mxu0 %v1642
      %1724 = vmatprep.subr.bf16.mxu0 0
      %1725 = vmatpush2.bf16.msra.mxu0 0
      %1726 = vmatprep.subr.bf16.mxu0 0
      %1727 = vmatpush2.bf16.msra.mxu0 0
      %1728 = vmatprep.subr.bf16.mxu0 0
      %1729 = vmatpush2.bf16.msra.mxu0 0
      %1730 = vmatprep.subr.bf16.mxu0 0
      %1731 = vmatpush2.bf16.msra.mxu0 0
      %1732 = vmatprep.subr.bf16.mxu0 0
      %1733 = vmatpush2.bf16.msra.mxu0 0
      %1734 = vmatprep.subr.bf16.mxu0 0
      %1735 = vmatpush2.bf16.msra.mxu0 0
      %1736 = vmatprep.subr.bf16.mxu0 0
      %1737 = vmatpush2.bf16.msra.mxu0 0
      %1738 = vmatprep.subr.bf16.mxu0 0
      %1739 = vmatpush2.bf16.msra.mxu0 0
      %1740 = vmatprep.mubr.bf16.mxu0 0
      %1741 = vmatmul.mubr.bf16.gmra.mxu0 %v1653
      %v1742 = vpop.f32.mrf.mxu0
      %v1743 = vadd.f32 0.0, %v1742
      %v1744 = vpop.f32.mrf.mxu0
      %v1745 = vadd.f32 0.0, %v1744
      %v1746 = vpop.f32.mrf.mxu0
      %v1747 = vpop.f32.mrf.mxu0
      %1748 = vdwg.mxu0
      %1750 = vset.pattern.permute.xlu0 0
      %1751 = vperm.xlu0 %1750, %v1445
      %v1752 = vpop.permute.xlu0 %1751
      %v1754 = vmul.f32 %v1702, %v1752
      %v1755 = vmul.f32 %v1704, %v1752
      %v1756 = vmul.f32 %v1743, %v1752
      %v1757 = vmul.f32 %v1745, %v1752
      %1759 = vset.pattern.permute.xlu0 0
      %1760 = vperm.xlu0 %1759, %v1447
      %v1761 = vpop.permute.xlu0 %1760
      %v1763 = vadd.f32 %v1754, %v1761
      %v1764 = vadd.f32 %v1755, %v1761
      %v1765 = vadd.f32 %v1756, %v1761
      %v1766 = vadd.f32 %v1757, %v1761
      %v1767 = vmax.f32 %v1763, 0.0
      %v1768 = vmax.f32 %v1764, 0.0
      %v1769 = vmax.f32 %v1765, 0.0
      %v1770 = vmax.f32 %v1766, 0.0
      %s1771 = scalar_lea.vmem %s698, 4
      %v1772 = vld [vmem:[%s1771] sm:$0x3]
      %s1773 = scalar_lea.vmem %s703, 8
      %v1774 = vld [vmem:[%s1773] sm:$0xf]
      %s1775 = scalar_lea.vmem %s708, 8
      %v1776 = vld [vmem:[%s1775] sm:$0xf]
      %v1781 = vrot.slane %v919, 4
      %v1782 = vrot.slane %v920, 4
      %v1783 = vrot.slane %v921, 4
      %v1784 = vrot.slane %v922, 4
      %1789 = vrot.lane.b32.xlu0 %v1781, 17
      %v1790 = vpop.permute.xlu0 %1789
      %1791 = vrot.lane.b32.xlu0 %v1782, 17
      %v1792 = vpop.permute.xlu0 %1791
      %1793 = vrot.lane.b32.xlu0 %v1783, 17
      %v1794 = vpop.permute.xlu0 %1793
      %1795 = vrot.lane.b32.xlu0 %v1784, 17
      %v1796 = vpop.permute.xlu0 %1795
      %v1797 = vsel %vm948, %v1794, %v1796
      %v1798 = vsel %vm948, %v1792, %v1794
      %v1799 = vsel %vm948, %v1790, %v1792
      %v1800 = vsel %vm948, %v1796, %v1790
      %v1801 = vmul.f32 %v1800, %v957
      %v1802 = vmul.f32 %v1799, %v961
      %v1803 = vmul.f32 %v1798, %v965
      %v1804 = vmul.f32 %v1797, %v969
      %1805 = vrot.lane.b32.xlu0 %v1781, 16
      %v1806 = vpop.permute.xlu0 %1805
      %1807 = vrot.lane.b32.xlu0 %v1782, 16
      %v1808 = vpop.permute.xlu0 %1807
      %1809 = vrot.lane.b32.xlu0 %v1783, 16
      %v1810 = vpop.permute.xlu0 %1809
      %1811 = vrot.lane.b32.xlu0 %v1784, 16
      %v1812 = vpop.permute.xlu0 %1811
      %v1813 = vsel %vm986, %v1810, %v1812
      %v1814 = vsel %vm986, %v1808, %v1810
      %v1815 = vsel %vm986, %v1806, %v1808
      %v1816 = vsel %vm986, %v1812, %v1806
      %v1817 = vmul.f32 %v1816, %v995
      %v1818 = vmul.f32 %v1815, %v999
      %v1819 = vmul.f32 %v1814, %v1003
      %v1820 = vmul.f32 %v1813, %v1007
      %1821 = vrot.lane.b32.xlu0 %v1781, 15
      %v1822 = vpop.permute.xlu0 %1821
      %1823 = vrot.lane.b32.xlu0 %v1782, 15
      %v1824 = vpop.permute.xlu0 %1823
      %1825 = vrot.lane.b32.xlu0 %v1783, 15
      %v1826 = vpop.permute.xlu0 %1825
      %1827 = vrot.lane.b32.xlu0 %v1784, 15
      %v1828 = vpop.permute.xlu0 %1827
      %v1829 = vsel %vm1024, %v1826, %v1828
      %v1830 = vsel %vm1024, %v1824, %v1826
      %v1831 = vsel %vm1024, %v1822, %v1824
      %v1832 = vsel %vm1024, %v1828, %v1822
      %v1833 = vmul.f32 %v1832, %v1033
      %v1834 = vmul.f32 %v1831, %v1037
      %v1835 = vmul.f32 %v1830, %v1041
      %v1836 = vmul.f32 %v1829, %v1045
      %1837 = vrot.lane.b32.xlu0 %v1781, 1
      %v1838 = vpop.permute.xlu0 %1837
      %1839 = vrot.lane.b32.xlu0 %v1782, 1
      %v1840 = vpop.permute.xlu0 %1839
      %1841 = vrot.lane.b32.xlu0 %v1783, 1
      %v1842 = vpop.permute.xlu0 %1841
      %1843 = vrot.lane.b32.xlu0 %v1784, 1
      %v1844 = vpop.permute.xlu0 %1843
      %v1845 = vsel %vm1062, %v1842, %v1844
      %v1846 = vsel %vm1062, %v1840, %v1842
      %v1847 = vsel %vm1062, %v1838, %v1840
      %v1848 = vsel %vm1062, %v1844, %v1838
      %v1849 = vmul.f32 %v1848, %v1071
      %v1850 = vmul.f32 %v1847, %v1075
      %v1851 = vmul.f32 %v1846, %v1079
      %v1852 = vmul.f32 %v1845, %v1083
      %1853 = vrot.lane.b32.xlu0 %v1781, 127
      %v1854 = vpop.permute.xlu0 %1853
      %1855 = vrot.lane.b32.xlu0 %v1782, 127
      %v1856 = vpop.permute.xlu0 %1855
      %1857 = vrot.lane.b32.xlu0 %v1783, 127
      %v1858 = vpop.permute.xlu0 %1857
      %1859 = vrot.lane.b32.xlu0 %v1784, 127
      %v1860 = vpop.permute.xlu0 %1859
      %v1861 = vsel %vm1100, %v1858, %v1860
      %v1862 = vsel %vm1100, %v1856, %v1858
      %v1863 = vsel %vm1100, %v1854, %v1856
      %v1864 = vsel %vm1100, %v1860, %v1854
      %v1865 = vmul.f32 %v1863, %v1109
      %v1866 = vmul.f32 %v1862, %v1113
      %v1867 = vmul.f32 %v1861, %v1117
      %v1868 = vmul.f32 %v1864, %v1121
      %1869 = vrot.lane.b32.xlu0 %v1781, 113
      %v1870 = vpop.permute.xlu0 %1869
      %1871 = vrot.lane.b32.xlu0 %v1782, 113
      %v1872 = vpop.permute.xlu0 %1871
      %1873 = vrot.lane.b32.xlu0 %v1783, 113
      %v1874 = vpop.permute.xlu0 %1873
      %1875 = vrot.lane.b32.xlu0 %v1784, 113
      %v1876 = vpop.permute.xlu0 %1875
      %v1877 = vsel %vm1138, %v1874, %v1876
      %v1878 = vsel %vm1138, %v1872, %v1874
      %v1879 = vsel %vm1138, %v1870, %v1872
      %v1880 = vsel %vm1138, %v1876, %v1870
      %v1881 = vmul.f32 %v1879, %v1147
      %v1882 = vmul.f32 %v1878, %v1151
      %v1883 = vmul.f32 %v1877, %v1155
      %v1884 = vmul.f32 %v1880, %v1159
      %1885 = vrot.lane.b32.xlu0 %v1781, 112
      %v1886 = vpop.permute.xlu0 %1885
      %1887 = vrot.lane.b32.xlu0 %v1782, 112
      %v1888 = vpop.permute.xlu0 %1887
      %1889 = vrot.lane.b32.xlu0 %v1783, 112
      %v1890 = vpop.permute.xlu0 %1889
      %1891 = vrot.lane.b32.xlu0 %v1784, 112
      %v1892 = vpop.permute.xlu0 %1891
      %v1893 = vsel %vm1176, %v1890, %v1892
      %v1894 = vsel %vm1176, %v1888, %v1890
      %v1895 = vsel %vm1176, %v1886, %v1888
      %v1896 = vsel %vm1176, %v1892, %v1886
      %v1897 = vmul.f32 %v1895, %v1185
      %v1898 = vmul.f32 %v1894, %v1189
      %v1899 = vmul.f32 %v1893, %v1193
      %v1900 = vmul.f32 %v1896, %v1197
      %1901 = vrot.lane.b32.xlu0 %v1781, 111
      %v1902 = vpop.permute.xlu0 %1901
      %1903 = vrot.lane.b32.xlu0 %v1782, 111
      %v1904 = vpop.permute.xlu0 %1903
      %1905 = vrot.lane.b32.xlu0 %v1783, 111
      %v1906 = vpop.permute.xlu0 %1905
      %1907 = vrot.lane.b32.xlu0 %v1784, 111
      %v1908 = vpop.permute.xlu0 %1907
      %v1909 = vsel %vm1214, %v1906, %v1908
      %v1910 = vsel %vm1214, %v1904, %v1906
      %v1911 = vsel %vm1214, %v1902, %v1904
      %v1912 = vsel %vm1214, %v1908, %v1902
      %v1913 = vmul.f32 %v1911, %v1223
      %v1914 = vmul.f32 %v1910, %v1227
      %v1915 = vmul.f32 %v1909, %v1231
      %v1916 = vmul.f32 %v1912, %v1235
      %v1921 = vrot.slane %v1817, 4
      %v1922 = vrot.slane %v1818, 4
      %v1923 = vrot.slane %v1819, 4
      %v1924 = vrot.slane %v1820, 4
      %v1933 = vrot.slane %v1849, 4
      %v1934 = vrot.slane %v1850, 4
      %v1935 = vrot.slane %v1851, 4
      %v1936 = vrot.slane %v1852, 4
      %v1945 = vrot.slane %v1865, 4
      %v1946 = vrot.slane %v1866, 4
      %v1947 = vrot.slane %v1867, 4
      %v1948 = vrot.slane %v1868, 4
      %v1957 = vrot.slane %v1897, 4
      %v1958 = vrot.slane %v1898, 4
      %v1959 = vrot.slane %v1899, 4
      %v1960 = vrot.slane %v1900, 4
      %v1965 = vsel %vm1292, %v1801, %v1921
      %v1966 = vsel %vm1292, %v1802, %v1922
      %v1967 = vsel %vm1292, %v1803, %v1923
      %v1968 = vsel %vm1292, %v1804, %v1924
      %v1969 = vsel %vm1292, %v1833, %v1933
      %v1970 = vsel %vm1292, %v1834, %v1934
      %v1971 = vsel %vm1292, %v1835, %v1935
      %v1972 = vsel %vm1292, %v1836, %v1936
      %v1973 = vsel %vm1292, %v1781, %v1945
      %v1974 = vsel %vm1292, %v1782, %v1946
      %v1975 = vsel %vm1292, %v1783, %v1947
      %v1976 = vsel %vm1292, %v1784, %v1948
      %v1977 = vsel %vm1292, %v1881, %v1957
      %v1978 = vsel %vm1292, %v1882, %v1958
      %v1979 = vsel %vm1292, %v1883, %v1959
      %v1980 = vsel %vm1292, %v1884, %v1960
      %v1981 = vpack.c.bf16 %v1969, %v1965
      %v1982 = vpack.c.bf16 %v1970, %v1966
      %v1983 = vpack.c.bf16 %v1971, %v1967
      %v1984 = vpack.c.bf16 %v1972, %v1968
      %v1985 = vpack.c.bf16 %v1977, %v1973
      %v1986 = vpack.c.bf16 %v1978, %v1974
      %v1987 = vpack.c.bf16 %v1979, %v1975
      %v1988 = vpack.c.bf16 %v1980, %v1976
      %v1989 = vpack.c.bf16 %v1913, %v1913
      %v1990 = vpack.c.bf16 %v1914, %v1914
      %v1991 = vpack.c.bf16 %v1915, %v1915
      %v1992 = vpack.c.bf16 %v1916, %v1916
      %v1994 = vsel %vm1321, %v1772, 0
      %v1997 = vsel %vm1325, %v1989, 0
      %v2000 = vsel %vm1325, %v1990, 0
      %v2003 = vsel %vm1325, %v1991, 0
      %v2006 = vsel %vm1325, %v1992, 0
      %2008 = vmatprep.subr.bf16.mxu0 0
      %2009 = vmatpush1.bf16.msra.mxu0 0
      %2010 = vmatprep.subr.bf16.mxu0 0
      %2011 = vmatpush1.bf16.msra.mxu0 0
      %2012 = vmatprep.subr.bf16.mxu0 0
      %2013 = vmatpush1.bf16.msra.mxu0 0
      %2014 = vmatprep.subr.bf16.mxu0 0
      %2015 = vmatpush1.bf16.msra.mxu0 0
      %2016 = vmatprep.subr.bf16.mxu0 0
      %2017 = vmatpush1.bf16.msra.mxu0 0
      %2018 = vmatprep.subr.bf16.mxu0 %v2000
      %2019 = vmatpush1.bf16.msra.mxu0 %v1997
      %2020 = vmatprep.subr.bf16.mxu0 %v1986
      %2021 = vmatpush1.bf16.msra.mxu0 %v1985
      %2022 = vmatprep.subr.bf16.mxu0 %v1982
      %2023 = vmatpush1.bf16.msra.mxu0 %v1981
      %2024 = vmatprep.subr.bf16.mxu0 0
      %2025 = vmatpush2.bf16.msra.mxu0 0
      %2026 = vmatprep.subr.bf16.mxu0 0
      %2027 = vmatpush2.bf16.msra.mxu0 0
      %2028 = vmatprep.subr.bf16.mxu0 0
      %2029 = vmatpush2.bf16.msra.mxu0 0
      %2030 = vmatprep.subr.bf16.mxu0 0
      %2031 = vmatpush2.bf16.msra.mxu0 0
      %2032 = vmatprep.subr.bf16.mxu0 0
      %2033 = vmatpush2.bf16.msra.mxu0 0
      %2034 = vmatprep.subr.bf16.mxu0 0
      %2035 = vmatpush2.bf16.msra.mxu0 0
      %2036 = vmatprep.subr.bf16.mxu0 0
      %2037 = vmatpush2.bf16.msra.mxu0 0
      %2038 = vmatprep.subr.bf16.mxu0 0
      %2039 = vmatpush2.bf16.msra.mxu0 0
      %2040 = vmatprep.mubr.bf16.mxu0 0
      %2041 = vmatmul.mubr.bf16.gmra.mxu0 %v1994
      %v2042 = vpop.f32.mrf.mxu0
      %v2043 = vadd.f32 0.0, %v2042
      %v2044 = vpop.f32.mrf.mxu0
      %v2045 = vadd.f32 0.0, %v2044
      %v2046 = vpop.f32.mrf.mxu0
      %v2047 = vpop.f32.mrf.mxu0
      %2048 = vdwg.mxu0
      %2049 = vmatprep.subr.bf16.mxu0 0
      %2050 = vmatpush1.bf16.msra.mxu0 0
      %2051 = vmatprep.subr.bf16.mxu0 0
      %2052 = vmatpush1.bf16.msra.mxu0 0
      %2053 = vmatprep.subr.bf16.mxu0 0
      %2054 = vmatpush1.bf16.msra.mxu0 0
      %2055 = vmatprep.subr.bf16.mxu0 0
      %2056 = vmatpush1.bf16.msra.mxu0 0
      %2057 = vmatprep.subr.bf16.mxu0 0
      %2058 = vmatpush1.bf16.msra.mxu0 0
      %2059 = vmatprep.subr.bf16.mxu0 %v2006
      %2060 = vmatpush1.bf16.msra.mxu0 %v2003
      %2061 = vmatprep.subr.bf16.mxu0 %v1988
      %2062 = vmatpush1.bf16.msra.mxu0 %v1987
      %2063 = vmatprep.subr.bf16.mxu0 %v1984
      %2064 = vmatpush1.bf16.msra.mxu0 %v1983
      %2065 = vmatprep.subr.bf16.mxu0 0
      %2066 = vmatpush2.bf16.msra.mxu0 0
      %2067 = vmatprep.subr.bf16.mxu0 0
      %2068 = vmatpush2.bf16.msra.mxu0 0
      %2069 = vmatprep.subr.bf16.mxu0 0
      %2070 = vmatpush2.bf16.msra.mxu0 0
      %2071 = vmatprep.subr.bf16.mxu0 0
      %2072 = vmatpush2.bf16.msra.mxu0 0
      %2073 = vmatprep.subr.bf16.mxu0 0
      %2074 = vmatpush2.bf16.msra.mxu0 0
      %2075 = vmatprep.subr.bf16.mxu0 0
      %2076 = vmatpush2.bf16.msra.mxu0 0
      %2077 = vmatprep.subr.bf16.mxu0 0
      %2078 = vmatpush2.bf16.msra.mxu0 0
      %2079 = vmatprep.subr.bf16.mxu0 0
      %2080 = vmatpush2.bf16.msra.mxu0 0
      %2081 = vmatprep.mubr.bf16.mxu0 0
      %2082 = vmatmul.mubr.bf16.gmra.mxu0 %v1994
      %v2083 = vpop.f32.mrf.mxu0
      %v2084 = vadd.f32 0.0, %v2083
      %v2085 = vpop.f32.mrf.mxu0
      %v2086 = vadd.f32 0.0, %v2085
      %v2087 = vpop.f32.mrf.mxu0
      %v2088 = vpop.f32.mrf.mxu0
      %2089 = vdwg.mxu0
      %2091 = vset.pattern.permute.xlu0 0
      %2092 = vperm.xlu0 %2091, %v1774
      %v2093 = vpop.permute.xlu0 %2092
      %v2095 = vmul.f32 %v2043, %v2093
      %v2096 = vmul.f32 %v2045, %v2093
      %v2097 = vmul.f32 %v2084, %v2093
      %v2098 = vmul.f32 %v2086, %v2093
      %2100 = vset.pattern.permute.xlu0 0
      %2101 = vperm.xlu0 %2100, %v1776
      %v2102 = vpop.permute.xlu0 %2101
      %v2104 = vadd.f32 %v2095, %v2102
      %v2105 = vadd.f32 %v2096, %v2102
      %v2106 = vadd.f32 %v2097, %v2102
      %v2107 = vadd.f32 %v2098, %v2102
      %v2108 = vmax.f32 %v2104, 0.0
      %v2109 = vmax.f32 %v2105, 0.0
      %v2110 = vmax.f32 %v2106, 0.0
      %v2111 = vmax.f32 %v2107, 0.0
      %s2112 = scalar_lea.vmem %s698, 6
      %v2113 = vld [vmem:[%s2112] sm:$0x3]
      %s2114 = scalar_lea.vmem %s703, 12
      %v2115 = vld [vmem:[%s2114] sm:$0xf]
      %s2116 = scalar_lea.vmem %s708, 12
      %v2117 = vld [vmem:[%s2116] sm:$0xf]
      %2118 = vrot.lane.b32.xlu0 %v2108, 17
      %v2119 = vpop.permute.xlu0 %2118
      %2120 = vrot.lane.b32.xlu0 %v2109, 17
      %v2121 = vpop.permute.xlu0 %2120
      %2122 = vrot.lane.b32.xlu0 %v2110, 17
      %v2123 = vpop.permute.xlu0 %2122
      %2124 = vrot.lane.b32.xlu0 %v2111, 17
      %v2125 = vpop.permute.xlu0 %2124
      %v2126 = vsel %vm948, %v2123, %v2125
      %v2127 = vsel %vm948, %v2121, %v2123
      %v2128 = vsel %vm948, %v2119, %v2121
      %v2129 = vsel %vm948, %v2125, %v2119
      %v2130 = vmul.f32 %v2129, %v957
      %v2131 = vmul.f32 %v2128, %v961
      %v2132 = vmul.f32 %v2127, %v965
      %v2133 = vmul.f32 %v2126, %v969
      %2134 = vrot.lane.b32.xlu0 %v2108, 16
      %v2135 = vpop.permute.xlu0 %2134
      %2136 = vrot.lane.b32.xlu0 %v2109, 16
      %v2137 = vpop.permute.xlu0 %2136
      %2138 = vrot.lane.b32.xlu0 %v2110, 16
      %v2139 = vpop.permute.xlu0 %2138
      %2140 = vrot.lane.b32.xlu0 %v2111, 16
      %v2141 = vpop.permute.xlu0 %2140
      %v2142 = vsel %vm986, %v2139, %v2141
      %v2143 = vsel %vm986, %v2137, %v2139
      %v2144 = vsel %vm986, %v2135, %v2137
      %v2145 = vsel %vm986, %v2141, %v2135
      %v2146 = vmul.f32 %v2145, %v995
      %v2147 = vmul.f32 %v2144, %v999
      %v2148 = vmul.f32 %v2143, %v1003
      %v2149 = vmul.f32 %v2142, %v1007
      %2150 = vrot.lane.b32.xlu0 %v2108, 15
      %v2151 = vpop.permute.xlu0 %2150
      %2152 = vrot.lane.b32.xlu0 %v2109, 15
      %v2153 = vpop.permute.xlu0 %2152
      %2154 = vrot.lane.b32.xlu0 %v2110, 15
      %v2155 = vpop.permute.xlu0 %2154
      %2156 = vrot.lane.b32.xlu0 %v2111, 15
      %v2157 = vpop.permute.xlu0 %2156
      %v2158 = vsel %vm1024, %v2155, %v2157
      %v2159 = vsel %vm1024, %v2153, %v2155
      %v2160 = vsel %vm1024, %v2151, %v2153
      %v2161 = vsel %vm1024, %v2157, %v2151
      %v2162 = vmul.f32 %v2161, %v1033
      %v2163 = vmul.f32 %v2160, %v1037
      %v2164 = vmul.f32 %v2159, %v1041
      %v2165 = vmul.f32 %v2158, %v1045
      %2166 = vrot.lane.b32.xlu0 %v2108, 1
      %v2167 = vpop.permute.xlu0 %2166
      %2168 = vrot.lane.b32.xlu0 %v2109, 1
      %v2169 = vpop.permute.xlu0 %2168
      %2170 = vrot.lane.b32.xlu0 %v2110, 1
      %v2171 = vpop.permute.xlu0 %2170
      %2172 = vrot.lane.b32.xlu0 %v2111, 1
      %v2173 = vpop.permute.xlu0 %2172
      %v2174 = vsel %vm1062, %v2171, %v2173
      %v2175 = vsel %vm1062, %v2169, %v2171
      %v2176 = vsel %vm1062, %v2167, %v2169
      %v2177 = vsel %vm1062, %v2173, %v2167
      %v2178 = vmul.f32 %v2177, %v1071
      %v2179 = vmul.f32 %v2176, %v1075
      %v2180 = vmul.f32 %v2175, %v1079
      %v2181 = vmul.f32 %v2174, %v1083
      %2182 = vrot.lane.b32.xlu0 %v2108, 127
      %v2183 = vpop.permute.xlu0 %2182
      %2184 = vrot.lane.b32.xlu0 %v2109, 127
      %v2185 = vpop.permute.xlu0 %2184
      %2186 = vrot.lane.b32.xlu0 %v2110, 127
      %v2187 = vpop.permute.xlu0 %2186
      %2188 = vrot.lane.b32.xlu0 %v2111, 127
      %v2189 = vpop.permute.xlu0 %2188
      %v2190 = vsel %vm1100, %v2187, %v2189
      %v2191 = vsel %vm1100, %v2185, %v2187
      %v2192 = vsel %vm1100, %v2183, %v2185
      %v2193 = vsel %vm1100, %v2189, %v2183
      %v2194 = vmul.f32 %v2192, %v1109
      %v2195 = vmul.f32 %v2191, %v1113
      %v2196 = vmul.f32 %v2190, %v1117
      %v2197 = vmul.f32 %v2193, %v1121
      %2198 = vrot.lane.b32.xlu0 %v2108, 113
      %v2199 = vpop.permute.xlu0 %2198
      %2200 = vrot.lane.b32.xlu0 %v2109, 113
      %v2201 = vpop.permute.xlu0 %2200
      %2202 = vrot.lane.b32.xlu0 %v2110, 113
      %v2203 = vpop.permute.xlu0 %2202
      %2204 = vrot.lane.b32.xlu0 %v2111, 113
      %v2205 = vpop.permute.xlu0 %2204
      %v2206 = vsel %vm1138, %v2203, %v2205
      %v2207 = vsel %vm1138, %v2201, %v2203
      %v2208 = vsel %vm1138, %v2199, %v2201
      %v2209 = vsel %vm1138, %v2205, %v2199
      %v2210 = vmul.f32 %v2208, %v1147
      %v2211 = vmul.f32 %v2207, %v1151
      %v2212 = vmul.f32 %v2206, %v1155
      %v2213 = vmul.f32 %v2209, %v1159
      %2214 = vrot.lane.b32.xlu0 %v2108, 112
      %v2215 = vpop.permute.xlu0 %2214
      %2216 = vrot.lane.b32.xlu0 %v2109, 112
      %v2217 = vpop.permute.xlu0 %2216
      %2218 = vrot.lane.b32.xlu0 %v2110, 112
      %v2219 = vpop.permute.xlu0 %2218
      %2220 = vrot.lane.b32.xlu0 %v2111, 112
      %v2221 = vpop.permute.xlu0 %2220
      %v2222 = vsel %vm1176, %v2219, %v2221
      %v2223 = vsel %vm1176, %v2217, %v2219
      %v2224 = vsel %vm1176, %v2215, %v2217
      %v2225 = vsel %vm1176, %v2221, %v2215
      %v2226 = vmul.f32 %v2224, %v1185
      %v2227 = vmul.f32 %v2223, %v1189
      %v2228 = vmul.f32 %v2222, %v1193
      %v2229 = vmul.f32 %v2225, %v1197
      %2230 = vrot.lane.b32.xlu0 %v2108, 111
      %v2231 = vpop.permute.xlu0 %2230
      %2232 = vrot.lane.b32.xlu0 %v2109, 111
      %v2233 = vpop.permute.xlu0 %2232
      %2234 = vrot.lane.b32.xlu0 %v2110, 111
      %v2235 = vpop.permute.xlu0 %2234
      %2236 = vrot.lane.b32.xlu0 %v2111, 111
      %v2237 = vpop.permute.xlu0 %2236
      %v2238 = vsel %vm1214, %v2235, %v2237
      %v2239 = vsel %vm1214, %v2233, %v2235
      %v2240 = vsel %vm1214, %v2231, %v2233
      %v2241 = vsel %vm1214, %v2237, %v2231
      %v2242 = vmul.f32 %v2240, %v1223
      %v2243 = vmul.f32 %v2239, %v1227
      %v2244 = vmul.f32 %v2238, %v1231
      %v2245 = vmul.f32 %v2241, %v1235
      %v2250 = vrot.slane %v2146, 4
      %v2251 = vrot.slane %v2147, 4
      %v2252 = vrot.slane %v2148, 4
      %v2253 = vrot.slane %v2149, 4
      %v2262 = vrot.slane %v2178, 4
      %v2263 = vrot.slane %v2179, 4
      %v2264 = vrot.slane %v2180, 4
      %v2265 = vrot.slane %v2181, 4
      %v2274 = vrot.slane %v2194, 4
      %v2275 = vrot.slane %v2195, 4
      %v2276 = vrot.slane %v2196, 4
      %v2277 = vrot.slane %v2197, 4
      %v2286 = vrot.slane %v2226, 4
      %v2287 = vrot.slane %v2227, 4
      %v2288 = vrot.slane %v2228, 4
      %v2289 = vrot.slane %v2229, 4
      %v2294 = vsel %vm1292, %v2130, %v2250
      %v2295 = vsel %vm1292, %v2131, %v2251
      %v2296 = vsel %vm1292, %v2132, %v2252
      %v2297 = vsel %vm1292, %v2133, %v2253
      %v2298 = vsel %vm1292, %v2162, %v2262
      %v2299 = vsel %vm1292, %v2163, %v2263
      %v2300 = vsel %vm1292, %v2164, %v2264
      %v2301 = vsel %vm1292, %v2165, %v2265
      %v2302 = vsel %vm1292, %v2108, %v2274
      %v2303 = vsel %vm1292, %v2109, %v2275
      %v2304 = vsel %vm1292, %v2110, %v2276
      %v2305 = vsel %vm1292, %v2111, %v2277
      %v2306 = vsel %vm1292, %v2210, %v2286
      %v2307 = vsel %vm1292, %v2211, %v2287
      %v2308 = vsel %vm1292, %v2212, %v2288
      %v2309 = vsel %vm1292, %v2213, %v2289
      %v2310 = vpack.c.bf16 %v2298, %v2294
      %v2311 = vpack.c.bf16 %v2299, %v2295
      %v2312 = vpack.c.bf16 %v2300, %v2296
      %v2313 = vpack.c.bf16 %v2301, %v2297
      %v2314 = vpack.c.bf16 %v2306, %v2302
      %v2315 = vpack.c.bf16 %v2307, %v2303
      %v2316 = vpack.c.bf16 %v2308, %v2304
      %v2317 = vpack.c.bf16 %v2309, %v2305
      %v2318 = vpack.c.bf16 %v2242, %v2242
      %v2319 = vpack.c.bf16 %v2243, %v2243
      %v2320 = vpack.c.bf16 %v2244, %v2244
      %v2321 = vpack.c.bf16 %v2245, %v2245
      %v2323 = vsel %vm1321, %v2113, 0
      %v2326 = vsel %vm1325, %v2318, 0
      %v2329 = vsel %vm1325, %v2319, 0
      %v2332 = vsel %vm1325, %v2320, 0
      %v2335 = vsel %vm1325, %v2321, 0
      %2337 = vmatprep.subr.bf16.mxu0 0
      %2338 = vmatpush1.bf16.msra.mxu0 0
      %2339 = vmatprep.subr.bf16.mxu0 0
      %2340 = vmatpush1.bf16.msra.mxu0 0
      %2341 = vmatprep.subr.bf16.mxu0 0
      %2342 = vmatpush1.bf16.msra.mxu0 0
      %2343 = vmatprep.subr.bf16.mxu0 0
      %2344 = vmatpush1.bf16.msra.mxu0 0
      %2345 = vmatprep.subr.bf16.mxu0 0
      %2346 = vmatpush1.bf16.msra.mxu0 0
      %2347 = vmatprep.subr.bf16.mxu0 %v2329
      %2348 = vmatpush1.bf16.msra.mxu0 %v2326
      %2349 = vmatprep.subr.bf16.mxu0 %v2315
      %2350 = vmatpush1.bf16.msra.mxu0 %v2314
      %2351 = vmatprep.subr.bf16.mxu0 %v2311
      %2352 = vmatpush1.bf16.msra.mxu0 %v2310
      %2353 = vmatprep.subr.bf16.mxu0 0
      %2354 = vmatpush2.bf16.msra.mxu0 0
      %2355 = vmatprep.subr.bf16.mxu0 0
      %2356 = vmatpush2.bf16.msra.mxu0 0
      %2357 = vmatprep.subr.bf16.mxu0 0
      %2358 = vmatpush2.bf16.msra.mxu0 0
      %2359 = vmatprep.subr.bf16.mxu0 0
      %2360 = vmatpush2.bf16.msra.mxu0 0
      %2361 = vmatprep.subr.bf16.mxu0 0
      %2362 = vmatpush2.bf16.msra.mxu0 0
      %2363 = vmatprep.subr.bf16.mxu0 0
      %2364 = vmatpush2.bf16.msra.mxu0 0
      %2365 = vmatprep.subr.bf16.mxu0 0
      %2366 = vmatpush2.bf16.msra.mxu0 0
      %2367 = vmatprep.subr.bf16.mxu0 0
      %2368 = vmatpush2.bf16.msra.mxu0 0
      %2369 = vmatprep.mubr.bf16.mxu0 0
      %2370 = vmatmul.mubr.bf16.gmra.mxu0 %v2323
      %v2371 = vpop.f32.mrf.mxu0
      %v2372 = vadd.f32 0.0, %v2371
      %v2373 = vpop.f32.mrf.mxu0
      %v2374 = vadd.f32 0.0, %v2373
      %v2375 = vpop.f32.mrf.mxu0
      %v2376 = vpop.f32.mrf.mxu0
      %2377 = vdwg.mxu0
      %2378 = vmatprep.subr.bf16.mxu0 0
      %2379 = vmatpush1.bf16.msra.mxu0 0
      %2380 = vmatprep.subr.bf16.mxu0 0
      %2381 = vmatpush1.bf16.msra.mxu0 0
      %2382 = vmatprep.subr.bf16.mxu0 0
      %2383 = vmatpush1.bf16.msra.mxu0 0
      %2384 = vmatprep.subr.bf16.mxu0 0
      %2385 = vmatpush1.bf16.msra.mxu0 0
      %2386 = vmatprep.subr.bf16.mxu0 0
      %2387 = vmatpush1.bf16.msra.mxu0 0
      %2388 = vmatprep.subr.bf16.mxu0 %v2335
      %2389 = vmatpush1.bf16.msra.mxu0 %v2332
      %2390 = vmatprep.subr.bf16.mxu0 %v2317
      %2391 = vmatpush1.bf16.msra.mxu0 %v2316
      %2392 = vmatprep.subr.bf16.mxu0 %v2313
      %2393 = vmatpush1.bf16.msra.mxu0 %v2312
      %2394 = vmatprep.subr.bf16.mxu0 0
      %2395 = vmatpush2.bf16.msra.mxu0 0
      %2396 = vmatprep.subr.bf16.mxu0 0
      %2397 = vmatpush2.bf16.msra.mxu0 0
      %2398 = vmatprep.subr.bf16.mxu0 0
      %2399 = vmatpush2.bf16.msra.mxu0 0
      %2400 = vmatprep.subr.bf16.mxu0 0
      %2401 = vmatpush2.bf16.msra.mxu0 0
      %2402 = vmatprep.subr.bf16.mxu0 0
      %2403 = vmatpush2.bf16.msra.mxu0 0
      %2404 = vmatprep.subr.bf16.mxu0 0
      %2405 = vmatpush2.bf16.msra.mxu0 0
      %2406 = vmatprep.subr.bf16.mxu0 0
      %2407 = vmatpush2.bf16.msra.mxu0 0
      %2408 = vmatprep.subr.bf16.mxu0 0
      %2409 = vmatpush2.bf16.msra.mxu0 0
      %2410 = vmatprep.mubr.bf16.mxu0 0
      %2411 = vmatmul.mubr.bf16.gmra.mxu0 %v2323
      %v2412 = vpop.f32.mrf.mxu0
      %v2413 = vadd.f32 0.0, %v2412
      %v2414 = vpop.f32.mrf.mxu0
      %v2415 = vadd.f32 0.0, %v2414
      %v2416 = vpop.f32.mrf.mxu0
      %v2417 = vpop.f32.mrf.mxu0
      %2418 = vdwg.mxu0
      %2420 = vset.pattern.permute.xlu0 0
      %2421 = vperm.xlu0 %2420, %v2115
      %v2422 = vpop.permute.xlu0 %2421
      %v2424 = vmul.f32 %v2372, %v2422
      %v2425 = vmul.f32 %v2374, %v2422
      %v2426 = vmul.f32 %v2413, %v2422
      %v2427 = vmul.f32 %v2415, %v2422
      %2429 = vset.pattern.permute.xlu0 0
      %2430 = vperm.xlu0 %2429, %v2117
      %v2431 = vpop.permute.xlu0 %2430
      %v2433 = vadd.f32 %v2424, %v2431
      %v2434 = vadd.f32 %v2425, %v2431
      %v2435 = vadd.f32 %v2426, %v2431
      %v2436 = vadd.f32 %v2427, %v2431
      %v2437 = vmax.f32 %v2433, 0.0
      %v2438 = vmax.f32 %v2434, 0.0
      %v2439 = vmax.f32 %v2435, 0.0
      %v2440 = vmax.f32 %v2436, 0.0
      %v2445 = vrot.slane %v2437, 4
      %v2446 = vrot.slane %v2438, 4
      %v2447 = vrot.slane %v2439, 4
      %v2448 = vrot.slane %v2440, 4
      %v2453 = vsel %vm1292, %v1767, %v2445
      %v2454 = vsel %vm1292, %v1768, %v2446
      %v2455 = vsel %vm1292, %v1769, %v2447
      %v2456 = vsel %vm1292, %v1770, %v2448
      %v2457 = vld [vmem:[%s713] sm:$0xf]
      %v2458 = vld [vmem:[%s718] sm:$0xff]
      %v2459 = vld [vmem:[%s723] sm:$0xff]
      %2460 = vrot.lane.b32.xlu0 %v2453, 17
      %v2461 = vpop.permute.xlu0 %2460
      %2462 = vrot.lane.b32.xlu0 %v2454, 17
      %v2463 = vpop.permute.xlu0 %2462
      %2464 = vrot.lane.b32.xlu0 %v2455, 17
      %v2465 = vpop.permute.xlu0 %2464
      %2466 = vrot.lane.b32.xlu0 %v2456, 17
      %v2467 = vpop.permute.xlu0 %2466
      %v2468 = vsel %vm948, %v2465, %v2467
      %v2469 = vsel %vm948, %v2463, %v2465
      %v2470 = vsel %vm948, %v2461, %v2463
      %v2471 = vsel %vm948, %v2467, %v2461
      %v2472 = vmul.f32 %v2471, %v957
      %v2473 = vmul.f32 %v2470, %v961
      %v2474 = vmul.f32 %v2469, %v965
      %v2475 = vmul.f32 %v2468, %v969
      %2476 = vrot.lane.b32.xlu0 %v2453, 16
      %v2477 = vpop.permute.xlu0 %2476
      %2478 = vrot.lane.b32.xlu0 %v2454, 16
      %v2479 = vpop.permute.xlu0 %2478
      %2480 = vrot.lane.b32.xlu0 %v2455, 16
      %v2481 = vpop.permute.xlu0 %2480
      %2482 = vrot.lane.b32.xlu0 %v2456, 16
      %v2483 = vpop.permute.xlu0 %2482
      %v2484 = vsel %vm986, %v2481, %v2483
      %v2485 = vsel %vm986, %v2479, %v2481
      %v2486 = vsel %vm986, %v2477, %v2479
      %v2487 = vsel %vm986, %v2483, %v2477
      %v2488 = vmul.f32 %v2487, %v995
      %v2489 = vmul.f32 %v2486, %v999
      %v2490 = vmul.f32 %v2485, %v1003
      %v2491 = vmul.f32 %v2484, %v1007
      %2492 = vrot.lane.b32.xlu0 %v2453, 15
      %v2493 = vpop.permute.xlu0 %2492
      %2494 = vrot.lane.b32.xlu0 %v2454, 15
      %v2495 = vpop.permute.xlu0 %2494
      %2496 = vrot.lane.b32.xlu0 %v2455, 15
      %v2497 = vpop.permute.xlu0 %2496
      %2498 = vrot.lane.b32.xlu0 %v2456, 15
      %v2499 = vpop.permute.xlu0 %2498
      %v2500 = vsel %vm1024, %v2497, %v2499
      %v2501 = vsel %vm1024, %v2495, %v2497
      %v2502 = vsel %vm1024, %v2493, %v2495
      %v2503 = vsel %vm1024, %v2499, %v2493
      %v2504 = vmul.f32 %v2503, %v1033
      %v2505 = vmul.f32 %v2502, %v1037
      %v2506 = vmul.f32 %v2501, %v1041
      %v2507 = vmul.f32 %v2500, %v1045
      %2508 = vrot.lane.b32.xlu0 %v2453, 1
      %v2509 = vpop.permute.xlu0 %2508
      %2510 = vrot.lane.b32.xlu0 %v2454, 1
      %v2511 = vpop.permute.xlu0 %2510
      %2512 = vrot.lane.b32.xlu0 %v2455, 1
      %v2513 = vpop.permute.xlu0 %2512
      %2514 = vrot.lane.b32.xlu0 %v2456, 1
      %v2515 = vpop.permute.xlu0 %2514
      %v2516 = vsel %vm1062, %v2513, %v2515
      %v2517 = vsel %vm1062, %v2511, %v2513
      %v2518 = vsel %vm1062, %v2509, %v2511
      %v2519 = vsel %vm1062, %v2515, %v2509
      %v2520 = vmul.f32 %v2519, %v1071
      %v2521 = vmul.f32 %v2518, %v1075
      %v2522 = vmul.f32 %v2517, %v1079
      %v2523 = vmul.f32 %v2516, %v1083
      %2524 = vrot.lane.b32.xlu0 %v2453, 127
      %v2525 = vpop.permute.xlu0 %2524
      %2526 = vrot.lane.b32.xlu0 %v2454, 127
      %v2527 = vpop.permute.xlu0 %2526
      %2528 = vrot.lane.b32.xlu0 %v2455, 127
      %v2529 = vpop.permute.xlu0 %2528
      %2530 = vrot.lane.b32.xlu0 %v2456, 127
      %v2531 = vpop.permute.xlu0 %2530
      %v2532 = vsel %vm1100, %v2529, %v2531
      %v2533 = vsel %vm1100, %v2527, %v2529
      %v2534 = vsel %vm1100, %v2525, %v2527
      %v2535 = vsel %vm1100, %v2531, %v2525
      %v2536 = vmul.f32 %v2534, %v1109
      %v2537 = vmul.f32 %v2533, %v1113
      %v2538 = vmul.f32 %v2532, %v1117
      %v2539 = vmul.f32 %v2535, %v1121
      %2540 = vrot.lane.b32.xlu0 %v2453, 113
      %v2541 = vpop.permute.xlu0 %2540
      %2542 = vrot.lane.b32.xlu0 %v2454, 113
      %v2543 = vpop.permute.xlu0 %2542
      %2544 = vrot.lane.b32.xlu0 %v2455, 113
      %v2545 = vpop.permute.xlu0 %2544
      %2546 = vrot.lane.b32.xlu0 %v2456, 113
      %v2547 = vpop.permute.xlu0 %2546
      %v2548 = vsel %vm1138, %v2545, %v2547
      %v2549 = vsel %vm1138, %v2543, %v2545
      %v2550 = vsel %vm1138, %v2541, %v2543
      %v2551 = vsel %vm1138, %v2547, %v2541
      %v2552 = vmul.f32 %v2550, %v1147
      %v2553 = vmul.f32 %v2549, %v1151
      %v2554 = vmul.f32 %v2548, %v1155
      %v2555 = vmul.f32 %v2551, %v1159
      %2556 = vrot.lane.b32.xlu0 %v2453, 112
      %v2557 = vpop.permute.xlu0 %2556
      %2558 = vrot.lane.b32.xlu0 %v2454, 112
      %v2559 = vpop.permute.xlu0 %2558
      %2560 = vrot.lane.b32.xlu0 %v2455, 112
      %v2561 = vpop.permute.xlu0 %2560
      %2562 = vrot.lane.b32.xlu0 %v2456, 112
      %v2563 = vpop.permute.xlu0 %2562
      %v2564 = vsel %vm1176, %v2561, %v2563
      %v2565 = vsel %vm1176, %v2559, %v2561
      %v2566 = vsel %vm1176, %v2557, %v2559
      %v2567 = vsel %vm1176, %v2563, %v2557
      %v2568 = vmul.f32 %v2566, %v1185
      %v2569 = vmul.f32 %v2565, %v1189
      %v2570 = vmul.f32 %v2564, %v1193
      %v2571 = vmul.f32 %v2567, %v1197
      %2572 = vrot.lane.b32.xlu0 %v2453, 111
      %v2573 = vpop.permute.xlu0 %2572
      %2574 = vrot.lane.b32.xlu0 %v2454, 111
      %v2575 = vpop.permute.xlu0 %2574
      %2576 = vrot.lane.b32.xlu0 %v2455, 111
      %v2577 = vpop.permute.xlu0 %2576
      %2578 = vrot.lane.b32.xlu0 %v2456, 111
      %v2579 = vpop.permute.xlu0 %2578
      %v2580 = vsel %vm1214, %v2577, %v2579
      %v2581 = vsel %vm1214, %v2575, %v2577
      %v2582 = vsel %vm1214, %v2573, %v2575
      %v2583 = vsel %vm1214, %v2579, %v2573
      %v2584 = vmul.f32 %v2582, %v1223
      %v2585 = vmul.f32 %v2581, %v1227
      %v2586 = vmul.f32 %v2580, %v1231
      %v2587 = vmul.f32 %v2583, %v1235
      %v2588 = vpack.c.bf16 %v2488, %v2472
      %v2589 = vpack.c.bf16 %v2489, %v2473
      %v2590 = vpack.c.bf16 %v2490, %v2474
      %v2591 = vpack.c.bf16 %v2491, %v2475
      %v2592 = vpack.c.bf16 %v2520, %v2504
      %v2593 = vpack.c.bf16 %v2521, %v2505
      %v2594 = vpack.c.bf16 %v2522, %v2506
      %v2595 = vpack.c.bf16 %v2523, %v2507
      %v2596 = vpack.c.bf16 %v2536, %v2453
      %v2597 = vpack.c.bf16 %v2537, %v2454
      %v2598 = vpack.c.bf16 %v2538, %v2455
      %v2599 = vpack.c.bf16 %v2539, %v2456
      %v2600 = vpack.c.bf16 %v2568, %v2552
      %v2601 = vpack.c.bf16 %v2569, %v2553
      %v2602 = vpack.c.bf16 %v2570, %v2554
      %v2603 = vpack.c.bf16 %v2571, %v2555
      %v2604 = vpack.c.bf16 %v2584, %v2584
      %v2605 = vpack.c.bf16 %v2585, %v2585
      %v2606 = vpack.c.bf16 %v2586, %v2586
      %v2607 = vpack.c.bf16 %v2587, %v2587
      %vm2608 = vcmask 588800
      %v2610 = vsel %vm2608, %v2457, 0
      %v2613 = vsel %vm1292, %v2604, 0
      %v2616 = vsel %vm1292, %v2605, 0
      %v2619 = vsel %vm1292, %v2606, 0
      %v2622 = vsel %vm1292, %v2607, 0
      %2624 = vmatprep.subr.bf16.mxu0 0
      %2625 = vmatpush1.bf16.msra.mxu0 0
      %2626 = vmatprep.subr.bf16.mxu0 0
      %2627 = vmatpush1.bf16.msra.mxu0 0
      %2628 = vmatprep.subr.bf16.mxu0 0
      %2629 = vmatpush1.bf16.msra.mxu0 0
      %2630 = vmatprep.subr.bf16.mxu0 %v2616
      %2631 = vmatpush1.bf16.msra.mxu0 %v2613
      %2632 = vmatprep.subr.bf16.mxu0 %v2601
      %2633 = vmatpush1.bf16.msra.mxu0 %v2600
      %2634 = vmatprep.subr.bf16.mxu0 %v2597
      %2635 = vmatpush1.bf16.msra.mxu0 %v2596
      %2636 = vmatprep.subr.bf16.mxu0 %v2593
      %2637 = vmatpush1.bf16.msra.mxu0 %v2592
      %2638 = vmatprep.subr.bf16.mxu0 %v2589
      %2639 = vmatpush1.bf16.msra.mxu0 %v2588
      %2640 = vmatprep.subr.bf16.mxu0 0
      %2641 = vmatpush2.bf16.msra.mxu0 0
      %2642 = vmatprep.subr.bf16.mxu0 0
      %2643 = vmatpush2.bf16.msra.mxu0 0
      %2644 = vmatprep.subr.bf16.mxu0 0
      %2645 = vmatpush2.bf16.msra.mxu0 0
      %2646 = vmatprep.subr.bf16.mxu0 0
      %2647 = vmatpush2.bf16.msra.mxu0 0
      %2648 = vmatprep.subr.bf16.mxu0 0
      %2649 = vmatpush2.bf16.msra.mxu0 0
      %2650 = vmatprep.subr.bf16.mxu0 0
      %2651 = vmatpush2.bf16.msra.mxu0 0
      %2652 = vmatprep.subr.bf16.mxu0 0
      %2653 = vmatpush2.bf16.msra.mxu0 0
      %2654 = vmatprep.subr.bf16.mxu0 0
      %2655 = vmatpush2.bf16.msra.mxu0 0
      %2656 = vmatprep.mubr.bf16.mxu0 0
      %2657 = vmatmul.mubr.bf16.gmra.mxu0 %v2610
      %v2658 = vpop.f32.mrf.mxu0
      %v2659 = vadd.f32 0.0, %v2658
      %v2660 = vpop.f32.mrf.mxu0
      %v2661 = vadd.f32 0.0, %v2660
      %v2662 = vpop.f32.mrf.mxu0
      %v2663 = vpop.f32.mrf.mxu0
      %2664 = vdwg.mxu0
      %2665 = vmatprep.subr.bf16.mxu0 0
      %2666 = vmatpush1.bf16.msra.mxu0 0
      %2667 = vmatprep.subr.bf16.mxu0 0
      %2668 = vmatpush1.bf16.msra.mxu0 0
      %2669 = vmatprep.subr.bf16.mxu0 0
      %2670 = vmatpush1.bf16.msra.mxu0 0
      %2671 = vmatprep.subr.bf16.mxu0 %v2622
      %2672 = vmatpush1.bf16.msra.mxu0 %v2619
      %2673 = vmatprep.subr.bf16.mxu0 %v2603
      %2674 = vmatpush1.bf16.msra.mxu0 %v2602
      %2675 = vmatprep.subr.bf16.mxu0 %v2599
      %2676 = vmatpush1.bf16.msra.mxu0 %v2598
      %2677 = vmatprep.subr.bf16.mxu0 %v2595
      %2678 = vmatpush1.bf16.msra.mxu0 %v2594
      %2679 = vmatprep.subr.bf16.mxu0 %v2591
      %2680 = vmatpush1.bf16.msra.mxu0 %v2590
      %2681 = vmatprep.subr.bf16.mxu0 0
      %2682 = vmatpush2.bf16.msra.mxu0 0
      %2683 = vmatprep.subr.bf16.mxu0 0
      %2684 = vmatpush2.bf16.msra.mxu0 0
      %2685 = vmatprep.subr.bf16.mxu0 0
      %2686 = vmatpush2.bf16.msra.mxu0 0
      %2687 = vmatprep.subr.bf16.mxu0 0
      %2688 = vmatpush2.bf16.msra.mxu0 0
      %2689 = vmatprep.subr.bf16.mxu0 0
      %2690 = vmatpush2.bf16.msra.mxu0 0
      %2691 = vmatprep.subr.bf16.mxu0 0
      %2692 = vmatpush2.bf16.msra.mxu0 0
      %2693 = vmatprep.subr.bf16.mxu0 0
      %2694 = vmatpush2.bf16.msra.mxu0 0
      %2695 = vmatprep.subr.bf16.mxu0 0
      %2696 = vmatpush2.bf16.msra.mxu0 0
      %2697 = vmatprep.mubr.bf16.mxu0 0
      %2698 = vmatmul.mubr.bf16.gmra.mxu0 %v2610
      %v2699 = vpop.f32.mrf.mxu0
      %v2700 = vadd.f32 0.0, %v2699
      %v2701 = vpop.f32.mrf.mxu0
      %v2702 = vadd.f32 0.0, %v2701
      %v2703 = vpop.f32.mrf.mxu0
      %v2704 = vpop.f32.mrf.mxu0
      %2705 = vdwg.mxu0
      %2707 = vset.pattern.permute.xlu0 0
      %2708 = vperm.xlu0 %2707, %v2458
      %v2709 = vpop.permute.xlu0 %2708
      %v2711 = vmul.f32 %v2659, %v2709
      %v2712 = vmul.f32 %v2661, %v2709
      %v2713 = vmul.f32 %v2700, %v2709
      %v2714 = vmul.f32 %v2702, %v2709
      %2716 = vset.pattern.permute.xlu0 0
      %2717 = vperm.xlu0 %2716, %v2459
      %v2718 = vpop.permute.xlu0 %2717
      %v2720 = vadd.f32 %v2711, %v2718
      %v2721 = vadd.f32 %v2712, %v2718
      %v2722 = vadd.f32 %v2713, %v2718
      %v2723 = vadd.f32 %v2714, %v2718
      %v2724 = vmax.f32 %v2720, 0.0
      %v2725 = vmax.f32 %v2721, 0.0
      %v2726 = vmax.f32 %v2722, 0.0
      %v2727 = vmax.f32 %v2723, 0.0
      %s2728 = scalar_lea.vmem %s713, 4
      %v2729 = vld [vmem:[%s2728] sm:$0xf]
      %s2730 = scalar_lea.vmem %s718, 8
      %v2731 = vld [vmem:[%s2730] sm:$0xff]
      %s2732 = scalar_lea.vmem %s723, 8
      %v2733 = vld [vmem:[%s2732] sm:$0xff]
      %v2735 = vsel %vm2608, %v2729, 0
      %2737 = vmatprep.subr.bf16.mxu0 0
      %2738 = vmatpush1.bf16.msra.mxu0 0
      %2739 = vmatprep.subr.bf16.mxu0 0
      %2740 = vmatpush1.bf16.msra.mxu0 0
      %2741 = vmatprep.subr.bf16.mxu0 0
      %2742 = vmatpush1.bf16.msra.mxu0 0
      %2743 = vmatprep.subr.bf16.mxu0 %v2616
      %2744 = vmatpush1.bf16.msra.mxu0 %v2613
      %2745 = vmatprep.subr.bf16.mxu0 %v2601
      %2746 = vmatpush1.bf16.msra.mxu0 %v2600
      %2747 = vmatprep.subr.bf16.mxu0 %v2597
      %2748 = vmatpush1.bf16.msra.mxu0 %v2596
      %2749 = vmatprep.subr.bf16.mxu0 %v2593
      %2750 = vmatpush1.bf16.msra.mxu0 %v2592
      %2751 = vmatprep.subr.bf16.mxu0 %v2589
      %2752 = vmatpush1.bf16.msra.mxu0 %v2588
      %2753 = vmatprep.subr.bf16.mxu0 0
      %2754 = vmatpush2.bf16.msra.mxu0 0
      %2755 = vmatprep.subr.bf16.mxu0 0
      %2756 = vmatpush2.bf16.msra.mxu0 0
      %2757 = vmatprep.subr.bf16.mxu0 0
      %2758 = vmatpush2.bf16.msra.mxu0 0
      %2759 = vmatprep.subr.bf16.mxu0 0
      %2760 = vmatpush2.bf16.msra.mxu0 0
      %2761 = vmatprep.subr.bf16.mxu0 0
      %2762 = vmatpush2.bf16.msra.mxu0 0
      %2763 = vmatprep.subr.bf16.mxu0 0
      %2764 = vmatpush2.bf16.msra.mxu0 0
      %2765 = vmatprep.subr.bf16.mxu0 0
      %2766 = vmatpush2.bf16.msra.mxu0 0
      %2767 = vmatprep.subr.bf16.mxu0 0
      %2768 = vmatpush2.bf16.msra.mxu0 0
      %2769 = vmatprep.mubr.bf16.mxu0 0
      %2770 = vmatmul.mubr.bf16.gmra.mxu0 %v2735
      %v2771 = vpop.f32.mrf.mxu0
      %v2772 = vadd.f32 0.0, %v2771
      %v2773 = vpop.f32.mrf.mxu0
      %v2774 = vadd.f32 0.0, %v2773
      %v2775 = vpop.f32.mrf.mxu0
      %v2776 = vpop.f32.mrf.mxu0
      %2777 = vdwg.mxu0
      %2778 = vmatprep.subr.bf16.mxu0 0
      %2779 = vmatpush1.bf16.msra.mxu0 0
      %2780 = vmatprep.subr.bf16.mxu0 0
      %2781 = vmatpush1.bf16.msra.mxu0 0
      %2782 = vmatprep.subr.bf16.mxu0 0
      %2783 = vmatpush1.bf16.msra.mxu0 0
      %2784 = vmatprep.subr.bf16.mxu0 %v2622
      %2785 = vmatpush1.bf16.msra.mxu0 %v2619
      %2786 = vmatprep.subr.bf16.mxu0 %v2603
      %2787 = vmatpush1.bf16.msra.mxu0 %v2602
      %2788 = vmatprep.subr.bf16.mxu0 %v2599
      %2789 = vmatpush1.bf16.msra.mxu0 %v2598
      %2790 = vmatprep.subr.bf16.mxu0 %v2595
      %2791 = vmatpush1.bf16.msra.mxu0 %v2594
      %2792 = vmatprep.subr.bf16.mxu0 %v2591
      %2793 = vmatpush1.bf16.msra.mxu0 %v2590
      %2794 = vmatprep.subr.bf16.mxu0 0
      %2795 = vmatpush2.bf16.msra.mxu0 0
      %2796 = vmatprep.subr.bf16.mxu0 0
      %2797 = vmatpush2.bf16.msra.mxu0 0
      %2798 = vmatprep.subr.bf16.mxu0 0
      %2799 = vmatpush2.bf16.msra.mxu0 0
      %2800 = vmatprep.subr.bf16.mxu0 0
      %2801 = vmatpush2.bf16.msra.mxu0 0
      %2802 = vmatprep.subr.bf16.mxu0 0
      %2803 = vmatpush2.bf16.msra.mxu0 0
      %2804 = vmatprep.subr.bf16.mxu0 0
      %2805 = vmatpush2.bf16.msra.mxu0 0
      %2806 = vmatprep.subr.bf16.mxu0 0
      %2807 = vmatpush2.bf16.msra.mxu0 0
      %2808 = vmatprep.subr.bf16.mxu0 0
      %2809 = vmatpush2.bf16.msra.mxu0 0
      %2810 = vmatprep.mubr.bf16.mxu0 0
      %2811 = vmatmul.mubr.bf16.gmra.mxu0 %v2735
      %v2812 = vpop.f32.mrf.mxu0
      %v2813 = vadd.f32 0.0, %v2812
      %v2814 = vpop.f32.mrf.mxu0
      %v2815 = vadd.f32 0.0, %v2814
      %v2816 = vpop.f32.mrf.mxu0
      %v2817 = vpop.f32.mrf.mxu0
      %2818 = vdwg.mxu0
      %2820 = vset.pattern.permute.xlu0 0
      %2821 = vperm.xlu0 %2820, %v2731
      %v2822 = vpop.permute.xlu0 %2821
      %v2824 = vmul.f32 %v2772, %v2822
      %v2825 = vmul.f32 %v2774, %v2822
      %v2826 = vmul.f32 %v2813, %v2822
      %v2827 = vmul.f32 %v2815, %v2822
      %2829 = vset.pattern.permute.xlu0 0
      %2830 = vperm.xlu0 %2829, %v2733
      %v2831 = vpop.permute.xlu0 %2830
      %v2833 = vadd.f32 %v2824, %v2831
      %v2834 = vadd.f32 %v2825, %v2831
      %v2835 = vadd.f32 %v2826, %v2831
      %v2836 = vadd.f32 %v2827, %v2831
      %v2837 = vmax.f32 %v2833, 0.0
      %v2838 = vmax.f32 %v2834, 0.0
      %v2839 = vmax.f32 %v2835, 0.0
      %v2840 = vmax.f32 %v2836, 0.0
      %s2841 = scalar_lea.vmem %s713, 8
      %v2842 = vld [vmem:[%s2841] sm:$0xf]
      %s2843 = scalar_lea.vmem %s718, 16
      %v2844 = vld [vmem:[%s2843] sm:$0xff]
      %s2845 = scalar_lea.vmem %s723, 16
      %v2846 = vld [vmem:[%s2845] sm:$0xff]
      %2847 = vrot.lane.b32.xlu0 %v2837, 17
      %v2848 = vpop.permute.xlu0 %2847
      %2849 = vrot.lane.b32.xlu0 %v2838, 17
      %v2850 = vpop.permute.xlu0 %2849
      %2851 = vrot.lane.b32.xlu0 %v2839, 17
      %v2852 = vpop.permute.xlu0 %2851
      %2853 = vrot.lane.b32.xlu0 %v2840, 17
      %v2854 = vpop.permute.xlu0 %2853
      %v2855 = vsel %vm948, %v2852, %v2854
      %v2856 = vsel %vm948, %v2850, %v2852
      %v2857 = vsel %vm948, %v2848, %v2850
      %v2858 = vsel %vm948, %v2854, %v2848
      %v2859 = vmul.f32 %v2858, %v957
      %v2860 = vmul.f32 %v2857, %v961
      %v2861 = vmul.f32 %v2856, %v965
      %v2862 = vmul.f32 %v2855, %v969
      %2863 = vrot.lane.b32.xlu0 %v2837, 16
      %v2864 = vpop.permute.xlu0 %2863
      %2865 = vrot.lane.b32.xlu0 %v2838, 16
      %v2866 = vpop.permute.xlu0 %2865
      %2867 = vrot.lane.b32.xlu0 %v2839, 16
      %v2868 = vpop.permute.xlu0 %2867
      %2869 = vrot.lane.b32.xlu0 %v2840, 16
      %v2870 = vpop.permute.xlu0 %2869
      %v2871 = vsel %vm986, %v2868, %v2870
      %v2872 = vsel %vm986, %v2866, %v2868
      %v2873 = vsel %vm986, %v2864, %v2866
      %v2874 = vsel %vm986, %v2870, %v2864
      %v2875 = vmul.f32 %v2874, %v995
      %v2876 = vmul.f32 %v2873, %v999
      %v2877 = vmul.f32 %v2872, %v1003
      %v2878 = vmul.f32 %v2871, %v1007
      %2879 = vrot.lane.b32.xlu0 %v2837, 15
      %v2880 = vpop.permute.xlu0 %2879
      %2881 = vrot.lane.b32.xlu0 %v2838, 15
      %v2882 = vpop.permute.xlu0 %2881
      %2883 = vrot.lane.b32.xlu0 %v2839, 15
      %v2884 = vpop.permute.xlu0 %2883
      %2885 = vrot.lane.b32.xlu0 %v2840, 15
      %v2886 = vpop.permute.xlu0 %2885
      %v2887 = vsel %vm1024, %v2884, %v2886
      %v2888 = vsel %vm1024, %v2882, %v2884
      %v2889 = vsel %vm1024, %v2880, %v2882
      %v2890 = vsel %vm1024, %v2886, %v2880
      %v2891 = vmul.f32 %v2890, %v1033
      %v2892 = vmul.f32 %v2889, %v1037
      %v2893 = vmul.f32 %v2888, %v1041
      %v2894 = vmul.f32 %v2887, %v1045
      %2895 = vrot.lane.b32.xlu0 %v2837, 1
      %v2896 = vpop.permute.xlu0 %2895
      %2897 = vrot.lane.b32.xlu0 %v2838, 1
      %v2898 = vpop.permute.xlu0 %2897
      %2899 = vrot.lane.b32.xlu0 %v2839, 1
      %v2900 = vpop.permute.xlu0 %2899
      %2901 = vrot.lane.b32.xlu0 %v2840, 1
      %v2902 = vpop.permute.xlu0 %2901
      %v2903 = vsel %vm1062, %v2900, %v2902
      %v2904 = vsel %vm1062, %v2898, %v2900
      %v2905 = vsel %vm1062, %v2896, %v2898
      %v2906 = vsel %vm1062, %v2902, %v2896
      %v2907 = vmul.f32 %v2906, %v1071
      %v2908 = vmul.f32 %v2905, %v1075
      %v2909 = vmul.f32 %v2904, %v1079
      %v2910 = vmul.f32 %v2903, %v1083
      %2911 = vrot.lane.b32.xlu0 %v2837, 127
      %v2912 = vpop.permute.xlu0 %2911
      %2913 = vrot.lane.b32.xlu0 %v2838, 127
      %v2914 = vpop.permute.xlu0 %2913
      %2915 = vrot.lane.b32.xlu0 %v2839, 127
      %v2916 = vpop.permute.xlu0 %2915
      %2917 = vrot.lane.b32.xlu0 %v2840, 127
      %v2918 = vpop.permute.xlu0 %2917
      %v2919 = vsel %vm1100, %v2916, %v2918
      %v2920 = vsel %vm1100, %v2914, %v2916
      %v2921 = vsel %vm1100, %v2912, %v2914
      %v2922 = vsel %vm1100, %v2918, %v2912
      %v2923 = vmul.f32 %v2921, %v1109
      %v2924 = vmul.f32 %v2920, %v1113
      %v2925 = vmul.f32 %v2919, %v1117
      %v2926 = vmul.f32 %v2922, %v1121
      %2927 = vrot.lane.b32.xlu0 %v2837, 113
      %v2928 = vpop.permute.xlu0 %2927
      %2929 = vrot.lane.b32.xlu0 %v2838, 113
      %v2930 = vpop.permute.xlu0 %2929
      %2931 = vrot.lane.b32.xlu0 %v2839, 113
      %v2932 = vpop.permute.xlu0 %2931
      %2933 = vrot.lane.b32.xlu0 %v2840, 113
      %v2934 = vpop.permute.xlu0 %2933
      %v2935 = vsel %vm1138, %v2932, %v2934
      %v2936 = vsel %vm1138, %v2930, %v2932
      %v2937 = vsel %vm1138, %v2928, %v2930
      %v2938 = vsel %vm1138, %v2934, %v2928
      %v2939 = vmul.f32 %v2937, %v1147
      %v2940 = vmul.f32 %v2936, %v1151
      %v2941 = vmul.f32 %v2935, %v1155
      %v2942 = vmul.f32 %v2938, %v1159
      %2943 = vrot.lane.b32.xlu0 %v2837, 112
      %v2944 = vpop.permute.xlu0 %2943
      %2945 = vrot.lane.b32.xlu0 %v2838, 112
      %v2946 = vpop.permute.xlu0 %2945
      %2947 = vrot.lane.b32.xlu0 %v2839, 112
      %v2948 = vpop.permute.xlu0 %2947
      %2949 = vrot.lane.b32.xlu0 %v2840, 112
      %v2950 = vpop.permute.xlu0 %2949
      %v2951 = vsel %vm1176, %v2948, %v2950
      %v2952 = vsel %vm1176, %v2946, %v2948
      %v2953 = vsel %vm1176, %v2944, %v2946
      %v2954 = vsel %vm1176, %v2950, %v2944
      %v2955 = vmul.f32 %v2953, %v1185
      %v2956 = vmul.f32 %v2952, %v1189
      %v2957 = vmul.f32 %v2951, %v1193
      %v2958 = vmul.f32 %v2954, %v1197
      %2959 = vrot.lane.b32.xlu0 %v2837, 111
      %v2960 = vpop.permute.xlu0 %2959
      %2961 = vrot.lane.b32.xlu0 %v2838, 111
      %v2962 = vpop.permute.xlu0 %2961
      %2963 = vrot.lane.b32.xlu0 %v2839, 111
      %v2964 = vpop.permute.xlu0 %2963
      %2965 = vrot.lane.b32.xlu0 %v2840, 111
      %v2966 = vpop.permute.xlu0 %2965
      %v2967 = vsel %vm1214, %v2964, %v2966
      %v2968 = vsel %vm1214, %v2962, %v2964
      %v2969 = vsel %vm1214, %v2960, %v2962
      %v2970 = vsel %vm1214, %v2966, %v2960
      %v2971 = vmul.f32 %v2969, %v1223
      %v2972 = vmul.f32 %v2968, %v1227
      %v2973 = vmul.f32 %v2967, %v1231
      %v2974 = vmul.f32 %v2970, %v1235
      %v2975 = vpack.c.bf16 %v2875, %v2859
      %v2976 = vpack.c.bf16 %v2876, %v2860
      %v2977 = vpack.c.bf16 %v2877, %v2861
      %v2978 = vpack.c.bf16 %v2878, %v2862
      %v2979 = vpack.c.bf16 %v2907, %v2891
      %v2980 = vpack.c.bf16 %v2908, %v2892
      %v2981 = vpack.c.bf16 %v2909, %v2893
      %v2982 = vpack.c.bf16 %v2910, %v2894
      %v2983 = vpack.c.bf16 %v2923, %v2837
      %v2984 = vpack.c.bf16 %v2924, %v2838
      %v2985 = vpack.c.bf16 %v2925, %v2839
      %v2986 = vpack.c.bf16 %v2926, %v2840
      %v2987 = vpack.c.bf16 %v2955, %v2939
      %v2988 = vpack.c.bf16 %v2956, %v2940
      %v2989 = vpack.c.bf16 %v2957, %v2941
      %v2990 = vpack.c.bf16 %v2958, %v2942
      %v2991 = vpack.c.bf16 %v2971, %v2971
      %v2992 = vpack.c.bf16 %v2972, %v2972
      %v2993 = vpack.c.bf16 %v2973, %v2973
      %v2994 = vpack.c.bf16 %v2974, %v2974
      %v2996 = vsel %vm2608, %v2842, 0
      %v2999 = vsel %vm1292, %v2991, 0
      %v3002 = vsel %vm1292, %v2992, 0
      %v3005 = vsel %vm1292, %v2993, 0
      %v3008 = vsel %vm1292, %v2994, 0
      %3010 = vmatprep.subr.bf16.mxu0 0
      %3011 = vmatpush1.bf16.msra.mxu0 0
      %3012 = vmatprep.subr.bf16.mxu0 0
      %3013 = vmatpush1.bf16.msra.mxu0 0
      %3014 = vmatprep.subr.bf16.mxu0 0
      %3015 = vmatpush1.bf16.msra.mxu0 0
      %3016 = vmatprep.subr.bf16.mxu0 %v3002
      %3017 = vmatpush1.bf16.msra.mxu0 %v2999
      %3018 = vmatprep.subr.bf16.mxu0 %v2988
      %3019 = vmatpush1.bf16.msra.mxu0 %v2987
      %3020 = vmatprep.subr.bf16.mxu0 %v2984
      %3021 = vmatpush1.bf16.msra.mxu0 %v2983
      %3022 = vmatprep.subr.bf16.mxu0 %v2980
      %3023 = vmatpush1.bf16.msra.mxu0 %v2979
      %3024 = vmatprep.subr.bf16.mxu0 %v2976
      %3025 = vmatpush1.bf16.msra.mxu0 %v2975
      %3026 = vmatprep.subr.bf16.mxu0 0
      %3027 = vmatpush2.bf16.msra.mxu0 0
      %3028 = vmatprep.subr.bf16.mxu0 0
      %3029 = vmatpush2.bf16.msra.mxu0 0
      %3030 = vmatprep.subr.bf16.mxu0 0
      %3031 = vmatpush2.bf16.msra.mxu0 0
      %3032 = vmatprep.subr.bf16.mxu0 0
      %3033 = vmatpush2.bf16.msra.mxu0 0
      %3034 = vmatprep.subr.bf16.mxu0 0
      %3035 = vmatpush2.bf16.msra.mxu0 0
      %3036 = vmatprep.subr.bf16.mxu0 0
      %3037 = vmatpush2.bf16.msra.mxu0 0
      %3038 = vmatprep.subr.bf16.mxu0 0
      %3039 = vmatpush2.bf16.msra.mxu0 0
      %3040 = vmatprep.subr.bf16.mxu0 0
      %3041 = vmatpush2.bf16.msra.mxu0 0
      %3042 = vmatprep.mubr.bf16.mxu0 0
      %3043 = vmatmul.mubr.bf16.gmra.mxu0 %v2996
      %v3044 = vpop.f32.mrf.mxu0
      %v3045 = vadd.f32 0.0, %v3044
      %v3046 = vpop.f32.mrf.mxu0
      %v3047 = vadd.f32 0.0, %v3046
      %v3048 = vpop.f32.mrf.mxu0
      %v3049 = vpop.f32.mrf.mxu0
      %3050 = vdwg.mxu0
      %3051 = vmatprep.subr.bf16.mxu0 0
      %3052 = vmatpush1.bf16.msra.mxu0 0
      %3053 = vmatprep.subr.bf16.mxu0 0
      %3054 = vmatpush1.bf16.msra.mxu0 0
      %3055 = vmatprep.subr.bf16.mxu0 0
      %3056 = vmatpush1.bf16.msra.mxu0 0
      %3057 = vmatprep.subr.bf16.mxu0 %v3008
      %3058 = vmatpush1.bf16.msra.mxu0 %v3005
      %3059 = vmatprep.subr.bf16.mxu0 %v2990
      %3060 = vmatpush1.bf16.msra.mxu0 %v2989
      %3061 = vmatprep.subr.bf16.mxu0 %v2986
      %3062 = vmatpush1.bf16.msra.mxu0 %v2985
      %3063 = vmatprep.subr.bf16.mxu0 %v2982
      %3064 = vmatpush1.bf16.msra.mxu0 %v2981
      %3065 = vmatprep.subr.bf16.mxu0 %v2978
      %3066 = vmatpush1.bf16.msra.mxu0 %v2977
      %3067 = vmatprep.subr.bf16.mxu0 0
      %3068 = vmatpush2.bf16.msra.mxu0 0
      %3069 = vmatprep.subr.bf16.mxu0 0
      %3070 = vmatpush2.bf16.msra.mxu0 0
      %3071 = vmatprep.subr.bf16.mxu0 0
      %3072 = vmatpush2.bf16.msra.mxu0 0
      %3073 = vmatprep.subr.bf16.mxu0 0
      %3074 = vmatpush2.bf16.msra.mxu0 0
      %3075 = vmatprep.subr.bf16.mxu0 0
      %3076 = vmatpush2.bf16.msra.mxu0 0
      %3077 = vmatprep.subr.bf16.mxu0 0
      %3078 = vmatpush2.bf16.msra.mxu0 0
      %3079 = vmatprep.subr.bf16.mxu0 0
      %3080 = vmatpush2.bf16.msra.mxu0 0
      %3081 = vmatprep.subr.bf16.mxu0 0
      %3082 = vmatpush2.bf16.msra.mxu0 0
      %3083 = vmatprep.mubr.bf16.mxu0 0
      %3084 = vmatmul.mubr.bf16.gmra.mxu0 %v2996
      %v3085 = vpop.f32.mrf.mxu0
      %v3086 = vadd.f32 0.0, %v3085
      %v3087 = vpop.f32.mrf.mxu0
      %v3088 = vadd.f32 0.0, %v3087
      %v3089 = vpop.f32.mrf.mxu0
      %v3090 = vpop.f32.mrf.mxu0
      %3091 = vdwg.mxu0
      %3093 = vset.pattern.permute.xlu0 0
      %3094 = vperm.xlu0 %3093, %v2844
      %v3095 = vpop.permute.xlu0 %3094
      %v3097 = vmul.f32 %v3045, %v3095
      %v3098 = vmul.f32 %v3047, %v3095
      %v3099 = vmul.f32 %v3086, %v3095
      %v3100 = vmul.f32 %v3088, %v3095
      %3102 = vset.pattern.permute.xlu0 0
      %3103 = vperm.xlu0 %3102, %v2846
      %v3104 = vpop.permute.xlu0 %3103
      %v3106 = vadd.f32 %v3097, %v3104
      %v3107 = vadd.f32 %v3098, %v3104
      %v3108 = vadd.f32 %v3099, %v3104
      %v3109 = vadd.f32 %v3100, %v3104
      %v3110 = vmax.f32 %v3106, 0.0
      %v3111 = vmax.f32 %v3107, 0.0
      %v3112 = vmax.f32 %v3108, 0.0
      %v3113 = vmax.f32 %v3109, 0.0
      %v3114 = vadd.f32 %v2724, %v3110
      %v3115 = vadd.f32 %v2725, %v3111
      %v3116 = vadd.f32 %v2726, %v3112
      %v3117 = vadd.f32 %v2727, %v3113
      %v3118 = vld [vmem:[%s727] sm:$0x3]
      %v3119 = vld [vmem:[%s731] sm:$0xf]
      %v3120 = vld [vmem:[%s735] sm:$0xf]
      %v3121 = vld [vmem:[%s740] sm:$0xf]
      %v3122 = vld [vmem:[%s740 + $0x4] sm:$0xf]
      %v3124 = vlaneseq
      %v3125 = vshrl.u32 %v3124, 7
      %v3126 = vsub.s32 0, %v3125
      %v3127 = vrot.slane %v763, %v3126
      %v3128 = vlaneseq
      %v3129 = vshrl.u32 %v3128, 7
      %v3130 = vsub.s32 1, %v3129
      %v3131 = vrot.slane %v763, %v3130
      %v3132 = vlaneseq
      %v3133 = vshrl.u32 %v3132, 7
      %v3134 = vsub.s32 2, %v3133
      %v3135 = vrot.slane %v763, %v3134
      %v3136 = vlaneseq
      %v3137 = vshrl.u32 %v3136, 7
      %v3138 = vsub.s32 3, %v3137
      %v3139 = vrot.slane %v763, %v3138
      %v3144 = vmul.f32 %v3114, %v3127
      %v3145 = vmul.f32 %v3115, %v3131
      %v3146 = vmul.f32 %v3116, %v3135
      %v3147 = vmul.f32 %v3117, %v3139
      %v3148 = vadd.f32 %v3144, %v3145
      %v3149 = vadd.f32 %v3148, %v3146
      %v3150 = vadd.f32 %v3149, %v3147
      %3151 = vadd.xlane.f32.xlu0 %v3150
      %v3152 = vpop.xlane.xlu0 %3151
      %v3153 = vmul.f32 %v3152, 0.00390625
      %v3154 = vpack.c.bf16 %v3153, %v3153
      %vm3155 = vcmask 64512
      %v3157 = vsel %vm3155, %v3118, 0
      %v3160 = vsel %vm1292, %v3154, 0
      %3162 = vmatprep.subr.bf16.mxu0 0
      %3163 = vmatpush1.bf16.msra.mxu0 0
      %3164 = vmatprep.subr.bf16.mxu0 0
      %3165 = vmatpush1.bf16.msra.mxu0 0
      %3166 = vmatprep.subr.bf16.mxu0 0
      %3167 = vmatpush1.bf16.msra.mxu0 0
      %3168 = vmatprep.subr.bf16.mxu0 0
      %3169 = vmatpush1.bf16.msra.mxu0 0
      %3170 = vmatprep.subr.bf16.mxu0 0
      %3171 = vmatpush1.bf16.msra.mxu0 0
      %3172 = vmatprep.subr.bf16.mxu0 0
      %3173 = vmatpush1.bf16.msra.mxu0 0
      %3174 = vmatprep.subr.bf16.mxu0 0
      %3175 = vmatpush1.bf16.msra.mxu0 0
      %3176 = vmatprep.subr.bf16.mxu0 0
      %3177 = vmatpush1.bf16.msra.mxu0 %v3160
      %3178 = vmatprep.subr.bf16.mxu0 0
      %3179 = vmatpush2.bf16.msra.mxu0 0
      %3180 = vmatprep.subr.bf16.mxu0 0
      %3181 = vmatpush2.bf16.msra.mxu0 0
      %3182 = vmatprep.subr.bf16.mxu0 0
      %3183 = vmatpush2.bf16.msra.mxu0 0
      %3184 = vmatprep.subr.bf16.mxu0 0
      %3185 = vmatpush2.bf16.msra.mxu0 0
      %3186 = vmatprep.subr.bf16.mxu0 0
      %3187 = vmatpush2.bf16.msra.mxu0 0
      %3188 = vmatprep.subr.bf16.mxu0 0
      %3189 = vmatpush2.bf16.msra.mxu0 0
      %3190 = vmatprep.subr.bf16.mxu0 0
      %3191 = vmatpush2.bf16.msra.mxu0 0
      %3192 = vmatprep.subr.bf16.mxu0 0
      %3193 = vmatpush2.bf16.msra.mxu0 0
      %3194 = vmatprep.mubr.bf16.mxu0 0
      %3195 = vmatmul.mubr.bf16.gmra.mxu0 %v3157
      %v3196 = vpop.f32.mrf.mxu0
      %v3197 = vadd.f32 0.0, %v3196
      %v3198 = vpop.f32.mrf.mxu0
      %v3199 = vpop.f32.mrf.mxu0
      %v3200 = vpop.f32.mrf.mxu0
      %3201 = vdwg.mxu0
      %v3202 = vmul.f32 %v3197, %v3119
      %v3203 = vadd.f32 %v3202, %v3120
      %v3204 = vmax.f32 %v3203, 0.0
      %v3205 = vpack.c.bf16 %v3204, %v3204
      %v3208 = vunpack.c.l.b16 %v3121
      %v3209 = vunpack.c.l.b16 %v3122
      %v3210 = vpack.c.b16 %v3209, %v3208
      %vm3211 = vcmask 31744
      %v3213 = vsel %vm3211, %v3210, 0
      %v3216 = vsel %vm1325, %v3205, 0
      %3218 = vmatprep.subr.bf16.mxu0 0
      %3219 = vmatpush1.bf16.msra.mxu0 0
      %3220 = vmatprep.subr.bf16.mxu0 0
      %3221 = vmatpush1.bf16.msra.mxu0 0
      %3222 = vmatprep.subr.bf16.mxu0 0
      %3223 = vmatpush1.bf16.msra.mxu0 0
      %3224 = vmatprep.subr.bf16.mxu0 0
      %3225 = vmatpush1.bf16.msra.mxu0 0
      %3226 = vmatprep.subr.bf16.mxu0 0
      %3227 = vmatpush1.bf16.msra.mxu0 0
      %3228 = vmatprep.subr.bf16.mxu0 0
      %3229 = vmatpush1.bf16.msra.mxu0 0
      %3230 = vmatprep.subr.bf16.mxu0 0
      %3231 = vmatpush1.bf16.msra.mxu0 0
      %3232 = vmatprep.subr.bf16.mxu0 0
      %3233 = vmatpush1.bf16.msra.mxu0 %v3216
      %3234 = vmatprep.subr.bf16.mxu0 0
      %3235 = vmatpush2.bf16.msra.mxu0 0
      %3236 = vmatprep.subr.bf16.mxu0 0
      %3237 = vmatpush2.bf16.msra.mxu0 0
      %3238 = vmatprep.subr.bf16.mxu0 0
      %3239 = vmatpush2.bf16.msra.mxu0 0
      %3240 = vmatprep.subr.bf16.mxu0 0
      %3241 = vmatpush2.bf16.msra.mxu0 0
      %3242 = vmatprep.subr.bf16.mxu0 0
      %3243 = vmatpush2.bf16.msra.mxu0 0
      %3244 = vmatprep.subr.bf16.mxu0 0
      %3245 = vmatpush2.bf16.msra.mxu0 0
      %3246 = vmatprep.subr.bf16.mxu0 0
      %3247 = vmatpush2.bf16.msra.mxu0 0
      %3248 = vmatprep.subr.bf16.mxu0 0
      %3249 = vmatpush2.bf16.msra.mxu0 0
      %3250 = vmatprep.mubr.bf16.mxu0 0
      %3251 = vmatmul.mubr.bf16.gmra.mxu0 %v3213
      %v3252 = vpop.f32.mrf.mxu0
      %v3253 = vadd.f32 0.0, %v3252
      %v3254 = vpop.f32.mrf.mxu0
      %v3255 = vpop.f32.mrf.mxu0
      %v3256 = vadd.f32 0.0, %v3255
      %v3257 = vpop.f32.mrf.mxu0
      %3258 = vdwg.mxu0
      %v3259 = vmax.f32 %v3253, %v3256
      %v3260 = vsub.f32 %v3253, %v3259
      %v3261 = vmul.f32 %v3260, 1.442695
      %v3262 = vpow.pop %v3261
      %v3263 = vsub.f32 %v3256, %v3259
      %v3264 = vmul.f32 %v3263, 1.442695
      %v3265 = vpow.pop %v3264
      %v3266 = vadd.f32 %v3262, %v3265
      %v3267 = vrcp.pop %v3266
      %v3268 = vmul.f32 %v3262, %v3267
      %3270 = vset.pattern.permute.xlu0 0
      %3271 = vperm.xlu0 %3270, %v3268
      %v3272 = vpop.permute.xlu0 %3271
      %v3274 = vmul.f32 %v3272, %v2724
      %v3275 = vmul.f32 %v3272, %v2725
      %v3276 = vmul.f32 %v3272, %v2726
      %v3277 = vmul.f32 %v3272, %v2727
      %v3278 = vmul.f32 %v3265, %v3267
      %3280 = vset.pattern.permute.xlu0 0
      %3281 = vperm.xlu0 %3280, %v3278
      %v3282 = vpop.permute.xlu0 %3281
      %v3284 = vmul.f32 %v3282, %v3110
      %v3285 = vmul.f32 %v3282, %v3111
      %v3286 = vmul.f32 %v3282, %v3112
      %v3287 = vmul.f32 %v3282, %v3113
      %v3288 = vadd.f32 %v3274, %v3284
      %v3289 = vadd.f32 %v3275, %v3285
      %v3290 = vadd.f32 %v3276, %v3286
      %v3291 = vadd.f32 %v3277, %v3287
      %v3292 = vmul.f32 %v3288, %v3127
      %v3293 = vmul.f32 %v3289, %v3131
      %v3294 = vmul.f32 %v3290, %v3135
      %v3295 = vmul.f32 %v3291, %v3139
      %v3297 = vlaneseq
      %v3298 = vshrl.u32 %v3297, 7
      %v3299 = vsub.s32 0, %v3298
      %v3300 = vrot.slane %v765, %v3299
      %v3301 = vlaneseq
      %v3302 = vshrl.u32 %v3301, 7
      %v3303 = vsub.s32 1, %v3302
      %v3304 = vrot.slane %v765, %v3303
      %v3305 = vlaneseq
      %v3306 = vshrl.u32 %v3305, 7
      %v3307 = vsub.s32 2, %v3306
      %v3308 = vrot.slane %v765, %v3307
      %v3309 = vlaneseq
      %v3310 = vshrl.u32 %v3309, 7
      %v3311 = vsub.s32 3, %v3310
      %v3312 = vrot.slane %v765, %v3311
      %v3317 = vmul.f32 %v3114, %v3300
      %v3318 = vmul.f32 %v3115, %v3304
      %v3319 = vmul.f32 %v3116, %v3308
      %v3320 = vmul.f32 %v3117, %v3312
      %v3321 = vadd.f32 %v3317, %v3318
      %v3322 = vadd.f32 %v3321, %v3319
      %v3323 = vadd.f32 %v3322, %v3320
      %3324 = vadd.xlane.f32.xlu0 %v3323
      %v3325 = vpop.xlane.xlu0 %3324
      %v3326 = vmul.f32 %v3325, 0.00390625
      %v3327 = vpack.c.bf16 %v3326, %v3326
      %v3329 = vsel %vm1292, %v3327, 0
      %3331 = vmatprep.subr.bf16.mxu0 0
      %3332 = vmatpush1.bf16.msra.mxu0 0
      %3333 = vmatprep.subr.bf16.mxu0 0
      %3334 = vmatpush1.bf16.msra.mxu0 0
      %3335 = vmatprep.subr.bf16.mxu0 0
      %3336 = vmatpush1.bf16.msra.mxu0 0
      %3337 = vmatprep.subr.bf16.mxu0 0
      %3338 = vmatpush1.bf16.msra.mxu0 0
      %3339 = vmatprep.subr.bf16.mxu0 0
      %3340 = vmatpush1.bf16.msra.mxu0 0
      %3341 = vmatprep.subr.bf16.mxu0 0
      %3342 = vmatpush1.bf16.msra.mxu0 0
      %3343 = vmatprep.subr.bf16.mxu0 0
      %3344 = vmatpush1.bf16.msra.mxu0 0
      %3345 = vmatprep.subr.bf16.mxu0 0
      %3346 = vmatpush1.bf16.msra.mxu0 %v3329
      %3347 = vmatprep.subr.bf16.mxu0 0
      %3348 = vmatpush2.bf16.msra.mxu0 0
      %3349 = vmatprep.subr.bf16.mxu0 0
      %3350 = vmatpush2.bf16.msra.mxu0 0
      %3351 = vmatprep.subr.bf16.mxu0 0
      %3352 = vmatpush2.bf16.msra.mxu0 0
      %3353 = vmatprep.subr.bf16.mxu0 0
      %3354 = vmatpush2.bf16.msra.mxu0 0
      %3355 = vmatprep.subr.bf16.mxu0 0
      %3356 = vmatpush2.bf16.msra.mxu0 0
      %3357 = vmatprep.subr.bf16.mxu0 0
      %3358 = vmatpush2.bf16.msra.mxu0 0
      %3359 = vmatprep.subr.bf16.mxu0 0
      %3360 = vmatpush2.bf16.msra.mxu0 0
      %3361 = vmatprep.subr.bf16.mxu0 0
      %3362 = vmatpush2.bf16.msra.mxu0 0
      %3363 = vmatprep.mubr.bf16.mxu0 0
      %3364 = vmatmul.mubr.bf16.gmra.mxu0 %v3157
      %v3365 = vpop.f32.mrf.mxu0
      %v3366 = vadd.f32 0.0, %v3365
      %v3367 = vpop.f32.mrf.mxu0
      %v3368 = vpop.f32.mrf.mxu0
      %v3369 = vpop.f32.mrf.mxu0
      %3370 = vdwg.mxu0
      %v3371 = vmul.f32 %v3366, %v3119
      %v3372 = vadd.f32 %v3371, %v3120
      %v3373 = vmax.f32 %v3372, 0.0
      %v3374 = vpack.c.bf16 %v3373, %v3373
      %v3376 = vsel %vm1325, %v3374, 0
      %3378 = vmatprep.subr.bf16.mxu0 0
      %3379 = vmatpush1.bf16.msra.mxu0 0
      %3380 = vmatprep.subr.bf16.mxu0 0
      %3381 = vmatpush1.bf16.msra.mxu0 0
      %3382 = vmatprep.subr.bf16.mxu0 0
      %3383 = vmatpush1.bf16.msra.mxu0 0
      %3384 = vmatprep.subr.bf16.mxu0 0
      %3385 = vmatpush1.bf16.msra.mxu0 0
      %3386 = vmatprep.subr.bf16.mxu0 0
      %3387 = vmatpush1.bf16.msra.mxu0 0
      %3388 = vmatprep.subr.bf16.mxu0 0
      %3389 = vmatpush1.bf16.msra.mxu0 0
      %3390 = vmatprep.subr.bf16.mxu0 0
      %3391 = vmatpush1.bf16.msra.mxu0 0
      %3392 = vmatprep.subr.bf16.mxu0 0
      %3393 = vmatpush1.bf16.msra.mxu0 %v3376
      %3394 = vmatprep.subr.bf16.mxu0 0
      %3395 = vmatpush2.bf16.msra.mxu0 0
      %3396 = vmatprep.subr.bf16.mxu0 0
      %3397 = vmatpush2.bf16.msra.mxu0 0
      %3398 = vmatprep.subr.bf16.mxu0 0
      %3399 = vmatpush2.bf16.msra.mxu0 0
      %3400 = vmatprep.subr.bf16.mxu0 0
      %3401 = vmatpush2.bf16.msra.mxu0 0
      %3402 = vmatprep.subr.bf16.mxu0 0
      %3403 = vmatpush2.bf16.msra.mxu0 0
      %3404 = vmatprep.subr.bf16.mxu0 0
      %3405 = vmatpush2.bf16.msra.mxu0 0
      %3406 = vmatprep.subr.bf16.mxu0 0
      %3407 = vmatpush2.bf16.msra.mxu0 0
      %3408 = vmatprep.subr.bf16.mxu0 0
      %3409 = vmatpush2.bf16.msra.mxu0 0
      %3410 = vmatprep.mubr.bf16.mxu0 0
      %3411 = vmatmul.mubr.bf16.gmra.mxu0 %v3213
      %v3412 = vpop.f32.mrf.mxu0
      %v3413 = vadd.f32 0.0, %v3412
      %v3414 = vpop.f32.mrf.mxu0
      %v3415 = vpop.f32.mrf.mxu0
      %v3416 = vadd.f32 0.0, %v3415
      %v3417 = vpop.f32.mrf.mxu0
      %3418 = vdwg.mxu0
      %v3419 = vmax.f32 %v3413, %v3416
      %v3420 = vsub.f32 %v3413, %v3419
      %v3421 = vmul.f32 %v3420, 1.442695
      %v3422 = vpow.pop %v3421
      %v3423 = vsub.f32 %v3416, %v3419
      %v3424 = vmul.f32 %v3423, 1.442695
      %v3425 = vpow.pop %v3424
      %v3426 = vadd.f32 %v3422, %v3425
      %v3427 = vrcp.pop %v3426
      %v3428 = vmul.f32 %v3422, %v3427
      %3430 = vset.pattern.permute.xlu0 0
      %3431 = vperm.xlu0 %3430, %v3428
      %v3432 = vpop.permute.xlu0 %3431
      %v3434 = vmul.f32 %v3432, %v2724
      %v3435 = vmul.f32 %v3432, %v2725
      %v3436 = vmul.f32 %v3432, %v2726
      %v3437 = vmul.f32 %v3432, %v2727
      %v3438 = vmul.f32 %v3425, %v3427
      %3440 = vset.pattern.permute.xlu0 0
      %3441 = vperm.xlu0 %3440, %v3438
      %v3442 = vpop.permute.xlu0 %3441
      %v3444 = vmul.f32 %v3442, %v3110
      %v3445 = vmul.f32 %v3442, %v3111
      %v3446 = vmul.f32 %v3442, %v3112
      %v3447 = vmul.f32 %v3442, %v3113
      %v3448 = vadd.f32 %v3434, %v3444
      %v3449 = vadd.f32 %v3435, %v3445
      %v3450 = vadd.f32 %v3436, %v3446
      %v3451 = vadd.f32 %v3437, %v3447
      %v3452 = vmul.f32 %v3448, %v3300
      %v3453 = vmul.f32 %v3449, %v3304
      %v3454 = vmul.f32 %v3450, %v3308
      %v3455 = vmul.f32 %v3451, %v3312
      %v3456 = vadd.f32 %v3292, %v3452
      %v3457 = vadd.f32 %v3293, %v3453
      %v3458 = vadd.f32 %v3294, %v3454
      %v3459 = vadd.f32 %v3295, %v3455
      %v3460 = vmax.f32 %v3456, 0.0
      %v3461 = vmax.f32 %v3457, 0.0
      %v3462 = vmax.f32 %v3458, 0.0
      %v3463 = vmax.f32 %v3459, 0.0
      %v3468 = vrot.slane %v1438, 4
      %v3469 = vrot.slane %v1439, 4
      %v3470 = vrot.slane %v1440, 4
      %v3471 = vrot.slane %v1441, 4
      %v3476 = vsel %vm1292, %v915, %v3468
      %v3477 = vsel %vm1292, %v916, %v3469
      %v3478 = vsel %vm1292, %v917, %v3470
      %v3479 = vsel %vm1292, %v918, %v3471
      %3480 = vst [vmem:[%s745] sm:$0xff] %v3476
      %3481 = vst [vmem:[%s745 + $0x8] sm:$0xff] %v3477
      %3482 = vst [vmem:[%s745 + $0x10] sm:$0xff] %v3478
      %3483 = vst [vmem:[%s745 + $0x18] sm:$0xff] %v3479
      %3484 = vst [vmem:[%s745 + $0x20] sm:$0xff] %v3460
      %3485 = vst [vmem:[%s745 + $0x28] sm:$0xff] %v3461
      %3486 = vst [vmem:[%s745 + $0x30] sm:$0xff] %v3462
      %3487 = vst [vmem:[%s745 + $0x38] sm:$0xff] %v3463
      %p3488 = scmp.lt.s32.totalorder %s26, 1
      %s3489 = scalar_select %p3488, %s26, 1
      %s3490 = smul.addr %s3489, 8
      %s3491 = smul.addr %s3490, 8
      %s3492 = scalar_lea.vmem %s15, %s3491
      // Predicated region
      $region81: #{res1_forward.1} parent=79 // pred_check
        %p3493 = pneg %p429
      $region82: #{res1_forward.1} parent=79 // pred_check_branch
        %3495 = sbr.rel (%p3493) target = $region84
      $region83: #{res1_forward.1} parent=79 // pred_region
        _
      $region84: #{res1_forward.1} parent=79 // pred_fallthru
        _
    $region80: #{res1_forward.1} parent=5 // pred_fallthru
      _
    %p3496 = scmp.le.s32.totalorder 2, %s21
    // Predicated region
    $region85: #{res1_forward.1} parent=5 // pred_check
      %p3497 = pneg %p3496
    $region86: #{res1_forward.1} parent=5 // pred_check_branch
      %3499 = sbr.rel (%p3497) target = $region88
    $region87: #{res1_forward.1} parent=5 // pred_region
      %s3500 = ssub.s32 %s21, 2
      // Predicated region
      $region89: #{res1_forward.1} parent=87 // pred_check
        %p3501 = pneg %p435
      $region90: #{res1_forward.1} parent=87 // pred_check_branch
        %3503 = sbr.rel (%p3501) target = $region92
      $region91: #{res1_forward.1} parent=87 // pred_region
        %p3504 = scmp.lt.s32.totalorder %s27, 1
        %s3505 = scalar_select %p3504, %s27, 1
        %s3506 = smul.addr %s3505, 8
        %s3507 = smul.addr %s3506, 8
        %s3508 = scalar_lea.vmem %s15, %s3507
      $region92: #{res1_forward.1} parent=87 // pred_fallthru
        _
    $region88: #{res1_forward.1} parent=5 // pred_fallthru
      _
  $region6: #{res1_forward.1} parent=0 // loop_footer
    %s25 = sadd.s32 1, %s21
  $region7: #{res1_forward.1} parent=0 // loop_footer_branch
    %20 = sbr.rel target = $region3
  $region8: #{res1_forward.1} parent=0 // loop_exit
    _

</llo_original>
